<compile_context>
chip_gen: v6e
topology: v6e:2x2x1
jax: 0.10.0
libtpu: 0.0.40
codegen_flags: <defaults>
</compile_context>

<pallas_src>
import jax
import jax.numpy as jnp
from jax.experimental import pallas as pl
from jax.experimental.pallas import tpu as pltpu


def actor_head_forward(x, w1, b1, bn_gamma, bn_beta, bn_mean, bn_var, w2, b2, *, eps=1e-5):
    """actorHead forward.
    x: (B, C, H, W) f32; w1: (C1, C, 5, 5); b1: (C1,); bn_*: (C1,);
    w2: (A, C1, 5, 5); b2: (A,).  Returns logits (B, A*H*W) f32."""
    B, C, H, W = x.shape
    C1 = w1.shape[0]
    A = w2.shape[0]

    # Halo-padded lane layout: each image padded by 2 on every spatial side.
    Hp, Wp = H + 4, W + 4
    P = Hp * Wp                      # padded pixels per image
    NP = B * P                       # conv output lane width (padded positions)
    G = 2 * Wp + 2                   # global lane margin so all tap shifts stay in-bounds
    NPAD = pl.cdiv(NP + 2 * G, 128) * 128   # lane-aligned total width of the h buffer
    assert G >= 2 * Wp + 2 and NPAD - G - NP >= 2 * Wp + 2, "halo margin too small"

    # ---- wrapper-side parameter prep (free, done once) ----
    scale = bn_gamma / jnp.sqrt(bn_var + eps)                                   # (C1,)
    w1s = w1 * scale[:, None, None, None]
    # lane-dense tap-stacked weight slabs: column order = (ky*5+kx)*Cin + cin
    w1m = jnp.transpose(w1s, (0, 2, 3, 1)).reshape(C1, 25 * C).astype(jnp.bfloat16)   # (16, 100)
    w2m = jnp.transpose(w2, (0, 2, 3, 1)).reshape(A, 25 * C1).astype(jnp.bfloat16)    # (8, 400)
    b1f = ((b1 - bn_mean) * scale + bn_beta).reshape(C1, 1).astype(jnp.float32)
    b2f = b2.reshape(A, 1).astype(jnp.float32)

    # ---- wrapper-side conv1 im2col over ALL padded positions (zeros at borders) ----
    xbig = jnp.zeros((B, C, H + 8, W + 8), x.dtype).at[:, :, 4:4 + H, 4:4 + W].set(x)
    taps = []
    for k in range(25):
        dy, dx = k // 5 - 2, k % 5 - 2
        slab = xbig[:, :, 2 + dy:2 + dy + Hp, 2 + dx:2 + dx + Wp]      # (B, C, Hp, Wp)
        taps.append(jnp.transpose(slab, (1, 0, 2, 3)).reshape(C, NP))
    xcol_core = jnp.concatenate(taps, axis=0).astype(jnp.bfloat16)     # (25*C, NP)
    xcol = jnp.zeros((25 * C, NPAD), jnp.bfloat16).at[:, G:G + NP].set(xcol_core)

    # interior mask (1 at true image pixels, 0 at halo / global margin) — applied once to h
    m2 = jnp.zeros((Hp, Wp), jnp.float32).at[2:2 + H, 2:2 + W].set(1.0)
    mask = jnp.zeros((1, NPAD), jnp.float32).at[0, G:G + NP].set(jnp.tile(m2.reshape(-1), B))

    def kernel(xcol_ref, w1_ref, b1_ref, mask_ref, w2_ref, b2_ref, o_ref,
               hpad_ref, hcol_ref):
        # conv1 (+ folded BN) as ONE matmul, ReLU, halo re-zero (single mask multiply)
        z = jnp.dot(w1_ref[...], xcol_ref[...], preferred_element_type=jnp.float32)
        h = jnp.maximum(z + b1_ref[...], 0.0) * mask_ref[...]          # (C1, NPAD) f32
        hpad_ref[...] = h.astype(hpad_ref.dtype)                       # one aligned full store

        # conv2 im2col: 25 plain static lane slices (halo zeros => no masks needed)
        for k in range(25):
            dy, dx = k // 5 - 2, k % 5 - 2
            start = G + dy * Wp + dx
            hcol_ref[k * C1:(k + 1) * C1, :] = hpad_ref[:, start:start + NP]

        # conv2 as ONE matmul over the tap-stacked contraction dim
        out = jnp.dot(w2_ref[...], hcol_ref[...], preferred_element_type=jnp.float32)
        o_ref[...] = out + b2_ref[...]

    out = pl.pallas_call(
        kernel,
        out_shape=jax.ShapeDtypeStruct((A, NP), jnp.float32),
        grid_spec=pltpu.PrefetchScalarGridSpec(
            num_scalar_prefetch=0,
            grid=(1,),                                   # single fused step (batch folded into lanes)
            in_specs=[
                pl.BlockSpec((25 * C, NPAD), lambda i: (0, 0)),
                pl.BlockSpec((C1, 25 * C), lambda i: (0, 0)),
                pl.BlockSpec((C1, 1), lambda i: (0, 0)),
                pl.BlockSpec((1, NPAD), lambda i: (0, 0)),
                pl.BlockSpec((A, 25 * C1), lambda i: (0, 0)),
                pl.BlockSpec((A, 1), lambda i: (0, 0)),
            ],
            out_specs=pl.BlockSpec((A, NP), lambda i: (0, 0)),
            scratch_shapes=[
                pltpu.VMEM((C1, NPAD), jnp.bfloat16),        # halo-padded h
                pltpu.VMEM((25 * C1, NP), jnp.bfloat16),     # conv2 im2col RHS
            ],
        ),
        compiler_params=pltpu.CompilerParams(
            dimension_semantics=("arbitrary",)),
    )(xcol, w1m, b1f, mask, w2m, b2f)

    # (A, B*Hp*Wp) padded layout -> interior -> (B, A*H*W), identical to torch.flatten(start_dim=1)
    out_img = out.reshape(A, B, Hp, Wp)[:, :, 2:2 + H, 2:2 + W]        # (A, B, H, W)
    return jnp.transpose(out_img, (1, 0, 2, 3)).reshape(B, A * H * W)


if __name__ == "__main__":
    # Module config: input_shape = (C, H, W) = (4, 16, 16); action_space = A*H*W with A = 8
    B, C, H, W = 2, 4, 16, 16
    C1 = 4 * C          # conv1 out channels = 4 * input_shape[0]
    A = 8               # self.action_space = (A*H*W) // (H*W)

    key = jax.random.PRNGKey(0)
    ks = jax.random.split(key, 9)
    x = jax.random.normal(ks[0], (B, C, H, W), dtype=jnp.float32)
    w1 = 0.1 * jax.random.normal(ks[1], (C1, C, 5, 5), dtype=jnp.float32)
    b1 = 0.1 * jax.random.normal(ks[2], (C1,), dtype=jnp.float32)
    gamma = 1.0 + 0.1 * jax.random.normal(ks[3], (C1,), dtype=jnp.float32)
    beta = 0.1 * jax.random.normal(ks[4], (C1,), dtype=jnp.float32)
    r_mean = 0.1 * jax.random.normal(ks[5], (C1,), dtype=jnp.float32)
    r_var = 0.5 + jnp.abs(jax.random.normal(ks[6], (C1,), dtype=jnp.float32))
    w2 = 0.1 * jax.random.normal(ks[7], (A, C1, 5, 5), dtype=jnp.float32)
    b2 = 0.1 * jax.random.normal(ks[8], (A,), dtype=jnp.float32)

    logits = actor_head_forward(x, w1, b1, gamma, beta, r_mean, r_var, w2, b2)
    logits = jax.block_until_ready(logits)

    # Plain-JAX reference: same math (eval-mode BN folded into conv1, same bf16
    # quantization of the data path), so only accumulation order differs.
    eps = 1e-5
    scale = gamma / jnp.sqrt(r_var + eps)
    q = lambda a: a.astype(jnp.bfloat16).astype(jnp.float32)

    def conv_same(inp, w):
        return jax.lax.conv_general_dilated(
            inp, w, window_strides=(1, 1), padding="SAME",
            dimension_numbers=("NCHW", "OIHW", "NCHW"))

    b1f = (b1 - r_mean) * scale + beta
    h_ref = jnp.maximum(conv_same(q(x), q(w1 * scale[:, None, None, None]))
                        + b1f[None, :, None, None], 0.0)
    y_ref = conv_same(q(h_ref), q(w2)) + b2[None, :, None, None]
    ref = y_ref.reshape(B, -1)

    assert logits.shape == (B, A * H * W)
    assert jnp.allclose(logits, ref, atol=1e-2, rtol=1e-2), \
        float(jnp.max(jnp.abs(logits - ref)))
    print("KERNEL_OK")
</pallas_src>

<mosaic_0001>
module attributes {stable_mosaic.version = 11 : i64} {
  func.func @kernel(%arg0: i32, %arg1: memref<100x896xbf16, #tpu.memory_space<vmem>>, %arg2: memref<16x100xbf16, #tpu.memory_space<vmem>>, %arg3: memref<16x1xf32, #tpu.memory_space<vmem>>, %arg4: memref<1x896xf32, #tpu.memory_space<vmem>>, %arg5: memref<8x400xbf16, #tpu.memory_space<vmem>>, %arg6: memref<8x1xf32, #tpu.memory_space<vmem>>, %arg7: memref<8x800xf32, #tpu.memory_space<vmem>>, %arg8: memref<16x896xbf16, #tpu.memory_space<vmem>>, %arg9: memref<400x800xbf16, #tpu.memory_space<vmem>>) attributes {dimension_semantics = [#tpu.dimension_semantics<arbitrary>], iteration_bounds = array<i64: 1>, scalar_prefetch = 0 : i64, scratch_operands = 2 : i64, tpu.core_type = #tpu.core_type<tc>, window_params = [{pipeline_mode = #tpu.pipeline_mode<synchronous>, transform_indices = @transform_0, window_bounds = array<i64: 100, 896>}, {pipeline_mode = #tpu.pipeline_mode<synchronous>, transform_indices = @transform_1, window_bounds = array<i64: 16, 100>}, {pipeline_mode = #tpu.pipeline_mode<synchronous>, transform_indices = @transform_2, window_bounds = array<i64: 16, 1>}, {pipeline_mode = #tpu.pipeline_mode<synchronous>, transform_indices = @transform_3, window_bounds = array<i64: 1, 896>}, {pipeline_mode = #tpu.pipeline_mode<synchronous>, transform_indices = @transform_4, window_bounds = array<i64: 8, 400>}, {pipeline_mode = #tpu.pipeline_mode<synchronous>, transform_indices = @transform_5, window_bounds = array<i64: 8, 1>}, {pipeline_mode = #tpu.pipeline_mode<synchronous>, transform_indices = @transform_6, window_bounds = array<i64: 8, 800>}]} {
    %c0 = arith.constant 0 : index
    %c0_0 = arith.constant 0 : index
    %0 = vector.load %arg2[%c0, %c0_0] : memref<16x100xbf16, #tpu.memory_space<vmem>>, vector<16x100xbf16>
    %c0_1 = arith.constant 0 : index
    %c0_2 = arith.constant 0 : index
    %1 = vector.load %arg1[%c0_1, %c0_2] : memref<100x896xbf16, #tpu.memory_space<vmem>>, vector<100x896xbf16>
    %cst = arith.constant dense<0.000000e+00> : vector<16x896xf32>
    %2 = tpu.matmul %0, %1, %cst {dimension_numbers = #tpu.dot_dimension_numbers<[1], [0], [0], [1], [0, 0, 1, 1], [], []>} : vector<16x100xbf16>, vector<100x896xbf16>, vector<16x896xf32> -> vector<16x896xf32>
    %c0_3 = arith.constant 0 : index
    %c0_4 = arith.constant 0 : index
    %3 = vector.load %arg3[%c0_3, %c0_4] : memref<16x1xf32, #tpu.memory_space<vmem>>, vector<16x1xf32>
    %4 = vector.broadcast %3 : vector<16x1xf32> to vector<16x896xf32>
    %5 = arith.addf %2, %4 : vector<16x896xf32>
    %cst_5 = arith.constant 0.000000e+00 : f32
    %6 = vector.broadcast %cst_5 : f32 to vector<16x896xf32>
    %7 = arith.maximumf %5, %6 : vector<16x896xf32>
    %c0_6 = arith.constant 0 : index
    %c0_7 = arith.constant 0 : index
    %8 = vector.load %arg4[%c0_6, %c0_7] : memref<1x896xf32, #tpu.memory_space<vmem>>, vector<1x896xf32>
    %9 = vector.broadcast %8 : vector<1x896xf32> to vector<16x896xf32>
    %10 = arith.mulf %7, %9 : vector<16x896xf32>
    %11 = arith.truncf %10 : vector<16x896xf32> to vector<16x896xbf16>
    %c0_8 = arith.constant 0 : index
    %c0_9 = arith.constant 0 : index
    %12 = vector.load %arg8[%c0_8, %c0_9] : memref<16x896xbf16, #tpu.memory_space<vmem>>, vector<16x896xbf16>
    tpu.vector_store %arg8[%c0_8, %c0_9], %11 {strides = array<i32>} : memref<16x896xbf16, #tpu.memory_space<vmem>>, vector<16x896xbf16>,
    %c0_10 = arith.constant 0 : index
    %c0_11 = arith.constant 0 : index
    %13 = vector.load %arg8[%c0_10, %c0_11] : memref<16x896xbf16, #tpu.memory_space<vmem>>, vector<16x800xbf16>
    %c0_12 = arith.constant 0 : index
    %c0_13 = arith.constant 0 : index
    %14 = vector.load %arg9[%c0_12, %c0_13] : memref<400x800xbf16, #tpu.memory_space<vmem>>, vector<16x800xbf16>
    tpu.vector_store %arg9[%c0_12, %c0_13], %13 {strides = array<i32>} : memref<400x800xbf16, #tpu.memory_space<vmem>>, vector<16x800xbf16>,
    %c0_14 = arith.constant 0 : index
    %c1 = arith.constant 1 : index
    %15 = vector.load %arg8[%c0_14, %c1] : memref<16x896xbf16, #tpu.memory_space<vmem>>, vector<16x800xbf16>
    %c16 = arith.constant 16 : index
    %c0_15 = arith.constant 0 : index
    %16 = vector.load %arg9[%c16, %c0_15] : memref<400x800xbf16, #tpu.memory_space<vmem>>, vector<16x800xbf16>
    tpu.vector_store %arg9[%c16, %c0_15], %15 {strides = array<i32>} : memref<400x800xbf16, #tpu.memory_space<vmem>>, vector<16x800xbf16>,
    %c0_16 = arith.constant 0 : index
    %c2 = arith.constant 2 : index
    %17 = vector.load %arg8[%c0_16, %c2] : memref<16x896xbf16, #tpu.memory_space<vmem>>, vector<16x800xbf16>
    %c32 = arith.constant 32 : index
    %c0_17 = arith.constant 0 : index
    %18 = vector.load %arg9[%c32, %c0_17] : memref<400x800xbf16, #tpu.memory_space<vmem>>, vector<16x800xbf16>
    tpu.vector_store %arg9[%c32, %c0_17], %17 {strides = array<i32>} : memref<400x800xbf16, #tpu.memory_space<vmem>>, vector<16x800xbf16>,
    %c0_18 = arith.constant 0 : index
    %c3 = arith.constant 3 : index
    %19 = vector.load %arg8[%c0_18, %c3] : memref<16x896xbf16, #tpu.memory_space<vmem>>, vector<16x800xbf16>
    %c48 = arith.constant 48 : index
    %c0_19 = arith.constant 0 : index
    %20 = vector.load %arg9[%c48, %c0_19] : memref<400x800xbf16, #tpu.memory_space<vmem>>, vector<16x800xbf16>
    tpu.vector_store %arg9[%c48, %c0_19], %19 {strides = array<i32>} : memref<400x800xbf16, #tpu.memory_space<vmem>>, vector<16x800xbf16>,
    %c0_20 = arith.constant 0 : index
    %c4 = arith.constant 4 : index
    %21 = vector.load %arg8[%c0_20, %c4] : memref<16x896xbf16, #tpu.memory_space<vmem>>, vector<16x800xbf16>
    %c64 = arith.constant 64 : index
    %c0_21 = arith.constant 0 : index
    %22 = vector.load %arg9[%c64, %c0_21] : memref<400x800xbf16, #tpu.memory_space<vmem>>, vector<16x800xbf16>
    tpu.vector_store %arg9[%c64, %c0_21], %21 {strides = array<i32>} : memref<400x800xbf16, #tpu.memory_space<vmem>>, vector<16x800xbf16>,
    %c0_22 = arith.constant 0 : index
    %c20 = arith.constant 20 : index
    %23 = vector.load %arg8[%c0_22, %c20] : memref<16x896xbf16, #tpu.memory_space<vmem>>, vector<16x800xbf16>
    %c80 = arith.constant 80 : index
    %c0_23 = arith.constant 0 : index
    %24 = vector.load %arg9[%c80, %c0_23] : memref<400x800xbf16, #tpu.memory_space<vmem>>, vector<16x800xbf16>
    tpu.vector_store %arg9[%c80, %c0_23], %23 {strides = array<i32>} : memref<400x800xbf16, #tpu.memory_space<vmem>>, vector<16x800xbf16>,
    %c0_24 = arith.constant 0 : index
    %c21 = arith.constant 21 : index
    %25 = vector.load %arg8[%c0_24, %c21] : memref<16x896xbf16, #tpu.memory_space<vmem>>, vector<16x800xbf16>
    %c96 = arith.constant 96 : index
    %c0_25 = arith.constant 0 : index
    %26 = vector.load %arg9[%c96, %c0_25] : memref<400x800xbf16, #tpu.memory_space<vmem>>, vector<16x800xbf16>
    tpu.vector_store %arg9[%c96, %c0_25], %25 {strides = array<i32>} : memref<400x800xbf16, #tpu.memory_space<vmem>>, vector<16x800xbf16>,
    %c0_26 = arith.constant 0 : index
    %c22 = arith.constant 22 : index
    %27 = vector.load %arg8[%c0_26, %c22] : memref<16x896xbf16, #tpu.memory_space<vmem>>, vector<16x800xbf16>
    %c112 = arith.constant 112 : index
    %c0_27 = arith.constant 0 : index
    %28 = vector.load %arg9[%c112, %c0_27] : memref<400x800xbf16, #tpu.memory_space<vmem>>, vector<16x800xbf16>
    tpu.vector_store %arg9[%c112, %c0_27], %27 {strides = array<i32>} : memref<400x800xbf16, #tpu.memory_space<vmem>>, vector<16x800xbf16>,
    %c0_28 = arith.constant 0 : index
    %c23 = arith.constant 23 : index
    %29 = vector.load %arg8[%c0_28, %c23] : memref<16x896xbf16, #tpu.memory_space<vmem>>, vector<16x800xbf16>
    %c128 = arith.constant 128 : index
    %c0_29 = arith.constant 0 : index
    %30 = vector.load %arg9[%c128, %c0_29] : memref<400x800xbf16, #tpu.memory_space<vmem>>, vector<16x800xbf16>
    tpu.vector_store %arg9[%c128, %c0_29], %29 {strides = array<i32>} : memref<400x800xbf16, #tpu.memory_space<vmem>>, vector<16x800xbf16>,
    %c0_30 = arith.constant 0 : index
    %c24 = arith.constant 24 : index
    %31 = vector.load %arg8[%c0_30, %c24] : memref<16x896xbf16, #tpu.memory_space<vmem>>, vector<16x800xbf16>
    %c144 = arith.constant 144 : index
    %c0_31 = arith.constant 0 : index
    %32 = vector.load %arg9[%c144, %c0_31] : memref<400x800xbf16, #tpu.memory_space<vmem>>, vector<16x800xbf16>
    tpu.vector_store %arg9[%c144, %c0_31], %31 {strides = array<i32>} : memref<400x800xbf16, #tpu.memory_space<vmem>>, vector<16x800xbf16>,
    %c0_32 = arith.constant 0 : index
    %c40 = arith.constant 40 : index
    %33 = vector.load %arg8[%c0_32, %c40] : memref<16x896xbf16, #tpu.memory_space<vmem>>, vector<16x800xbf16>
    %c160 = arith.constant 160 : index
    %c0_33 = arith.constant 0 : index
    %34 = vector.load %arg9[%c160, %c0_33] : memref<400x800xbf16, #tpu.memory_space<vmem>>, vector<16x800xbf16>
    tpu.vector_store %arg9[%c160, %c0_33], %33 {strides = array<i32>} : memref<400x800xbf16, #tpu.memory_space<vmem>>, vector<16x800xbf16>,
    %c0_34 = arith.constant 0 : index
    %c41 = arith.constant 41 : index
    %35 = vector.load %arg8[%c0_34, %c41] : memref<16x896xbf16, #tpu.memory_space<vmem>>, vector<16x800xbf16>
    %c176 = arith.constant 176 : index
    %c0_35 = arith.constant 0 : index
    %36 = vector.load %arg9[%c176, %c0_35] : memref<400x800xbf16, #tpu.memory_space<vmem>>, vector<16x800xbf16>
    tpu.vector_store %arg9[%c176, %c0_35], %35 {strides = array<i32>} : memref<400x800xbf16, #tpu.memory_space<vmem>>, vector<16x800xbf16>,
    %c0_36 = arith.constant 0 : index
    %c42 = arith.constant 42 : index
    %37 = vector.load %arg8[%c0_36, %c42] : memref<16x896xbf16, #tpu.memory_space<vmem>>, vector<16x800xbf16>
    %c192 = arith.constant 192 : index
    %c0_37 = arith.constant 0 : index
    %38 = vector.load %arg9[%c192, %c0_37] : memref<400x800xbf16, #tpu.memory_space<vmem>>, vector<16x800xbf16>
    tpu.vector_store %arg9[%c192, %c0_37], %37 {strides = array<i32>} : memref<400x800xbf16, #tpu.memory_space<vmem>>, vector<16x800xbf16>,
    %c0_38 = arith.constant 0 : index
    %c43 = arith.constant 43 : index
    %39 = vector.load %arg8[%c0_38, %c43] : memref<16x896xbf16, #tpu.memory_space<vmem>>, vector<16x800xbf16>
    %c208 = arith.constant 208 : index
    %c0_39 = arith.constant 0 : index
    %40 = vector.load %arg9[%c208, %c0_39] : memref<400x800xbf16, #tpu.memory_space<vmem>>, vector<16x800xbf16>
    tpu.vector_store %arg9[%c208, %c0_39], %39 {strides = array<i32>} : memref<400x800xbf16, #tpu.memory_space<vmem>>, vector<16x800xbf16>,
    %c0_40 = arith.constant 0 : index
    %c44 = arith.constant 44 : index
    %41 = vector.load %arg8[%c0_40, %c44] : memref<16x896xbf16, #tpu.memory_space<vmem>>, vector<16x800xbf16>
    %c224 = arith.constant 224 : index
    %c0_41 = arith.constant 0 : index
    %42 = vector.load %arg9[%c224, %c0_41] : memref<400x800xbf16, #tpu.memory_space<vmem>>, vector<16x800xbf16>
    tpu.vector_store %arg9[%c224, %c0_41], %41 {strides = array<i32>} : memref<400x800xbf16, #tpu.memory_space<vmem>>, vector<16x800xbf16>,
    %c0_42 = arith.constant 0 : index
    %c60 = arith.constant 60 : index
    %43 = vector.load %arg8[%c0_42, %c60] : memref<16x896xbf16, #tpu.memory_space<vmem>>, vector<16x800xbf16>
    %c240 = arith.constant 240 : index
    %c0_43 = arith.constant 0 : index
    %44 = vector.load %arg9[%c240, %c0_43] : memref<400x800xbf16, #tpu.memory_space<vmem>>, vector<16x800xbf16>
    tpu.vector_store %arg9[%c240, %c0_43], %43 {strides = array<i32>} : memref<400x800xbf16, #tpu.memory_space<vmem>>, vector<16x800xbf16>,
    %c0_44 = arith.constant 0 : index
    %c61 = arith.constant 61 : index
    %45 = vector.load %arg8[%c0_44, %c61] : memref<16x896xbf16, #tpu.memory_space<vmem>>, vector<16x800xbf16>
    %c256 = arith.constant 256 : index
    %c0_45 = arith.constant 0 : index
    %46 = vector.load %arg9[%c256, %c0_45] : memref<400x800xbf16, #tpu.memory_space<vmem>>, vector<16x800xbf16>
    tpu.vector_store %arg9[%c256, %c0_45], %45 {strides = array<i32>} : memref<400x800xbf16, #tpu.memory_space<vmem>>, vector<16x800xbf16>,
    %c0_46 = arith.constant 0 : index
    %c62 = arith.constant 62 : index
    %47 = vector.load %arg8[%c0_46, %c62] : memref<16x896xbf16, #tpu.memory_space<vmem>>, vector<16x800xbf16>
    %c272 = arith.constant 272 : index
    %c0_47 = arith.constant 0 : index
    %48 = vector.load %arg9[%c272, %c0_47] : memref<400x800xbf16, #tpu.memory_space<vmem>>, vector<16x800xbf16>
    tpu.vector_store %arg9[%c272, %c0_47], %47 {strides = array<i32>} : memref<400x800xbf16, #tpu.memory_space<vmem>>, vector<16x800xbf16>,
    %c0_48 = arith.constant 0 : index
    %c63 = arith.constant 63 : index
    %49 = vector.load %arg8[%c0_48, %c63] : memref<16x896xbf16, #tpu.memory_space<vmem>>, vector<16x800xbf16>
    %c288 = arith.constant 288 : index
    %c0_49 = arith.constant 0 : index
    %50 = vector.load %arg9[%c288, %c0_49] : memref<400x800xbf16, #tpu.memory_space<vmem>>, vector<16x800xbf16>
    tpu.vector_store %arg9[%c288, %c0_49], %49 {strides = array<i32>} : memref<400x800xbf16, #tpu.memory_space<vmem>>, vector<16x800xbf16>,
    %c0_50 = arith.constant 0 : index
    %c64_51 = arith.constant 64 : index
    %51 = vector.load %arg8[%c0_50, %c64_51] : memref<16x896xbf16, #tpu.memory_space<vmem>>, vector<16x800xbf16>
    %c304 = arith.constant 304 : index
    %c0_52 = arith.constant 0 : index
    %52 = vector.load %arg9[%c304, %c0_52] : memref<400x800xbf16, #tpu.memory_space<vmem>>, vector<16x800xbf16>
    tpu.vector_store %arg9[%c304, %c0_52], %51 {strides = array<i32>} : memref<400x800xbf16, #tpu.memory_space<vmem>>, vector<16x800xbf16>,
    %c0_53 = arith.constant 0 : index
    %c80_54 = arith.constant 80 : index
    %53 = vector.load %arg8[%c0_53, %c80_54] : memref<16x896xbf16, #tpu.memory_space<vmem>>, vector<16x800xbf16>
    %c320 = arith.constant 320 : index
    %c0_55 = arith.constant 0 : index
    %54 = vector.load %arg9[%c320, %c0_55] : memref<400x800xbf16, #tpu.memory_space<vmem>>, vector<16x800xbf16>
    tpu.vector_store %arg9[%c320, %c0_55], %53 {strides = array<i32>} : memref<400x800xbf16, #tpu.memory_space<vmem>>, vector<16x800xbf16>,
    %c0_56 = arith.constant 0 : index
    %c81 = arith.constant 81 : index
    %55 = vector.load %arg8[%c0_56, %c81] : memref<16x896xbf16, #tpu.memory_space<vmem>>, vector<16x800xbf16>
    %c336 = arith.constant 336 : index
    %c0_57 = arith.constant 0 : index
    %56 = vector.load %arg9[%c336, %c0_57] : memref<400x800xbf16, #tpu.memory_space<vmem>>, vector<16x800xbf16>
    tpu.vector_store %arg9[%c336, %c0_57], %55 {strides = array<i32>} : memref<400x800xbf16, #tpu.memory_space<vmem>>, vector<16x800xbf16>,
    %c0_58 = arith.constant 0 : index
    %c82 = arith.constant 82 : index
    %57 = vector.load %arg8[%c0_58, %c82] : memref<16x896xbf16, #tpu.memory_space<vmem>>, vector<16x800xbf16>
    %c352 = arith.constant 352 : index
    %c0_59 = arith.constant 0 : index
    %58 = vector.load %arg9[%c352, %c0_59] : memref<400x800xbf16, #tpu.memory_space<vmem>>, vector<16x800xbf16>
    tpu.vector_store %arg9[%c352, %c0_59], %57 {strides = array<i32>} : memref<400x800xbf16, #tpu.memory_space<vmem>>, vector<16x800xbf16>,
    %c0_60 = arith.constant 0 : index
    %c83 = arith.constant 83 : index
    %59 = vector.load %arg8[%c0_60, %c83] : memref<16x896xbf16, #tpu.memory_space<vmem>>, vector<16x800xbf16>
    %c368 = arith.constant 368 : index
    %c0_61 = arith.constant 0 : index
    %60 = vector.load %arg9[%c368, %c0_61] : memref<400x800xbf16, #tpu.memory_space<vmem>>, vector<16x800xbf16>
    tpu.vector_store %arg9[%c368, %c0_61], %59 {strides = array<i32>} : memref<400x800xbf16, #tpu.memory_space<vmem>>, vector<16x800xbf16>,
    %c0_62 = arith.constant 0 : index
    %c84 = arith.constant 84 : index
    %61 = vector.load %arg8[%c0_62, %c84] : memref<16x896xbf16, #tpu.memory_space<vmem>>, vector<16x800xbf16>
    %c384 = arith.constant 384 : index
    %c0_63 = arith.constant 0 : index
    %62 = vector.load %arg9[%c384, %c0_63] : memref<400x800xbf16, #tpu.memory_space<vmem>>, vector<16x800xbf16>
    tpu.vector_store %arg9[%c384, %c0_63], %61 {strides = array<i32>} : memref<400x800xbf16, #tpu.memory_space<vmem>>, vector<16x800xbf16>,
    %c0_64 = arith.constant 0 : index
    %c0_65 = arith.constant 0 : index
    %63 = vector.load %arg5[%c0_64, %c0_65] : memref<8x400xbf16, #tpu.memory_space<vmem>>, vector<8x400xbf16>
    %c0_66 = arith.constant 0 : index
    %c0_67 = arith.constant 0 : index
    %64 = vector.load %arg9[%c0_66, %c0_67] : memref<400x800xbf16, #tpu.memory_space<vmem>>, vector<400x800xbf16>
    %cst_68 = arith.constant dense<0.000000e+00> : vector<8x800xf32>
    %65 = tpu.matmul %63, %64, %cst_68 {dimension_numbers = #tpu.dot_dimension_numbers<[1], [0], [0], [1], [0, 0, 1, 1], [], []>} : vector<8x400xbf16>, vector<400x800xbf16>, vector<8x800xf32> -> vector<8x800xf32>
    %c0_69 = arith.constant 0 : index
    %c0_70 = arith.constant 0 : index
    %66 = vector.load %arg6[%c0_69, %c0_70] : memref<8x1xf32, #tpu.memory_space<vmem>>, vector<8x1xf32>
    %67 = vector.broadcast %66 : vector<8x1xf32> to vector<8x800xf32>
    %68 = arith.addf %65, %67 : vector<8x800xf32>
    %c0_71 = arith.constant 0 : index
    %c0_72 = arith.constant 0 : index
    %69 = vector.load %arg7[%c0_71, %c0_72] : memref<8x800xf32, #tpu.memory_space<vmem>>, vector<8x800xf32>
    tpu.vector_store %arg7[%c0_71, %c0_72], %68 {strides = array<i32>} : memref<8x800xf32, #tpu.memory_space<vmem>>, vector<8x800xf32>,
    return
  }
  func.func @transform_0(%arg0: i32) -> (i32, i32) {
    %c0_i32 = arith.constant 0 : i32
    %c0_i32_0 = arith.constant 0 : i32
    %c0_i32_1 = arith.constant 0 : i32
    return %c0_i32, %c0_i32_0 : i32, i32
  }
  func.func @transform_1(%arg0: i32) -> (i32, i32) {
    %c0_i32 = arith.constant 0 : i32
    %c0_i32_0 = arith.constant 0 : i32
    %c0_i32_1 = arith.constant 0 : i32
    return %c0_i32, %c0_i32_0 : i32, i32
  }
  func.func @transform_2(%arg0: i32) -> (i32, i32) {
    %c0_i32 = arith.constant 0 : i32
    %c0_i32_0 = arith.constant 0 : i32
    %c0_i32_1 = arith.constant 0 : i32
    return %c0_i32, %c0_i32_0 : i32, i32
  }
  func.func @transform_3(%arg0: i32) -> (i32, i32) {
    %c0_i32 = arith.constant 0 : i32
    %c0_i32_0 = arith.constant 0 : i32
    %c0_i32_1 = arith.constant 0 : i32
    return %c0_i32, %c0_i32_0 : i32, i32
  }
  func.func @transform_4(%arg0: i32) -> (i32, i32) {
    %c0_i32 = arith.constant 0 : i32
    %c0_i32_0 = arith.constant 0 : i32
    %c0_i32_1 = arith.constant 0 : i32
    return %c0_i32, %c0_i32_0 : i32, i32
  }
  func.func @transform_5(%arg0: i32) -> (i32, i32) {
    %c0_i32 = arith.constant 0 : i32
    %c0_i32_0 = arith.constant 0 : i32
    %c0_i32_1 = arith.constant 0 : i32
    return %c0_i32, %c0_i32_0 : i32, i32
  }
  func.func @transform_6(%arg0: i32) -> (i32, i32) {
    %c0_i32 = arith.constant 0 : i32
    %c0_i32_0 = arith.constant 0 : i32
    %c0_i32_1 = arith.constant 0 : i32
    return %c0_i32, %c0_i32_0 : i32, i32
  }
}

</mosaic_0001>

<llo_original>
// kernel: tpu_custom_call.1
$region0: #{tpu_custom_call.1}
  #allocation0 [shape = 'u32[]', space=smem, size = 0x4, offset = 0x4, fixed_abs, tag = 'smem constant byte address 0x4 - core index']
  #allocation1 [shape = 'u32[144,128]{1,0:T(1,128)}', space=vmem, size = 0x12000, scoped, tag = 'internal scratch']
  #allocation2 [shape = 'bf16[16,896]{1,0:T(8,128)(2,1)}', space=vmem, size = 0x7000, scoped, tag = 'scratch operand']
  #allocation3 [shape = 'bf16[400,800]{1,0:T(8,128)(2,1)}', space=vmem, size = 0xaf000, scoped, tag = 'scratch operand']
  %s0 = inlined_call_operand.hbm [shape: bf16[100,896], index: 0, kind: input, shape index: {}]
  %s1 = inlined_call_operand.vmem [shape: bf16[16,100], index: 1, kind: input, shape index: {}]
  %s2 = inlined_call_operand.vmem [shape: f32[16,1], index: 2, kind: input, shape index: {}]
  %s3 = inlined_call_operand.vmem [shape: f32[1,896], index: 3, kind: input, shape index: {}]
  %s4 = inlined_call_operand.vmem [shape: bf16[8,400], index: 4, kind: input, shape index: {}]
  %s5 = inlined_call_operand.vmem [shape: f32[8,1], index: 5, kind: input, shape index: {}]
  %s6 = inlined_call_operand.hbm [shape: f32[8,800], index: 6, kind: output, shape index: {}]
  %s7 = sld [smem:[#allocation0]]
  $region38: #{tpu_custom_call.1} parent=0
    _
  %s9 = ssub.s32 1, %s7
  %s10 = scalar_select 0, %s9, %s7
  $region1: #{tpu_custom_call.1} parent=0
    #allocation4 [shape = 'u8[186368]{0}', space=vmem, size = 0x2d800, scoped, tag = 'input window, operand 0, single buffered']
    #allocation5 [shape = 's32[1]{0}', space=sflag, size = 0x4, scoped, tag = 'scoped memory for tpu_custom_call.1']
    #allocation6 [shape = 's32[1]{0}', space=sflag, size = 0x4, scoped, tag = 'scoped memory for tpu_custom_call.1']
    #allocation7 [shape = 'u8[28672]{0}', space=vmem, size = 0x7000, scoped, tag = 'output window, operand 0, single buffered']
    %11 = vsyncpa [#allocation5], 0
    %12 = vsyncpa [#allocation6], 0
    // Predicated region
    $region2: #{tpu_custom_call.1} parent=1 // pred_check
      _
    $region3: #{tpu_custom_call.1} parent=1 // pred_check_branch
      %14 = sbr.rel (0) target = $region5
    $region4: #{tpu_custom_call.1} parent=1 // pred_region
      %s16 = ssub.s32 5824, 5824
      %17 = vsyncadd [#allocation5], %s16
      %s18 = sshll.u32 [#allocation4], 4
      %s19 = int_to_ptr.vmem [resolvable:$true] %s18
      %24 = dma.hbm_to_vmem [thread:$0]  %s0, 5824, %s19, [#allocation5], 448, 448, 28
    $region5: #{tpu_custom_call.1} parent=1 // pred_fallthru
      _
    // Predicated region
    $region6: #{tpu_custom_call.1} parent=1 // pred_check
      _
    $region7: #{tpu_custom_call.1} parent=1 // pred_check_branch
      %26 = sbr.rel (0) target = $region9
    $region8: #{tpu_custom_call.1} parent=1 // pred_region
      _
    $region9: #{tpu_custom_call.1} parent=1 // pred_fallthru
      _
    // Predicated region
    $region10: #{tpu_custom_call.1} parent=1 // pred_check
      _
    $region11: #{tpu_custom_call.1} parent=1 // pred_check_branch
      %28 = sbr.rel (0) target = $region13
    $region12: #{tpu_custom_call.1} parent=1 // pred_region
      _
    $region13: #{tpu_custom_call.1} parent=1 // pred_fallthru
      _
    // Predicated region
    $region14: #{tpu_custom_call.1} parent=1 // pred_check
      _
    $region15: #{tpu_custom_call.1} parent=1 // pred_check_branch
      %30 = sbr.rel (0) target = $region17
    $region16: #{tpu_custom_call.1} parent=1 // pred_region
      _
    $region17: #{tpu_custom_call.1} parent=1 // pred_fallthru
      _
    // Predicated region
    $region18: #{tpu_custom_call.1} parent=1 // pred_check
      _
    $region19: #{tpu_custom_call.1} parent=1 // pred_check_branch
      %32 = sbr.rel (0) target = $region21
    $region20: #{tpu_custom_call.1} parent=1 // pred_region
      _
    $region21: #{tpu_custom_call.1} parent=1 // pred_fallthru
      _
    // Predicated region
    $region22: #{tpu_custom_call.1} parent=1 // pred_check
      _
    $region23: #{tpu_custom_call.1} parent=1 // pred_check_branch
      %34 = sbr.rel (0) target = $region25
    $region24: #{tpu_custom_call.1} parent=1 // pred_region
      _
    $region25: #{tpu_custom_call.1} parent=1 // pred_fallthru
      _
    // Predicated region
    $region26: #{tpu_custom_call.1} parent=1 // pred_check
      _
    $region27: #{tpu_custom_call.1} parent=1 // pred_check_branch
      %36 = sbr.rel (0) target = $region29
    $region28: #{tpu_custom_call.1} parent=1 // pred_region
      %37 = dma.done [#allocation5], 5824
    $region29: #{tpu_custom_call.1} parent=1 // pred_fallthru
      _
    %v39 = vld [vmem:[%s1] sm:$0xf]
    %v40 = vld [vmem:[%s1 + $0x4] sm:$0xf]
    %v41 = vld [vmem:[#allocation4] sm:$0xff]
    %v42 = vld [vmem:[#allocation4 + $0x8] sm:$0xff]
    %v43 = vld [vmem:[#allocation4 + $0x10] sm:$0xff]
    %v44 = vld [vmem:[#allocation4 + $0x18] sm:$0xf]
    %v45 = vld [vmem:[#allocation4 + $0x1c] sm:$0xff]
    %v46 = vld [vmem:[#allocation4 + $0x24] sm:$0xff]
    %v47 = vld [vmem:[#allocation4 + $0x2c] sm:$0xff]
    %v48 = vld [vmem:[#allocation4 + $0x34] sm:$0xf]
    %v49 = vld [vmem:[#allocation4 + $0x38] sm:$0xff]
    %v50 = vld [vmem:[#allocation4 + $0x40] sm:$0xff]
    %v51 = vld [vmem:[#allocation4 + $0x48] sm:$0xff]
    %v52 = vld [vmem:[#allocation4 + $0x50] sm:$0xf]
    %v53 = vld [vmem:[#allocation4 + $0x54] sm:$0xff]
    %v54 = vld [vmem:[#allocation4 + $0x5c] sm:$0xff]
    %v55 = vld [vmem:[#allocation4 + $0x64] sm:$0xff]
    %v56 = vld [vmem:[#allocation4 + $0x6c] sm:$0xf]
    %v57 = vld [vmem:[#allocation4 + $0x70] sm:$0xff]
    %v58 = vld [vmem:[#allocation4 + $0x78] sm:$0xff]
    %v59 = vld [vmem:[#allocation4 + $0x80] sm:$0xff]
    %v60 = vld [vmem:[#allocation4 + $0x88] sm:$0xf]
    %v61 = vld [vmem:[#allocation4 + $0x8c] sm:$0xff]
    %v62 = vld [vmem:[#allocation4 + $0x94] sm:$0xff]
    %v63 = vld [vmem:[#allocation4 + $0x9c] sm:$0xff]
    %v64 = vld [vmem:[#allocation4 + $0xa4] sm:$0xf]
    %v65 = vld [vmem:[#allocation4 + $0xa8] sm:$0xff]
    %v66 = vld [vmem:[#allocation4 + $0xb0] sm:$0xff]
    %v67 = vld [vmem:[#allocation4 + $0xb8] sm:$0xff]
    %v68 = vld [vmem:[#allocation4 + $0xc0] sm:$0xf]
    %v69 = vld [vmem:[#allocation4 + $0xc4] sm:$0xff]
    %v70 = vld [vmem:[#allocation4 + $0xcc] sm:$0xff]
    %v71 = vld [vmem:[#allocation4 + $0xd4] sm:$0xff]
    %v72 = vld [vmem:[#allocation4 + $0xdc] sm:$0xf]
    %v73 = vld [vmem:[#allocation4 + $0xe0] sm:$0xff]
    %v74 = vld [vmem:[#allocation4 + $0xe8] sm:$0xff]
    %v75 = vld [vmem:[#allocation4 + $0xf0] sm:$0xff]
    %v76 = vld [vmem:[#allocation4 + $0xf8] sm:$0xf]
    %v77 = vld [vmem:[#allocation4 + $0xfc] sm:$0xff]
    %v78 = vld [vmem:[#allocation4 + $0x104] sm:$0xff]
    %v79 = vld [vmem:[#allocation4 + $0x10c] sm:$0xff]
    %v80 = vld [vmem:[#allocation4 + $0x114] sm:$0xf]
    %v81 = vld [vmem:[#allocation4 + $0x118] sm:$0xff]
    %v82 = vld [vmem:[#allocation4 + $0x120] sm:$0xff]
    %v83 = vld [vmem:[#allocation4 + $0x128] sm:$0xff]
    %v84 = vld [vmem:[#allocation4 + $0x130] sm:$0xf]
    %v85 = vld [vmem:[#allocation4 + $0x134] sm:$0xff]
    %v86 = vld [vmem:[#allocation4 + $0x13c] sm:$0xff]
    %v87 = vld [vmem:[#allocation4 + $0x144] sm:$0xff]
    %v88 = vld [vmem:[#allocation4 + $0x14c] sm:$0xf]
    %v89 = vld [vmem:[#allocation4 + $0x150] sm:$0x33]
    %v90 = vld [vmem:[#allocation4 + $0x158] sm:$0x33]
    %v91 = vld [vmem:[#allocation4 + $0x160] sm:$0x33]
    %v92 = vld [vmem:[#allocation4 + $0x168] sm:$0x3]
    %v93 = vld [vmem:[%s2] sm:$0xff]
    %v94 = vld [vmem:[%s2 + $0x8] sm:$0xff]
    %96 = vset.pattern.permute.xlu0 0
    %97 = vperm.xlu0 %96, %v93
    %v98 = vpop.permute.xlu0 %97
    %101 = vset.pattern.permute.xlu0 0
    %102 = vperm.xlu0 %101, %v94
    %v103 = vpop.permute.xlu0 %102
    %v107 = vunpack.c.l.b16 %v39
    %v108 = vunpack.c.l.b16 %v40
    %v109 = vpack.c.b16 %v108, %v107
    %v162 = vunpack.c.l.b16 %v41
    %v163 = vunpack.c.h.b16 %v41
    %v164 = vunpack.c.l.b16 %v42
    %v165 = vunpack.c.h.b16 %v42
    %v166 = vunpack.c.l.b16 %v43
    %v167 = vunpack.c.h.b16 %v43
    %v168 = vunpack.c.l.b16 %v44
    %v169 = vunpack.c.l.b16 %v45
    %v170 = vunpack.c.h.b16 %v45
    %v171 = vunpack.c.l.b16 %v46
    %v172 = vunpack.c.h.b16 %v46
    %v173 = vunpack.c.l.b16 %v47
    %v174 = vunpack.c.h.b16 %v47
    %v175 = vunpack.c.l.b16 %v48
    %v176 = vunpack.c.l.b16 %v49
    %v177 = vunpack.c.h.b16 %v49
    %v178 = vunpack.c.l.b16 %v50
    %v179 = vunpack.c.h.b16 %v50
    %v180 = vunpack.c.l.b16 %v51
    %v181 = vunpack.c.h.b16 %v51
    %v182 = vunpack.c.l.b16 %v52
    %v183 = vunpack.c.l.b16 %v53
    %v184 = vunpack.c.h.b16 %v53
    %v185 = vunpack.c.l.b16 %v54
    %v186 = vunpack.c.h.b16 %v54
    %v187 = vunpack.c.l.b16 %v55
    %v188 = vunpack.c.h.b16 %v55
    %v189 = vunpack.c.l.b16 %v56
    %v190 = vunpack.c.l.b16 %v57
    %v191 = vunpack.c.h.b16 %v57
    %v192 = vunpack.c.l.b16 %v58
    %v193 = vunpack.c.h.b16 %v58
    %v194 = vunpack.c.l.b16 %v59
    %v195 = vunpack.c.h.b16 %v59
    %v196 = vunpack.c.l.b16 %v60
    %v197 = vunpack.c.l.b16 %v61
    %v198 = vunpack.c.h.b16 %v61
    %v199 = vunpack.c.l.b16 %v62
    %v200 = vunpack.c.h.b16 %v62
    %v201 = vunpack.c.l.b16 %v63
    %v202 = vunpack.c.h.b16 %v63
    %v203 = vunpack.c.l.b16 %v64
    %v204 = vunpack.c.l.b16 %v65
    %v205 = vunpack.c.h.b16 %v65
    %v206 = vunpack.c.l.b16 %v66
    %v207 = vunpack.c.h.b16 %v66
    %v208 = vunpack.c.l.b16 %v67
    %v209 = vunpack.c.h.b16 %v67
    %v210 = vunpack.c.l.b16 %v68
    %v211 = vunpack.c.l.b16 %v69
    %v212 = vunpack.c.h.b16 %v69
    %v213 = vunpack.c.l.b16 %v70
    %v214 = vunpack.c.h.b16 %v70
    %v215 = vunpack.c.l.b16 %v71
    %v216 = vunpack.c.h.b16 %v71
    %v217 = vunpack.c.l.b16 %v72
    %v218 = vunpack.c.l.b16 %v73
    %v219 = vunpack.c.h.b16 %v73
    %v220 = vunpack.c.l.b16 %v74
    %v221 = vunpack.c.h.b16 %v74
    %v222 = vunpack.c.l.b16 %v75
    %v223 = vunpack.c.h.b16 %v75
    %v224 = vunpack.c.l.b16 %v76
    %v225 = vunpack.c.l.b16 %v77
    %v226 = vunpack.c.h.b16 %v77
    %v227 = vunpack.c.l.b16 %v78
    %v228 = vunpack.c.h.b16 %v78
    %v229 = vunpack.c.l.b16 %v79
    %v230 = vunpack.c.h.b16 %v79
    %v231 = vunpack.c.l.b16 %v80
    %v232 = vunpack.c.l.b16 %v81
    %v233 = vunpack.c.h.b16 %v81
    %v234 = vunpack.c.l.b16 %v82
    %v235 = vunpack.c.h.b16 %v82
    %v236 = vunpack.c.l.b16 %v83
    %v237 = vunpack.c.h.b16 %v83
    %v238 = vunpack.c.l.b16 %v84
    %v239 = vunpack.c.l.b16 %v85
    %v240 = vunpack.c.h.b16 %v85
    %v241 = vunpack.c.l.b16 %v86
    %v242 = vunpack.c.h.b16 %v86
    %v243 = vunpack.c.l.b16 %v87
    %v244 = vunpack.c.h.b16 %v87
    %v245 = vunpack.c.l.b16 %v88
    %v246 = vunpack.c.l.b16 %v89
    %v247 = vunpack.c.h.b16 %v89
    %v248 = vunpack.c.l.b16 %v90
    %v249 = vunpack.c.h.b16 %v90
    %v250 = vunpack.c.l.b16 %v91
    %v251 = vunpack.c.h.b16 %v91
    %v252 = vunpack.c.l.b16 %v92
    %v253 = vpack.c.b16 %v169, %v162
    %v254 = vpack.c.b16 %v170, %v163
    %v255 = vpack.c.b16 %v171, %v164
    %v256 = vpack.c.b16 %v172, %v165
    %v257 = vpack.c.b16 %v173, %v166
    %v258 = vpack.c.b16 %v174, %v167
    %v259 = vpack.c.b16 %v175, %v168
    %v260 = vpack.c.b16 %v183, %v176
    %v261 = vpack.c.b16 %v184, %v177
    %v262 = vpack.c.b16 %v185, %v178
    %v263 = vpack.c.b16 %v186, %v179
    %v264 = vpack.c.b16 %v187, %v180
    %v265 = vpack.c.b16 %v188, %v181
    %v266 = vpack.c.b16 %v189, %v182
    %v267 = vpack.c.b16 %v197, %v190
    %v268 = vpack.c.b16 %v198, %v191
    %v269 = vpack.c.b16 %v199, %v192
    %v270 = vpack.c.b16 %v200, %v193
    %v271 = vpack.c.b16 %v201, %v194
    %v272 = vpack.c.b16 %v202, %v195
    %v273 = vpack.c.b16 %v203, %v196
    %v274 = vpack.c.b16 %v211, %v204
    %v275 = vpack.c.b16 %v212, %v205
    %v276 = vpack.c.b16 %v213, %v206
    %v277 = vpack.c.b16 %v214, %v207
    %v278 = vpack.c.b16 %v215, %v208
    %v279 = vpack.c.b16 %v216, %v209
    %v280 = vpack.c.b16 %v217, %v210
    %v281 = vpack.c.b16 %v225, %v218
    %v282 = vpack.c.b16 %v226, %v219
    %v283 = vpack.c.b16 %v227, %v220
    %v284 = vpack.c.b16 %v228, %v221
    %v285 = vpack.c.b16 %v229, %v222
    %v286 = vpack.c.b16 %v230, %v223
    %v287 = vpack.c.b16 %v231, %v224
    %v288 = vpack.c.b16 %v239, %v232
    %v289 = vpack.c.b16 %v240, %v233
    %v290 = vpack.c.b16 %v241, %v234
    %v291 = vpack.c.b16 %v242, %v235
    %v292 = vpack.c.b16 %v243, %v236
    %v293 = vpack.c.b16 %v244, %v237
    %v294 = vpack.c.b16 %v245, %v238
    %v295 = vpack.c.b16 %v246, %v246
    %v296 = vpack.c.b16 %v247, %v247
    %v297 = vpack.c.b16 %v248, %v248
    %v298 = vpack.c.b16 %v249, %v249
    %v299 = vpack.c.b16 %v250, %v250
    %v300 = vpack.c.b16 %v251, %v251
    %v301 = vpack.c.b16 %v252, %v252
    %vm344 = vcmask 818176
    %v346 = vsel %vm344, %v109, 0
    %vm348 = vcmask 1041408
    %v350 = vsel %vm348, %v295, 0
    %v353 = vsel %vm348, %v296, 0
    %v356 = vsel %vm348, %v297, 0
    %v359 = vsel %vm348, %v298, 0
    %v362 = vsel %vm348, %v299, 0
    %v365 = vsel %vm348, %v300, 0
    %v368 = vsel %vm348, %v301, 0
    %370 = vmatprep.subr.bf16.mxu0 0
    %371 = vmatpush1.bf16.msra.mxu0 0
    %372 = vmatprep.subr.bf16.mxu0 %v353
    %373 = vmatpush1.bf16.msra.mxu0 %v350
    %374 = vmatprep.subr.bf16.mxu0 %v289
    %375 = vmatpush1.bf16.msra.mxu0 %v288
    %376 = vmatprep.subr.bf16.mxu0 %v282
    %377 = vmatpush1.bf16.msra.mxu0 %v281
    %378 = vmatprep.subr.bf16.mxu0 %v275
    %379 = vmatpush1.bf16.msra.mxu0 %v274
    %380 = vmatprep.subr.bf16.mxu0 %v268
    %381 = vmatpush1.bf16.msra.mxu0 %v267
    %382 = vmatprep.subr.bf16.mxu0 %v261
    %383 = vmatpush1.bf16.msra.mxu0 %v260
    %384 = vmatprep.subr.bf16.mxu0 %v254
    %385 = vmatpush1.bf16.msra.mxu0 %v253
    %386 = vmatprep.subr.bf16.mxu0 0
    %387 = vmatpush2.bf16.msra.mxu0 0
    %388 = vmatprep.subr.bf16.mxu0 0
    %389 = vmatpush2.bf16.msra.mxu0 0
    %390 = vmatprep.subr.bf16.mxu0 0
    %391 = vmatpush2.bf16.msra.mxu0 0
    %392 = vmatprep.subr.bf16.mxu0 0
    %393 = vmatpush2.bf16.msra.mxu0 0
    %394 = vmatprep.subr.bf16.mxu0 0
    %395 = vmatpush2.bf16.msra.mxu0 0
    %396 = vmatprep.subr.bf16.mxu0 0
    %397 = vmatpush2.bf16.msra.mxu0 0
    %398 = vmatprep.subr.bf16.mxu0 0
    %399 = vmatpush2.bf16.msra.mxu0 0
    %400 = vmatprep.subr.bf16.mxu0 0
    %401 = vmatpush2.bf16.msra.mxu0 0
    %402 = vmatprep.mubr.bf16.mxu0 0
    %403 = vmatmul.mubr.bf16.gmra.mxu0 %v346
    %v404 = vpop.f32.mrf.mxu0
    %v405 = vadd.f32 %v98, %v404
    %v406 = vpop.f32.mrf.mxu0
    %v407 = vadd.f32 %v98, %v406
    %v408 = vpop.f32.mrf.mxu0
    %v409 = vadd.f32 %v103, %v408
    %v410 = vpop.f32.mrf.mxu0
    %v411 = vadd.f32 %v103, %v410
    %412 = vdwg.mxu0
    %413 = vmatprep.subr.bf16.mxu0 0
    %414 = vmatpush1.bf16.msra.mxu0 0
    %415 = vmatprep.subr.bf16.mxu0 %v359
    %416 = vmatpush1.bf16.msra.mxu0 %v356
    %417 = vmatprep.subr.bf16.mxu0 %v291
    %418 = vmatpush1.bf16.msra.mxu0 %v290
    %419 = vmatprep.subr.bf16.mxu0 %v284
    %420 = vmatpush1.bf16.msra.mxu0 %v283
    %421 = vmatprep.subr.bf16.mxu0 %v277
    %422 = vmatpush1.bf16.msra.mxu0 %v276
    %423 = vmatprep.subr.bf16.mxu0 %v270
    %424 = vmatpush1.bf16.msra.mxu0 %v269
    %425 = vmatprep.subr.bf16.mxu0 %v263
    %426 = vmatpush1.bf16.msra.mxu0 %v262
    %427 = vmatprep.subr.bf16.mxu0 %v256
    %428 = vmatpush1.bf16.msra.mxu0 %v255
    %429 = vmatprep.subr.bf16.mxu0 0
    %430 = vmatpush2.bf16.msra.mxu0 0
    %431 = vmatprep.subr.bf16.mxu0 0
    %432 = vmatpush2.bf16.msra.mxu0 0
    %433 = vmatprep.subr.bf16.mxu0 0
    %434 = vmatpush2.bf16.msra.mxu0 0
    %435 = vmatprep.subr.bf16.mxu0 0
    %436 = vmatpush2.bf16.msra.mxu0 0
    %437 = vmatprep.subr.bf16.mxu0 0
    %438 = vmatpush2.bf16.msra.mxu0 0
    %439 = vmatprep.subr.bf16.mxu0 0
    %440 = vmatpush2.bf16.msra.mxu0 0
    %441 = vmatprep.subr.bf16.mxu0 0
    %442 = vmatpush2.bf16.msra.mxu0 0
    %443 = vmatprep.subr.bf16.mxu0 0
    %444 = vmatpush2.bf16.msra.mxu0 0
    %445 = vmatprep.mubr.bf16.mxu0 0
    %446 = vmatmul.mubr.bf16.gmra.mxu0 %v346
    %v447 = vpop.f32.mrf.mxu0
    %v448 = vadd.f32 %v98, %v447
    %v449 = vpop.f32.mrf.mxu0
    %v450 = vadd.f32 %v98, %v449
    %v451 = vpop.f32.mrf.mxu0
    %v452 = vadd.f32 %v103, %v451
    %v453 = vpop.f32.mrf.mxu0
    %v454 = vadd.f32 %v103, %v453
    %455 = vdwg.mxu0
    %456 = vmatprep.subr.bf16.mxu0 0
    %457 = vmatpush1.bf16.msra.mxu0 0
    %458 = vmatprep.subr.bf16.mxu0 %v365
    %459 = vmatpush1.bf16.msra.mxu0 %v362
    %460 = vmatprep.subr.bf16.mxu0 %v293
    %461 = vmatpush1.bf16.msra.mxu0 %v292
    %462 = vmatprep.subr.bf16.mxu0 %v286
    %463 = vmatpush1.bf16.msra.mxu0 %v285
    %464 = vmatprep.subr.bf16.mxu0 %v279
    %465 = vmatpush1.bf16.msra.mxu0 %v278
    %466 = vmatprep.subr.bf16.mxu0 %v272
    %467 = vmatpush1.bf16.msra.mxu0 %v271
    %468 = vmatprep.subr.bf16.mxu0 %v265
    %469 = vmatpush1.bf16.msra.mxu0 %v264
    %470 = vmatprep.subr.bf16.mxu0 %v258
    %471 = vmatpush1.bf16.msra.mxu0 %v257
    %472 = vmatprep.subr.bf16.mxu0 0
    %473 = vmatpush2.bf16.msra.mxu0 0
    %474 = vmatprep.subr.bf16.mxu0 0
    %475 = vmatpush2.bf16.msra.mxu0 0
    %476 = vmatprep.subr.bf16.mxu0 0
    %477 = vmatpush2.bf16.msra.mxu0 0
    %478 = vmatprep.subr.bf16.mxu0 0
    %479 = vmatpush2.bf16.msra.mxu0 0
    %480 = vmatprep.subr.bf16.mxu0 0
    %481 = vmatpush2.bf16.msra.mxu0 0
    %482 = vmatprep.subr.bf16.mxu0 0
    %483 = vmatpush2.bf16.msra.mxu0 0
    %484 = vmatprep.subr.bf16.mxu0 0
    %485 = vmatpush2.bf16.msra.mxu0 0
    %486 = vmatprep.subr.bf16.mxu0 0
    %487 = vmatpush2.bf16.msra.mxu0 0
    %488 = vmatprep.mubr.bf16.mxu0 0
    %489 = vmatmul.mubr.bf16.gmra.mxu0 %v346
    %v490 = vpop.f32.mrf.mxu0
    %v491 = vadd.f32 %v98, %v490
    %v492 = vpop.f32.mrf.mxu0
    %v493 = vadd.f32 %v98, %v492
    %v494 = vpop.f32.mrf.mxu0
    %v495 = vadd.f32 %v103, %v494
    %v496 = vpop.f32.mrf.mxu0
    %v497 = vadd.f32 %v103, %v496
    %498 = vdwg.mxu0
    %499 = vmatprep.subr.bf16.mxu0 0
    %500 = vmatpush1.bf16.msra.mxu0 0
    %501 = vmatprep.subr.bf16.mxu0 0
    %502 = vmatpush1.bf16.msra.mxu0 %v368
    %503 = vmatprep.subr.bf16.mxu0 0
    %504 = vmatpush1.bf16.msra.mxu0 %v294
    %505 = vmatprep.subr.bf16.mxu0 0
    %506 = vmatpush1.bf16.msra.mxu0 %v287
    %507 = vmatprep.subr.bf16.mxu0 0
    %508 = vmatpush1.bf16.msra.mxu0 %v280
    %509 = vmatprep.subr.bf16.mxu0 0
    %510 = vmatpush1.bf16.msra.mxu0 %v273
    %511 = vmatprep.subr.bf16.mxu0 0
    %512 = vmatpush1.bf16.msra.mxu0 %v266
    %513 = vmatprep.subr.bf16.mxu0 0
    %514 = vmatpush1.bf16.msra.mxu0 %v259
    %515 = vmatprep.subr.bf16.mxu0 0
    %516 = vmatpush2.bf16.msra.mxu0 0
    %517 = vmatprep.subr.bf16.mxu0 0
    %518 = vmatpush2.bf16.msra.mxu0 0
    %519 = vmatprep.subr.bf16.mxu0 0
    %520 = vmatpush2.bf16.msra.mxu0 0
    %521 = vmatprep.subr.bf16.mxu0 0
    %522 = vmatpush2.bf16.msra.mxu0 0
    %523 = vmatprep.subr.bf16.mxu0 0
    %524 = vmatpush2.bf16.msra.mxu0 0
    %525 = vmatprep.subr.bf16.mxu0 0
    %526 = vmatpush2.bf16.msra.mxu0 0
    %527 = vmatprep.subr.bf16.mxu0 0
    %528 = vmatpush2.bf16.msra.mxu0 0
    %529 = vmatprep.subr.bf16.mxu0 0
    %530 = vmatpush2.bf16.msra.mxu0 0
    %531 = vmatprep.mubr.bf16.mxu0 0
    %532 = vmatmul.mubr.bf16.gmra.mxu0 %v346
    %v533 = vpop.f32.mrf.mxu0
    %v534 = vadd.f32 %v98, %v533
    %v535 = vpop.f32.mrf.mxu0
    %v536 = vpop.f32.mrf.mxu0
    %v537 = vadd.f32 %v103, %v536
    %v538 = vpop.f32.mrf.mxu0
    %539 = vdwg.mxu0
    %v540 = vmax.f32 %v405, 0.0
    %v541 = vmax.f32 %v407, 0.0
    %v542 = vmax.f32 %v448, 0.0
    %v543 = vmax.f32 %v450, 0.0
    %v544 = vmax.f32 %v491, 0.0
    %v545 = vmax.f32 %v493, 0.0
    %v546 = vmax.f32 %v534, 0.0
    %v547 = vmax.f32 %v409, 0.0
    %v548 = vmax.f32 %v411, 0.0
    %v549 = vmax.f32 %v452, 0.0
    %v550 = vmax.f32 %v454, 0.0
    %v551 = vmax.f32 %v495, 0.0
    %v552 = vmax.f32 %v497, 0.0
    %v553 = vmax.f32 %v537, 0.0
    %v554 = vld [vmem:[%s3] sm:$0xff]
    %v556 = vlaneseq
    %v557 = vshrl.u32 %v556, 7
    %v558 = vsub.s32 0, %v557
    %v559 = vrot.slane %v554, %v558
    %v560 = vlaneseq
    %v561 = vshrl.u32 %v560, 7
    %v562 = vsub.s32 1, %v561
    %v563 = vrot.slane %v554, %v562
    %v564 = vlaneseq
    %v565 = vshrl.u32 %v564, 7
    %v566 = vsub.s32 2, %v565
    %v567 = vrot.slane %v554, %v566
    %v568 = vlaneseq
    %v569 = vshrl.u32 %v568, 7
    %v570 = vsub.s32 3, %v569
    %v571 = vrot.slane %v554, %v570
    %v572 = vlaneseq
    %v573 = vshrl.u32 %v572, 7
    %v574 = vsub.s32 4, %v573
    %v575 = vrot.slane %v554, %v574
    %v576 = vlaneseq
    %v577 = vshrl.u32 %v576, 7
    %v578 = vsub.s32 5, %v577
    %v579 = vrot.slane %v554, %v578
    %v580 = vlaneseq
    %v581 = vshrl.u32 %v580, 7
    %v582 = vsub.s32 6, %v581
    %v583 = vrot.slane %v554, %v582
    %v591 = vmul.f32 %v540, %v559
    %v592 = vmul.f32 %v541, %v563
    %v593 = vmul.f32 %v542, %v567
    %v594 = vmul.f32 %v543, %v571
    %v595 = vmul.f32 %v544, %v575
    %v596 = vmul.f32 %v545, %v579
    %v597 = vmul.f32 %v546, %v583
    %v598 = vmul.f32 %v547, %v559
    %v599 = vmul.f32 %v548, %v563
    %v600 = vmul.f32 %v549, %v567
    %v601 = vmul.f32 %v550, %v571
    %v602 = vmul.f32 %v551, %v575
    %v603 = vmul.f32 %v552, %v579
    %v604 = vmul.f32 %v553, %v583
    %v605 = vpack.c.bf16 %v598, %v591
    %v606 = vpack.c.bf16 %v599, %v592
    %v607 = vpack.c.bf16 %v600, %v593
    %v608 = vpack.c.bf16 %v601, %v594
    %v609 = vpack.c.bf16 %v602, %v595
    %v610 = vpack.c.bf16 %v603, %v596
    %v611 = vpack.c.bf16 %v604, %v597
    %v619 = vunpack.c.l.b16 %v605
    %v620 = vunpack.c.l.b16 %v606
    %v621 = vunpack.c.l.b16 %v607
    %v622 = vunpack.c.l.b16 %v608
    %v623 = vunpack.c.l.b16 %v609
    %v624 = vunpack.c.l.b16 %v610
    %v625 = vunpack.c.l.b16 %v611
    %v626 = vunpack.c.h.b16 %v605
    %v627 = vunpack.c.h.b16 %v606
    %v628 = vunpack.c.h.b16 %v607
    %v629 = vunpack.c.h.b16 %v608
    %v630 = vunpack.c.h.b16 %v609
    %v631 = vunpack.c.h.b16 %v610
    %v632 = vunpack.c.h.b16 %v611
    %v633 = vpack.c.b16 %v620, %v619
    %v634 = vpack.c.b16 %v622, %v621
    %v635 = vpack.c.b16 %v624, %v623
    %v636 = vpack.c.b16 %v625, %v625
    %v637 = vpack.c.b16 %v627, %v626
    %v638 = vpack.c.b16 %v629, %v628
    %v639 = vpack.c.b16 %v631, %v630
    %v640 = vpack.c.b16 %v632, %v632
    %649 = vst [vmem:[#allocation2] sm:$0xff] %v633
    %650 = vst [vmem:[#allocation2 + $0x8] sm:$0xff] %v634
    %651 = vst [vmem:[#allocation2 + $0x10] sm:$0xff] %v635
    %652 = vst [vmem:[#allocation2 + $0x18] sm:$0xf] %v636
    %653 = vst [vmem:[#allocation2 + $0x1c] sm:$0xff] %v637
    %654 = vst [vmem:[#allocation2 + $0x24] sm:$0xff] %v638
    %655 = vst [vmem:[#allocation2 + $0x2c] sm:$0xff] %v639
    %656 = vst [vmem:[#allocation2 + $0x34] sm:$0xf] %v640
    %v657 = vld [vmem:[#allocation2] sm:$0xff]
    %v658 = vld [vmem:[#allocation2 + $0x8] sm:$0xff]
    %v659 = vld [vmem:[#allocation2 + $0x10] sm:$0xff]
    %v660 = vld [vmem:[#allocation2 + $0x18] sm:$0xf]
    %v661 = vld [vmem:[#allocation2 + $0x1c] sm:$0xff]
    %v662 = vld [vmem:[#allocation2 + $0x24] sm:$0xff]
    %v663 = vld [vmem:[#allocation2 + $0x2c] sm:$0xff]
    %v664 = vld [vmem:[#allocation2 + $0x34] sm:$0xf]
    %665 = vst [vmem:[#allocation3] sm:$0xff] %v657
    %666 = vst [vmem:[#allocation3 + $0x8] sm:$0xff] %v658
    %667 = vst [vmem:[#allocation3 + $0x10] sm:$0xff] %v659
    %vm668 = vcmask 257024
    %669 = vst.msk [vmem:[#allocation3 + $0x18] sm:$0xf] %vm668, %v660
    %670 = vst [vmem:[#allocation3 + $0x1c] sm:$0xff] %v661
    %671 = vst [vmem:[#allocation3 + $0x24] sm:$0xff] %v662
    %672 = vst [vmem:[#allocation3 + $0x2c] sm:$0xff] %v663
    %673 = vst.msk [vmem:[#allocation3 + $0x34] sm:$0xf] %vm668, %v664
    %v674 = vld [vmem:[#allocation2] sm:$0xff]
    %v675 = vld [vmem:[#allocation2 + $0x8] sm:$0xff]
    %v676 = vld [vmem:[#allocation2 + $0x10] sm:$0xff]
    %v677 = vld [vmem:[#allocation2 + $0x18] sm:$0xf]
    %v678 = vld [vmem:[#allocation2 + $0x1c] sm:$0xff]
    %v679 = vld [vmem:[#allocation2 + $0x24] sm:$0xff]
    %v680 = vld [vmem:[#allocation2 + $0x2c] sm:$0xff]
    %v681 = vld [vmem:[#allocation2 + $0x34] sm:$0xf]
    %690 = vrot.lane.b32.xlu0 %v674, 127
    %v691 = vpop.permute.xlu0 %690
    %692 = vrot.lane.b32.xlu0 %v675, 127
    %v693 = vpop.permute.xlu0 %692
    %694 = vrot.lane.b32.xlu0 %v676, 127
    %v695 = vpop.permute.xlu0 %694
    %696 = vrot.lane.b32.xlu0 %v677, 127
    %v697 = vpop.permute.xlu0 %696
    %698 = vrot.lane.b32.xlu0 %v678, 127
    %v699 = vpop.permute.xlu0 %698
    %700 = vrot.lane.b32.xlu0 %v679, 127
    %v701 = vpop.permute.xlu0 %700
    %702 = vrot.lane.b32.xlu0 %v680, 127
    %v703 = vpop.permute.xlu0 %702
    %704 = vrot.lane.b32.xlu0 %v681, 127
    %v705 = vpop.permute.xlu0 %704
    %v706 = vrot.slane %v691, 4
    %v707 = vrot.slane %v693, 4
    %v708 = vrot.slane %v695, 4
    %v709 = vrot.slane %v697, 4
    %v710 = vrot.slane %v699, 4
    %v711 = vrot.slane %v701, 4
    %v712 = vrot.slane %v703, 4
    %v713 = vrot.slane %v705, 4
    %vm714 = vcmask 1043456
    %v715 = vsel %vm714, %v706, %v707
    %vm716 = vcmask 1039360
    %v717 = vsel %vm716, %v691, %v715
    %v718 = vsel %vm714, %v707, %v708
    %v719 = vsel %vm716, %v693, %v718
    %v720 = vsel %vm714, %v708, %v709
    %v721 = vsel %vm716, %v695, %v720
    %v722 = vsel %vm714, %v710, %v711
    %v723 = vsel %vm716, %v699, %v722
    %v724 = vsel %vm714, %v711, %v712
    %v725 = vsel %vm716, %v701, %v724
    %v726 = vsel %vm714, %v712, %v713
    %v727 = vsel %vm716, %v703, %v726
    %736 = vst [vmem:[#allocation3 + $0x38] sm:$0xff] %v717
    %737 = vst [vmem:[#allocation3 + $0x40] sm:$0xff] %v719
    %738 = vst [vmem:[#allocation3 + $0x48] sm:$0xff] %v721
    %739 = vst.msk [vmem:[#allocation3 + $0x50] sm:$0xf] %vm668, %v697
    %740 = vst [vmem:[#allocation3 + $0x54] sm:$0xff] %v723
    %741 = vst [vmem:[#allocation3 + $0x5c] sm:$0xff] %v725
    %742 = vst [vmem:[#allocation3 + $0x64] sm:$0xff] %v727
    %743 = vst.msk [vmem:[#allocation3 + $0x6c] sm:$0xf] %vm668, %v705
    %v744 = vld [vmem:[#allocation2] sm:$0xff]
    %v745 = vld [vmem:[#allocation2 + $0x8] sm:$0xff]
    %v746 = vld [vmem:[#allocation2 + $0x10] sm:$0xff]
    %v747 = vld [vmem:[#allocation2 + $0x18] sm:$0xf]
    %v748 = vld [vmem:[#allocation2 + $0x1c] sm:$0xff]
    %v749 = vld [vmem:[#allocation2 + $0x24] sm:$0xff]
    %v750 = vld [vmem:[#allocation2 + $0x2c] sm:$0xff]
    %v751 = vld [vmem:[#allocation2 + $0x34] sm:$0xf]
    %760 = vrot.lane.b32.xlu0 %v744, 126
    %v761 = vpop.permute.xlu0 %760
    %762 = vrot.lane.b32.xlu0 %v745, 126
    %v763 = vpop.permute.xlu0 %762
    %764 = vrot.lane.b32.xlu0 %v746, 126
    %v765 = vpop.permute.xlu0 %764
    %766 = vrot.lane.b32.xlu0 %v747, 126
    %v767 = vpop.permute.xlu0 %766
    %768 = vrot.lane.b32.xlu0 %v748, 126
    %v769 = vpop.permute.xlu0 %768
    %770 = vrot.lane.b32.xlu0 %v749, 126
    %v771 = vpop.permute.xlu0 %770
    %772 = vrot.lane.b32.xlu0 %v750, 126
    %v773 = vpop.permute.xlu0 %772
    %774 = vrot.lane.b32.xlu0 %v751, 126
    %v775 = vpop.permute.xlu0 %774
    %v776 = vrot.slane %v761, 4
    %v777 = vrot.slane %v763, 4
    %v778 = vrot.slane %v765, 4
    %v779 = vrot.slane %v767, 4
    %v780 = vrot.slane %v769, 4
    %v781 = vrot.slane %v771, 4
    %v782 = vrot.slane %v773, 4
    %v783 = vrot.slane %v775, 4
    %v784 = vsel %vm714, %v776, %v777
    %vm785 = vcmask 1031168
    %v786 = vsel %vm785, %v761, %v784
    %v787 = vsel %vm714, %v777, %v778
    %v788 = vsel %vm785, %v763, %v787
    %v789 = vsel %vm714, %v778, %v779
    %v790 = vsel %vm785, %v765, %v789
    %v791 = vsel %vm714, %v780, %v781
    %v792 = vsel %vm785, %v769, %v791
    %v793 = vsel %vm714, %v781, %v782
    %v794 = vsel %vm785, %v771, %v793
    %v795 = vsel %vm714, %v782, %v783
    %v796 = vsel %vm785, %v773, %v795
    %805 = vst [vmem:[#allocation3 + $0x70] sm:$0xff] %v786
    %806 = vst [vmem:[#allocation3 + $0x78] sm:$0xff] %v788
    %807 = vst [vmem:[#allocation3 + $0x80] sm:$0xff] %v790
    %808 = vst.msk [vmem:[#allocation3 + $0x88] sm:$0xf] %vm668, %v767
    %809 = vst [vmem:[#allocation3 + $0x8c] sm:$0xff] %v792
    %810 = vst [vmem:[#allocation3 + $0x94] sm:$0xff] %v794
    %811 = vst [vmem:[#allocation3 + $0x9c] sm:$0xff] %v796
    %812 = vst.msk [vmem:[#allocation3 + $0xa4] sm:$0xf] %vm668, %v775
    %v813 = vld [vmem:[#allocation2] sm:$0xff]
    %v814 = vld [vmem:[#allocation2 + $0x8] sm:$0xff]
    %v815 = vld [vmem:[#allocation2 + $0x10] sm:$0xff]
    %v816 = vld [vmem:[#allocation2 + $0x18] sm:$0xf]
    %v817 = vld [vmem:[#allocation2 + $0x1c] sm:$0xff]
    %v818 = vld [vmem:[#allocation2 + $0x24] sm:$0xff]
    %v819 = vld [vmem:[#allocation2 + $0x2c] sm:$0xff]
    %v820 = vld [vmem:[#allocation2 + $0x34] sm:$0xf]
    %829 = vrot.lane.b32.xlu0 %v813, 125
    %v830 = vpop.permute.xlu0 %829
    %831 = vrot.lane.b32.xlu0 %v814, 125
    %v832 = vpop.permute.xlu0 %831
    %833 = vrot.lane.b32.xlu0 %v815, 125
    %v834 = vpop.permute.xlu0 %833
    %835 = vrot.lane.b32.xlu0 %v816, 125
    %v836 = vpop.permute.xlu0 %835
    %837 = vrot.lane.b32.xlu0 %v817, 125
    %v838 = vpop.permute.xlu0 %837
    %839 = vrot.lane.b32.xlu0 %v818, 125
    %v840 = vpop.permute.xlu0 %839
    %841 = vrot.lane.b32.xlu0 %v819, 125
    %v842 = vpop.permute.xlu0 %841
    %843 = vrot.lane.b32.xlu0 %v820, 125
    %v844 = vpop.permute.xlu0 %843
    %v845 = vrot.slane %v830, 4
    %v846 = vrot.slane %v832, 4
    %v847 = vrot.slane %v834, 4
    %v848 = vrot.slane %v836, 4
    %v849 = vrot.slane %v838, 4
    %v850 = vrot.slane %v840, 4
    %v851 = vrot.slane %v842, 4
    %v852 = vrot.slane %v844, 4
    %v853 = vsel %vm714, %v845, %v846
    %vm854 = vcmask 1022976
    %v855 = vsel %vm854, %v830, %v853
    %v856 = vsel %vm714, %v846, %v847
    %v857 = vsel %vm854, %v832, %v856
    %v858 = vsel %vm714, %v847, %v848
    %v859 = vsel %vm854, %v834, %v858
    %v860 = vsel %vm714, %v849, %v850
    %v861 = vsel %vm854, %v838, %v860
    %v862 = vsel %vm714, %v850, %v851
    %v863 = vsel %vm854, %v840, %v862
    %v864 = vsel %vm714, %v851, %v852
    %v865 = vsel %vm854, %v842, %v864
    %874 = vst [vmem:[#allocation3 + $0xa8] sm:$0xff] %v855
    %875 = vst [vmem:[#allocation3 + $0xb0] sm:$0xff] %v857
    %876 = vst [vmem:[#allocation3 + $0xb8] sm:$0xff] %v859
    %877 = vst.msk [vmem:[#allocation3 + $0xc0] sm:$0xf] %vm668, %v836
    %878 = vst [vmem:[#allocation3 + $0xc4] sm:$0xff] %v861
    %879 = vst [vmem:[#allocation3 + $0xcc] sm:$0xff] %v863
    %880 = vst [vmem:[#allocation3 + $0xd4] sm:$0xff] %v865
    %881 = vst.msk [vmem:[#allocation3 + $0xdc] sm:$0xf] %vm668, %v844
    %v882 = vld [vmem:[#allocation2] sm:$0xff]
    %v883 = vld [vmem:[#allocation2 + $0x8] sm:$0xff]
    %v884 = vld [vmem:[#allocation2 + $0x10] sm:$0xff]
    %v885 = vld [vmem:[#allocation2 + $0x18] sm:$0xf]
    %v886 = vld [vmem:[#allocation2 + $0x1c] sm:$0xff]
    %v887 = vld [vmem:[#allocation2 + $0x24] sm:$0xff]
    %v888 = vld [vmem:[#allocation2 + $0x2c] sm:$0xff]
    %v889 = vld [vmem:[#allocation2 + $0x34] sm:$0xf]
    %898 = vrot.lane.b32.xlu0 %v882, 124
    %v899 = vpop.permute.xlu0 %898
    %900 = vrot.lane.b32.xlu0 %v883, 124
    %v901 = vpop.permute.xlu0 %900
    %902 = vrot.lane.b32.xlu0 %v884, 124
    %v903 = vpop.permute.xlu0 %902
    %904 = vrot.lane.b32.xlu0 %v885, 124
    %v905 = vpop.permute.xlu0 %904
    %906 = vrot.lane.b32.xlu0 %v886, 124
    %v907 = vpop.permute.xlu0 %906
    %908 = vrot.lane.b32.xlu0 %v887, 124
    %v909 = vpop.permute.xlu0 %908
    %910 = vrot.lane.b32.xlu0 %v888, 124
    %v911 = vpop.permute.xlu0 %910
    %912 = vrot.lane.b32.xlu0 %v889, 124
    %v913 = vpop.permute.xlu0 %912
    %v914 = vrot.slane %v899, 4
    %v915 = vrot.slane %v901, 4
    %v916 = vrot.slane %v903, 4
    %v917 = vrot.slane %v905, 4
    %v918 = vrot.slane %v907, 4
    %v919 = vrot.slane %v909, 4
    %v920 = vrot.slane %v911, 4
    %v921 = vrot.slane %v913, 4
    %v922 = vsel %vm714, %v914, %v915
    %vm923 = vcmask 1014784
    %v924 = vsel %vm923, %v899, %v922
    %v925 = vsel %vm714, %v915, %v916
    %v926 = vsel %vm923, %v901, %v925
    %v927 = vsel %vm714, %v916, %v917
    %v928 = vsel %vm923, %v903, %v927
    %v929 = vsel %vm714, %v918, %v919
    %v930 = vsel %vm923, %v907, %v929
    %v931 = vsel %vm714, %v919, %v920
    %v932 = vsel %vm923, %v909, %v931
    %v933 = vsel %vm714, %v920, %v921
    %v934 = vsel %vm923, %v911, %v933
    %943 = vst [vmem:[#allocation3 + $0xe0] sm:$0xff] %v924
    %944 = vst [vmem:[#allocation3 + $0xe8] sm:$0xff] %v926
    %945 = vst [vmem:[#allocation3 + $0xf0] sm:$0xff] %v928
    %946 = vst.msk [vmem:[#allocation3 + $0xf8] sm:$0xf] %vm668, %v905
    %947 = vst [vmem:[#allocation3 + $0xfc] sm:$0xff] %v930
    %948 = vst [vmem:[#allocation3 + $0x104] sm:$0xff] %v932
    %949 = vst [vmem:[#allocation3 + $0x10c] sm:$0xff] %v934
    %950 = vst.msk [vmem:[#allocation3 + $0x114] sm:$0xf] %vm668, %v913
    %v951 = vld [vmem:[#allocation2] sm:$0xff]
    %v952 = vld [vmem:[#allocation2 + $0x8] sm:$0xff]
    %v953 = vld [vmem:[#allocation2 + $0x10] sm:$0xff]
    %v954 = vld [vmem:[#allocation2 + $0x18] sm:$0xf]
    %v955 = vld [vmem:[#allocation2 + $0x1c] sm:$0xff]
    %v956 = vld [vmem:[#allocation2 + $0x24] sm:$0xff]
    %v957 = vld [vmem:[#allocation2 + $0x2c] sm:$0xff]
    %v958 = vld [vmem:[#allocation2 + $0x34] sm:$0xf]
    %967 = vrot.lane.b32.xlu0 %v951, 108
    %v968 = vpop.permute.xlu0 %967
    %969 = vrot.lane.b32.xlu0 %v952, 108
    %v970 = vpop.permute.xlu0 %969
    %971 = vrot.lane.b32.xlu0 %v953, 108
    %v972 = vpop.permute.xlu0 %971
    %973 = vrot.lane.b32.xlu0 %v954, 108
    %v974 = vpop.permute.xlu0 %973
    %975 = vrot.lane.b32.xlu0 %v955, 108
    %v976 = vpop.permute.xlu0 %975
    %977 = vrot.lane.b32.xlu0 %v956, 108
    %v978 = vpop.permute.xlu0 %977
    %979 = vrot.lane.b32.xlu0 %v957, 108
    %v980 = vpop.permute.xlu0 %979
    %981 = vrot.lane.b32.xlu0 %v958, 108
    %v982 = vpop.permute.xlu0 %981
    %v983 = vrot.slane %v968, 4
    %v984 = vrot.slane %v970, 4
    %v985 = vrot.slane %v972, 4
    %v986 = vrot.slane %v974, 4
    %v987 = vrot.slane %v976, 4
    %v988 = vrot.slane %v978, 4
    %v989 = vrot.slane %v980, 4
    %v990 = vrot.slane %v982, 4
    %v991 = vsel %vm714, %v983, %v984
    %vm992 = vcmask 883712
    %v993 = vsel %vm992, %v968, %v991
    %v994 = vsel %vm714, %v984, %v985
    %v995 = vsel %vm992, %v970, %v994
    %v996 = vsel %vm714, %v985, %v986
    %v997 = vsel %vm992, %v972, %v996
    %v998 = vsel %vm714, %v987, %v988
    %v999 = vsel %vm992, %v976, %v998
    %v1000 = vsel %vm714, %v988, %v989
    %v1001 = vsel %vm992, %v978, %v1000
    %v1002 = vsel %vm714, %v989, %v990
    %v1003 = vsel %vm992, %v980, %v1002
    %1012 = vst [vmem:[#allocation3 + $0x118] sm:$0xff] %v993
    %1013 = vst [vmem:[#allocation3 + $0x120] sm:$0xff] %v995
    %1014 = vst [vmem:[#allocation3 + $0x128] sm:$0xff] %v997
    %1015 = vst.msk [vmem:[#allocation3 + $0x130] sm:$0xf] %vm668, %v974
    %1016 = vst [vmem:[#allocation3 + $0x134] sm:$0xff] %v999
    %1017 = vst [vmem:[#allocation3 + $0x13c] sm:$0xff] %v1001
    %1018 = vst [vmem:[#allocation3 + $0x144] sm:$0xff] %v1003
    %1019 = vst.msk [vmem:[#allocation3 + $0x14c] sm:$0xf] %vm668, %v982
    %v1020 = vld [vmem:[#allocation2] sm:$0xff]
    %v1021 = vld [vmem:[#allocation2 + $0x8] sm:$0xff]
    %v1022 = vld [vmem:[#allocation2 + $0x10] sm:$0xff]
    %v1023 = vld [vmem:[#allocation2 + $0x18] sm:$0xf]
    %v1024 = vld [vmem:[#allocation2 + $0x1c] sm:$0xff]
    %v1025 = vld [vmem:[#allocation2 + $0x24] sm:$0xff]
    %v1026 = vld [vmem:[#allocation2 + $0x2c] sm:$0xff]
    %v1027 = vld [vmem:[#allocation2 + $0x34] sm:$0xf]
    %1036 = vrot.lane.b32.xlu0 %v1020, 107
    %v1037 = vpop.permute.xlu0 %1036
    %1038 = vrot.lane.b32.xlu0 %v1021, 107
    %v1039 = vpop.permute.xlu0 %1038
    %1040 = vrot.lane.b32.xlu0 %v1022, 107
    %v1041 = vpop.permute.xlu0 %1040
    %1042 = vrot.lane.b32.xlu0 %v1023, 107
    %v1043 = vpop.permute.xlu0 %1042
    %1044 = vrot.lane.b32.xlu0 %v1024, 107
    %v1045 = vpop.permute.xlu0 %1044
    %1046 = vrot.lane.b32.xlu0 %v1025, 107
    %v1047 = vpop.permute.xlu0 %1046
    %1048 = vrot.lane.b32.xlu0 %v1026, 107
    %v1049 = vpop.permute.xlu0 %1048
    %1050 = vrot.lane.b32.xlu0 %v1027, 107
    %v1051 = vpop.permute.xlu0 %1050
    %v1052 = vrot.slane %v1037, 4
    %v1053 = vrot.slane %v1039, 4
    %v1054 = vrot.slane %v1041, 4
    %v1055 = vrot.slane %v1043, 4
    %v1056 = vrot.slane %v1045, 4
    %v1057 = vrot.slane %v1047, 4
    %v1058 = vrot.slane %v1049, 4
    %v1059 = vrot.slane %v1051, 4
    %v1060 = vsel %vm714, %v1052, %v1053
    %vm1061 = vcmask 875520
    %v1062 = vsel %vm1061, %v1037, %v1060
    %v1063 = vsel %vm714, %v1053, %v1054
    %v1064 = vsel %vm1061, %v1039, %v1063
    %v1065 = vsel %vm714, %v1054, %v1055
    %v1066 = vsel %vm1061, %v1041, %v1065
    %v1067 = vsel %vm714, %v1056, %v1057
    %v1068 = vsel %vm1061, %v1045, %v1067
    %v1069 = vsel %vm714, %v1057, %v1058
    %v1070 = vsel %vm1061, %v1047, %v1069
    %v1071 = vsel %vm714, %v1058, %v1059
    %v1072 = vsel %vm1061, %v1049, %v1071
    %1081 = vst [vmem:[#allocation3 + $0x150] sm:$0xff] %v1062
    %1082 = vst [vmem:[#allocation3 + $0x158] sm:$0xff] %v1064
    %1083 = vst [vmem:[#allocation3 + $0x160] sm:$0xff] %v1066
    %1084 = vst.msk [vmem:[#allocation3 + $0x168] sm:$0xf] %vm668, %v1043
    %1085 = vst [vmem:[#allocation3 + $0x16c] sm:$0xff] %v1068
    %1086 = vst [vmem:[#allocation3 + $0x174] sm:$0xff] %v1070
    %1087 = vst [vmem:[#allocation3 + $0x17c] sm:$0xff] %v1072
    %1088 = vst.msk [vmem:[#allocation3 + $0x184] sm:$0xf] %vm668, %v1051
    %v1089 = vld [vmem:[#allocation2] sm:$0xff]
    %v1090 = vld [vmem:[#allocation2 + $0x8] sm:$0xff]
    %v1091 = vld [vmem:[#allocation2 + $0x10] sm:$0xff]
    %v1092 = vld [vmem:[#allocation2 + $0x18] sm:$0xf]
    %v1093 = vld [vmem:[#allocation2 + $0x1c] sm:$0xff]
    %v1094 = vld [vmem:[#allocation2 + $0x24] sm:$0xff]
    %v1095 = vld [vmem:[#allocation2 + $0x2c] sm:$0xff]
    %v1096 = vld [vmem:[#allocation2 + $0x34] sm:$0xf]
    %1105 = vrot.lane.b32.xlu0 %v1089, 106
    %v1106 = vpop.permute.xlu0 %1105
    %1107 = vrot.lane.b32.xlu0 %v1090, 106
    %v1108 = vpop.permute.xlu0 %1107
    %1109 = vrot.lane.b32.xlu0 %v1091, 106
    %v1110 = vpop.permute.xlu0 %1109
    %1111 = vrot.lane.b32.xlu0 %v1092, 106
    %v1112 = vpop.permute.xlu0 %1111
    %1113 = vrot.lane.b32.xlu0 %v1093, 106
    %v1114 = vpop.permute.xlu0 %1113
    %1115 = vrot.lane.b32.xlu0 %v1094, 106
    %v1116 = vpop.permute.xlu0 %1115
    %1117 = vrot.lane.b32.xlu0 %v1095, 106
    %v1118 = vpop.permute.xlu0 %1117
    %1119 = vrot.lane.b32.xlu0 %v1096, 106
    %v1120 = vpop.permute.xlu0 %1119
    %v1121 = vrot.slane %v1106, 4
    %v1122 = vrot.slane %v1108, 4
    %v1123 = vrot.slane %v1110, 4
    %v1124 = vrot.slane %v1112, 4
    %v1125 = vrot.slane %v1114, 4
    %v1126 = vrot.slane %v1116, 4
    %v1127 = vrot.slane %v1118, 4
    %v1128 = vrot.slane %v1120, 4
    %v1129 = vsel %vm714, %v1121, %v1122
    %vm1130 = vcmask 867328
    %v1131 = vsel %vm1130, %v1106, %v1129
    %v1132 = vsel %vm714, %v1122, %v1123
    %v1133 = vsel %vm1130, %v1108, %v1132
    %v1134 = vsel %vm714, %v1123, %v1124
    %v1135 = vsel %vm1130, %v1110, %v1134
    %v1136 = vsel %vm714, %v1125, %v1126
    %v1137 = vsel %vm1130, %v1114, %v1136
    %v1138 = vsel %vm714, %v1126, %v1127
    %v1139 = vsel %vm1130, %v1116, %v1138
    %v1140 = vsel %vm714, %v1127, %v1128
    %v1141 = vsel %vm1130, %v1118, %v1140
    %1150 = vst [vmem:[#allocation3 + $0x188] sm:$0xff] %v1131
    %1151 = vst [vmem:[#allocation3 + $0x190] sm:$0xff] %v1133
    %1152 = vst [vmem:[#allocation3 + $0x198] sm:$0xff] %v1135
    %1153 = vst.msk [vmem:[#allocation3 + $0x1a0] sm:$0xf] %vm668, %v1112
    %1154 = vst [vmem:[#allocation3 + $0x1a4] sm:$0xff] %v1137
    %1155 = vst [vmem:[#allocation3 + $0x1ac] sm:$0xff] %v1139
    %1156 = vst [vmem:[#allocation3 + $0x1b4] sm:$0xff] %v1141
    %1157 = vst.msk [vmem:[#allocation3 + $0x1bc] sm:$0xf] %vm668, %v1120
    %v1158 = vld [vmem:[#allocation2] sm:$0xff]
    %v1159 = vld [vmem:[#allocation2 + $0x8] sm:$0xff]
    %v1160 = vld [vmem:[#allocation2 + $0x10] sm:$0xff]
    %v1161 = vld [vmem:[#allocation2 + $0x18] sm:$0xf]
    %v1162 = vld [vmem:[#allocation2 + $0x1c] sm:$0xff]
    %v1163 = vld [vmem:[#allocation2 + $0x24] sm:$0xff]
    %v1164 = vld [vmem:[#allocation2 + $0x2c] sm:$0xff]
    %v1165 = vld [vmem:[#allocation2 + $0x34] sm:$0xf]
    %1174 = vrot.lane.b32.xlu0 %v1158, 105
    %v1175 = vpop.permute.xlu0 %1174
    %1176 = vrot.lane.b32.xlu0 %v1159, 105
    %v1177 = vpop.permute.xlu0 %1176
    %1178 = vrot.lane.b32.xlu0 %v1160, 105
    %v1179 = vpop.permute.xlu0 %1178
    %1180 = vrot.lane.b32.xlu0 %v1161, 105
    %v1181 = vpop.permute.xlu0 %1180
    %1182 = vrot.lane.b32.xlu0 %v1162, 105
    %v1183 = vpop.permute.xlu0 %1182
    %1184 = vrot.lane.b32.xlu0 %v1163, 105
    %v1185 = vpop.permute.xlu0 %1184
    %1186 = vrot.lane.b32.xlu0 %v1164, 105
    %v1187 = vpop.permute.xlu0 %1186
    %1188 = vrot.lane.b32.xlu0 %v1165, 105
    %v1189 = vpop.permute.xlu0 %1188
    %v1190 = vrot.slane %v1175, 4
    %v1191 = vrot.slane %v1177, 4
    %v1192 = vrot.slane %v1179, 4
    %v1193 = vrot.slane %v1181, 4
    %v1194 = vrot.slane %v1183, 4
    %v1195 = vrot.slane %v1185, 4
    %v1196 = vrot.slane %v1187, 4
    %v1197 = vrot.slane %v1189, 4
    %v1198 = vsel %vm714, %v1190, %v1191
    %vm1199 = vcmask 859136
    %v1200 = vsel %vm1199, %v1175, %v1198
    %v1201 = vsel %vm714, %v1191, %v1192
    %v1202 = vsel %vm1199, %v1177, %v1201
    %v1203 = vsel %vm714, %v1192, %v1193
    %v1204 = vsel %vm1199, %v1179, %v1203
    %v1205 = vsel %vm714, %v1194, %v1195
    %v1206 = vsel %vm1199, %v1183, %v1205
    %v1207 = vsel %vm714, %v1195, %v1196
    %v1208 = vsel %vm1199, %v1185, %v1207
    %v1209 = vsel %vm714, %v1196, %v1197
    %v1210 = vsel %vm1199, %v1187, %v1209
    %1219 = vst [vmem:[#allocation3 + $0x1c0] sm:$0xff] %v1200
    %1220 = vst [vmem:[#allocation3 + $0x1c8] sm:$0xff] %v1202
    %1221 = vst [vmem:[#allocation3 + $0x1d0] sm:$0xff] %v1204
    %1222 = vst.msk [vmem:[#allocation3 + $0x1d8] sm:$0xf] %vm668, %v1181
    %1223 = vst [vmem:[#allocation3 + $0x1dc] sm:$0xff] %v1206
    %1224 = vst [vmem:[#allocation3 + $0x1e4] sm:$0xff] %v1208
    %1225 = vst [vmem:[#allocation3 + $0x1ec] sm:$0xff] %v1210
    %1226 = vst.msk [vmem:[#allocation3 + $0x1f4] sm:$0xf] %vm668, %v1189
    %v1227 = vld [vmem:[#allocation2] sm:$0xff]
    %v1228 = vld [vmem:[#allocation2 + $0x8] sm:$0xff]
    %v1229 = vld [vmem:[#allocation2 + $0x10] sm:$0xff]
    %v1230 = vld [vmem:[#allocation2 + $0x18] sm:$0xf]
    %v1231 = vld [vmem:[#allocation2 + $0x1c] sm:$0xff]
    %v1232 = vld [vmem:[#allocation2 + $0x24] sm:$0xff]
    %v1233 = vld [vmem:[#allocation2 + $0x2c] sm:$0xff]
    %v1234 = vld [vmem:[#allocation2 + $0x34] sm:$0xf]
    %1243 = vrot.lane.b32.xlu0 %v1227, 104
    %v1244 = vpop.permute.xlu0 %1243
    %1245 = vrot.lane.b32.xlu0 %v1228, 104
    %v1246 = vpop.permute.xlu0 %1245
    %1247 = vrot.lane.b32.xlu0 %v1229, 104
    %v1248 = vpop.permute.xlu0 %1247
    %1249 = vrot.lane.b32.xlu0 %v1230, 104
    %v1250 = vpop.permute.xlu0 %1249
    %1251 = vrot.lane.b32.xlu0 %v1231, 104
    %v1252 = vpop.permute.xlu0 %1251
    %1253 = vrot.lane.b32.xlu0 %v1232, 104
    %v1254 = vpop.permute.xlu0 %1253
    %1255 = vrot.lane.b32.xlu0 %v1233, 104
    %v1256 = vpop.permute.xlu0 %1255
    %1257 = vrot.lane.b32.xlu0 %v1234, 104
    %v1258 = vpop.permute.xlu0 %1257
    %v1259 = vrot.slane %v1244, 4
    %v1260 = vrot.slane %v1246, 4
    %v1261 = vrot.slane %v1248, 4
    %v1262 = vrot.slane %v1250, 4
    %v1263 = vrot.slane %v1252, 4
    %v1264 = vrot.slane %v1254, 4
    %v1265 = vrot.slane %v1256, 4
    %v1266 = vrot.slane %v1258, 4
    %v1267 = vsel %vm714, %v1259, %v1260
    %vm1268 = vcmask 850944
    %v1269 = vsel %vm1268, %v1244, %v1267
    %v1270 = vsel %vm714, %v1260, %v1261
    %v1271 = vsel %vm1268, %v1246, %v1270
    %v1272 = vsel %vm714, %v1261, %v1262
    %v1273 = vsel %vm1268, %v1248, %v1272
    %v1274 = vsel %vm714, %v1263, %v1264
    %v1275 = vsel %vm1268, %v1252, %v1274
    %v1276 = vsel %vm714, %v1264, %v1265
    %v1277 = vsel %vm1268, %v1254, %v1276
    %v1278 = vsel %vm714, %v1265, %v1266
    %v1279 = vsel %vm1268, %v1256, %v1278
    %1288 = vst [vmem:[#allocation3 + $0x1f8] sm:$0xff] %v1269
    %1289 = vst [vmem:[#allocation3 + $0x200] sm:$0xff] %v1271
    %1290 = vst [vmem:[#allocation3 + $0x208] sm:$0xff] %v1273
    %1291 = vst.msk [vmem:[#allocation3 + $0x210] sm:$0xf] %vm668, %v1250
    %1292 = vst [vmem:[#allocation3 + $0x214] sm:$0xff] %v1275
    %1293 = vst [vmem:[#allocation3 + $0x21c] sm:$0xff] %v1277
    %1294 = vst [vmem:[#allocation3 + $0x224] sm:$0xff] %v1279
    %1295 = vst.msk [vmem:[#allocation3 + $0x22c] sm:$0xf] %vm668, %v1258
    %v1296 = vld [vmem:[#allocation2] sm:$0xff]
    %v1297 = vld [vmem:[#allocation2 + $0x8] sm:$0xff]
    %v1298 = vld [vmem:[#allocation2 + $0x10] sm:$0xff]
    %v1299 = vld [vmem:[#allocation2 + $0x18] sm:$0xf]
    %v1300 = vld [vmem:[#allocation2 + $0x1c] sm:$0xff]
    %v1301 = vld [vmem:[#allocation2 + $0x24] sm:$0xff]
    %v1302 = vld [vmem:[#allocation2 + $0x2c] sm:$0xff]
    %v1303 = vld [vmem:[#allocation2 + $0x34] sm:$0xf]
    %1312 = vrot.lane.b32.xlu0 %v1296, 88
    %v1313 = vpop.permute.xlu0 %1312
    %1314 = vrot.lane.b32.xlu0 %v1297, 88
    %v1315 = vpop.permute.xlu0 %1314
    %1316 = vrot.lane.b32.xlu0 %v1298, 88
    %v1317 = vpop.permute.xlu0 %1316
    %1318 = vrot.lane.b32.xlu0 %v1299, 88
    %v1319 = vpop.permute.xlu0 %1318
    %1320 = vrot.lane.b32.xlu0 %v1300, 88
    %v1321 = vpop.permute.xlu0 %1320
    %1322 = vrot.lane.b32.xlu0 %v1301, 88
    %v1323 = vpop.permute.xlu0 %1322
    %1324 = vrot.lane.b32.xlu0 %v1302, 88
    %v1325 = vpop.permute.xlu0 %1324
    %1326 = vrot.lane.b32.xlu0 %v1303, 88
    %v1327 = vpop.permute.xlu0 %1326
    %v1328 = vrot.slane %v1313, 4
    %v1329 = vrot.slane %v1315, 4
    %v1330 = vrot.slane %v1317, 4
    %v1331 = vrot.slane %v1319, 4
    %v1332 = vrot.slane %v1321, 4
    %v1333 = vrot.slane %v1323, 4
    %v1334 = vrot.slane %v1325, 4
    %v1335 = vrot.slane %v1327, 4
    %v1336 = vsel %vm714, %v1328, %v1329
    %vm1337 = vcmask 719872
    %v1338 = vsel %vm1337, %v1313, %v1336
    %v1339 = vsel %vm714, %v1329, %v1330
    %v1340 = vsel %vm1337, %v1315, %v1339
    %v1341 = vsel %vm714, %v1330, %v1331
    %v1342 = vsel %vm1337, %v1317, %v1341
    %v1343 = vsel %vm714, %v1332, %v1333
    %v1344 = vsel %vm1337, %v1321, %v1343
    %v1345 = vsel %vm714, %v1333, %v1334
    %v1346 = vsel %vm1337, %v1323, %v1345
    %v1347 = vsel %vm714, %v1334, %v1335
    %v1348 = vsel %vm1337, %v1325, %v1347
    %1357 = vst [vmem:[#allocation3 + $0x230] sm:$0xff] %v1338
    %1358 = vst [vmem:[#allocation3 + $0x238] sm:$0xff] %v1340
    %1359 = vst [vmem:[#allocation3 + $0x240] sm:$0xff] %v1342
    %1360 = vst.msk [vmem:[#allocation3 + $0x248] sm:$0xf] %vm668, %v1319
    %1361 = vst [vmem:[#allocation3 + $0x24c] sm:$0xff] %v1344
    %1362 = vst [vmem:[#allocation3 + $0x254] sm:$0xff] %v1346
    %1363 = vst [vmem:[#allocation3 + $0x25c] sm:$0xff] %v1348
    %1364 = vst.msk [vmem:[#allocation3 + $0x264] sm:$0xf] %vm668, %v1327
    %v1365 = vld [vmem:[#allocation2] sm:$0xff]
    %v1366 = vld [vmem:[#allocation2 + $0x8] sm:$0xff]
    %v1367 = vld [vmem:[#allocation2 + $0x10] sm:$0xff]
    %v1368 = vld [vmem:[#allocation2 + $0x18] sm:$0xf]
    %v1369 = vld [vmem:[#allocation2 + $0x1c] sm:$0xff]
    %v1370 = vld [vmem:[#allocation2 + $0x24] sm:$0xff]
    %v1371 = vld [vmem:[#allocation2 + $0x2c] sm:$0xff]
    %v1372 = vld [vmem:[#allocation2 + $0x34] sm:$0xf]
    %1381 = vrot.lane.b32.xlu0 %v1365, 87
    %v1382 = vpop.permute.xlu0 %1381
    %1383 = vrot.lane.b32.xlu0 %v1366, 87
    %v1384 = vpop.permute.xlu0 %1383
    %1385 = vrot.lane.b32.xlu0 %v1367, 87
    %v1386 = vpop.permute.xlu0 %1385
    %1387 = vrot.lane.b32.xlu0 %v1368, 87
    %v1388 = vpop.permute.xlu0 %1387
    %1389 = vrot.lane.b32.xlu0 %v1369, 87
    %v1390 = vpop.permute.xlu0 %1389
    %1391 = vrot.lane.b32.xlu0 %v1370, 87
    %v1392 = vpop.permute.xlu0 %1391
    %1393 = vrot.lane.b32.xlu0 %v1371, 87
    %v1394 = vpop.permute.xlu0 %1393
    %1395 = vrot.lane.b32.xlu0 %v1372, 87
    %v1396 = vpop.permute.xlu0 %1395
    %v1397 = vrot.slane %v1382, 4
    %v1398 = vrot.slane %v1384, 4
    %v1399 = vrot.slane %v1386, 4
    %v1400 = vrot.slane %v1388, 4
    %v1401 = vrot.slane %v1390, 4
    %v1402 = vrot.slane %v1392, 4
    %v1403 = vrot.slane %v1394, 4
    %v1404 = vrot.slane %v1396, 4
    %v1405 = vsel %vm714, %v1397, %v1398
    %vm1406 = vcmask 711680
    %v1407 = vsel %vm1406, %v1382, %v1405
    %v1408 = vsel %vm714, %v1398, %v1399
    %v1409 = vsel %vm1406, %v1384, %v1408
    %v1410 = vsel %vm714, %v1399, %v1400
    %v1411 = vsel %vm1406, %v1386, %v1410
    %v1412 = vsel %vm714, %v1401, %v1402
    %v1413 = vsel %vm1406, %v1390, %v1412
    %v1414 = vsel %vm714, %v1402, %v1403
    %v1415 = vsel %vm1406, %v1392, %v1414
    %v1416 = vsel %vm714, %v1403, %v1404
    %v1417 = vsel %vm1406, %v1394, %v1416
    %1426 = vst [vmem:[#allocation3 + $0x268] sm:$0xff] %v1407
    %1427 = vst [vmem:[#allocation3 + $0x270] sm:$0xff] %v1409
    %1428 = vst [vmem:[#allocation3 + $0x278] sm:$0xff] %v1411
    %1429 = vst.msk [vmem:[#allocation3 + $0x280] sm:$0xf] %vm668, %v1388
    %1430 = vst [vmem:[#allocation3 + $0x284] sm:$0xff] %v1413
    %1431 = vst [vmem:[#allocation3 + $0x28c] sm:$0xff] %v1415
    %1432 = vst [vmem:[#allocation3 + $0x294] sm:$0xff] %v1417
    %1433 = vst.msk [vmem:[#allocation3 + $0x29c] sm:$0xf] %vm668, %v1396
    %v1434 = vld [vmem:[#allocation2] sm:$0xff]
    %v1435 = vld [vmem:[#allocation2 + $0x8] sm:$0xff]
    %v1436 = vld [vmem:[#allocation2 + $0x10] sm:$0xff]
    %v1437 = vld [vmem:[#allocation2 + $0x18] sm:$0xf]
    %v1438 = vld [vmem:[#allocation2 + $0x1c] sm:$0xff]
    %v1439 = vld [vmem:[#allocation2 + $0x24] sm:$0xff]
    %v1440 = vld [vmem:[#allocation2 + $0x2c] sm:$0xff]
    %v1441 = vld [vmem:[#allocation2 + $0x34] sm:$0xf]
    %1450 = vrot.lane.b32.xlu0 %v1434, 86
    %v1451 = vpop.permute.xlu0 %1450
    %1452 = vrot.lane.b32.xlu0 %v1435, 86
    %v1453 = vpop.permute.xlu0 %1452
    %1454 = vrot.lane.b32.xlu0 %v1436, 86
    %v1455 = vpop.permute.xlu0 %1454
    %1456 = vrot.lane.b32.xlu0 %v1437, 86
    %v1457 = vpop.permute.xlu0 %1456
    %1458 = vrot.lane.b32.xlu0 %v1438, 86
    %v1459 = vpop.permute.xlu0 %1458
    %1460 = vrot.lane.b32.xlu0 %v1439, 86
    %v1461 = vpop.permute.xlu0 %1460
    %1462 = vrot.lane.b32.xlu0 %v1440, 86
    %v1463 = vpop.permute.xlu0 %1462
    %1464 = vrot.lane.b32.xlu0 %v1441, 86
    %v1465 = vpop.permute.xlu0 %1464
    %v1466 = vrot.slane %v1451, 4
    %v1467 = vrot.slane %v1453, 4
    %v1468 = vrot.slane %v1455, 4
    %v1469 = vrot.slane %v1457, 4
    %v1470 = vrot.slane %v1459, 4
    %v1471 = vrot.slane %v1461, 4
    %v1472 = vrot.slane %v1463, 4
    %v1473 = vrot.slane %v1465, 4
    %v1474 = vsel %vm714, %v1466, %v1467
    %vm1475 = vcmask 703488
    %v1476 = vsel %vm1475, %v1451, %v1474
    %v1477 = vsel %vm714, %v1467, %v1468
    %v1478 = vsel %vm1475, %v1453, %v1477
    %v1479 = vsel %vm714, %v1468, %v1469
    %v1480 = vsel %vm1475, %v1455, %v1479
    %v1481 = vsel %vm714, %v1470, %v1471
    %v1482 = vsel %vm1475, %v1459, %v1481
    %v1483 = vsel %vm714, %v1471, %v1472
    %v1484 = vsel %vm1475, %v1461, %v1483
    %v1485 = vsel %vm714, %v1472, %v1473
    %v1486 = vsel %vm1475, %v1463, %v1485
    %1495 = vst [vmem:[#allocation3 + $0x2a0] sm:$0xff] %v1476
    %1496 = vst [vmem:[#allocation3 + $0x2a8] sm:$0xff] %v1478
    %1497 = vst [vmem:[#allocation3 + $0x2b0] sm:$0xff] %v1480
    %1498 = vst.msk [vmem:[#allocation3 + $0x2b8] sm:$0xf] %vm668, %v1457
    %1499 = vst [vmem:[#allocation3 + $0x2bc] sm:$0xff] %v1482
    %1500 = vst [vmem:[#allocation3 + $0x2c4] sm:$0xff] %v1484
    %1501 = vst [vmem:[#allocation3 + $0x2cc] sm:$0xff] %v1486
    %1502 = vst.msk [vmem:[#allocation3 + $0x2d4] sm:$0xf] %vm668, %v1465
    %v1503 = vld [vmem:[#allocation2] sm:$0xff]
    %v1504 = vld [vmem:[#allocation2 + $0x8] sm:$0xff]
    %v1505 = vld [vmem:[#allocation2 + $0x10] sm:$0xff]
    %v1506 = vld [vmem:[#allocation2 + $0x18] sm:$0xf]
    %v1507 = vld [vmem:[#allocation2 + $0x1c] sm:$0xff]
    %v1508 = vld [vmem:[#allocation2 + $0x24] sm:$0xff]
    %v1509 = vld [vmem:[#allocation2 + $0x2c] sm:$0xff]
    %v1510 = vld [vmem:[#allocation2 + $0x34] sm:$0xf]
    %1519 = vrot.lane.b32.xlu0 %v1503, 85
    %v1520 = vpop.permute.xlu0 %1519
    %1521 = vrot.lane.b32.xlu0 %v1504, 85
    %v1522 = vpop.permute.xlu0 %1521
    %1523 = vrot.lane.b32.xlu0 %v1505, 85
    %v1524 = vpop.permute.xlu0 %1523
    %1525 = vrot.lane.b32.xlu0 %v1506, 85
    %v1526 = vpop.permute.xlu0 %1525
    %1527 = vrot.lane.b32.xlu0 %v1507, 85
    %v1528 = vpop.permute.xlu0 %1527
    %1529 = vrot.lane.b32.xlu0 %v1508, 85
    %v1530 = vpop.permute.xlu0 %1529
    %1531 = vrot.lane.b32.xlu0 %v1509, 85
    %v1532 = vpop.permute.xlu0 %1531
    %1533 = vrot.lane.b32.xlu0 %v1510, 85
    %v1534 = vpop.permute.xlu0 %1533
    %v1535 = vrot.slane %v1520, 4
    %v1536 = vrot.slane %v1522, 4
    %v1537 = vrot.slane %v1524, 4
    %v1538 = vrot.slane %v1526, 4
    %v1539 = vrot.slane %v1528, 4
    %v1540 = vrot.slane %v1530, 4
    %v1541 = vrot.slane %v1532, 4
    %v1542 = vrot.slane %v1534, 4
    %v1543 = vsel %vm714, %v1535, %v1536
    %vm1544 = vcmask 695296
    %v1545 = vsel %vm1544, %v1520, %v1543
    %v1546 = vsel %vm714, %v1536, %v1537
    %v1547 = vsel %vm1544, %v1522, %v1546
    %v1548 = vsel %vm714, %v1537, %v1538
    %v1549 = vsel %vm1544, %v1524, %v1548
    %v1550 = vsel %vm714, %v1539, %v1540
    %v1551 = vsel %vm1544, %v1528, %v1550
    %v1552 = vsel %vm714, %v1540, %v1541
    %v1553 = vsel %vm1544, %v1530, %v1552
    %v1554 = vsel %vm714, %v1541, %v1542
    %v1555 = vsel %vm1544, %v1532, %v1554
    %1564 = vst [vmem:[#allocation3 + $0x2d8] sm:$0xff] %v1545
    %1565 = vst [vmem:[#allocation3 + $0x2e0] sm:$0xff] %v1547
    %1566 = vst [vmem:[#allocation3 + $0x2e8] sm:$0xff] %v1549
    %1567 = vst.msk [vmem:[#allocation3 + $0x2f0] sm:$0xf] %vm668, %v1526
    %1568 = vst [vmem:[#allocation3 + $0x2f4] sm:$0xff] %v1551
    %1569 = vst [vmem:[#allocation3 + $0x2fc] sm:$0xff] %v1553
    %1570 = vst [vmem:[#allocation3 + $0x304] sm:$0xff] %v1555
    %1571 = vst.msk [vmem:[#allocation3 + $0x30c] sm:$0xf] %vm668, %v1534
    %v1572 = vld [vmem:[#allocation2] sm:$0xff]
    %v1573 = vld [vmem:[#allocation2 + $0x8] sm:$0xff]
    %v1574 = vld [vmem:[#allocation2 + $0x10] sm:$0xff]
    %v1575 = vld [vmem:[#allocation2 + $0x18] sm:$0xf]
    %v1576 = vld [vmem:[#allocation2 + $0x1c] sm:$0xff]
    %v1577 = vld [vmem:[#allocation2 + $0x24] sm:$0xff]
    %v1578 = vld [vmem:[#allocation2 + $0x2c] sm:$0xff]
    %v1579 = vld [vmem:[#allocation2 + $0x34] sm:$0xf]
    %1588 = vrot.lane.b32.xlu0 %v1572, 84
    %v1589 = vpop.permute.xlu0 %1588
    %1590 = vrot.lane.b32.xlu0 %v1573, 84
    %v1591 = vpop.permute.xlu0 %1590
    %1592 = vrot.lane.b32.xlu0 %v1574, 84
    %v1593 = vpop.permute.xlu0 %1592
    %1594 = vrot.lane.b32.xlu0 %v1575, 84
    %v1595 = vpop.permute.xlu0 %1594
    %1596 = vrot.lane.b32.xlu0 %v1576, 84
    %v1597 = vpop.permute.xlu0 %1596
    %1598 = vrot.lane.b32.xlu0 %v1577, 84
    %v1599 = vpop.permute.xlu0 %1598
    %1600 = vrot.lane.b32.xlu0 %v1578, 84
    %v1601 = vpop.permute.xlu0 %1600
    %1602 = vrot.lane.b32.xlu0 %v1579, 84
    %v1603 = vpop.permute.xlu0 %1602
    %v1604 = vrot.slane %v1589, 4
    %v1605 = vrot.slane %v1591, 4
    %v1606 = vrot.slane %v1593, 4
    %v1607 = vrot.slane %v1595, 4
    %v1608 = vrot.slane %v1597, 4
    %v1609 = vrot.slane %v1599, 4
    %v1610 = vrot.slane %v1601, 4
    %v1611 = vrot.slane %v1603, 4
    %v1612 = vsel %vm714, %v1604, %v1605
    %vm1613 = vcmask 687104
    %v1614 = vsel %vm1613, %v1589, %v1612
    %v1615 = vsel %vm714, %v1605, %v1606
    %v1616 = vsel %vm1613, %v1591, %v1615
    %v1617 = vsel %vm714, %v1606, %v1607
    %v1618 = vsel %vm1613, %v1593, %v1617
    %v1619 = vsel %vm714, %v1608, %v1609
    %v1620 = vsel %vm1613, %v1597, %v1619
    %v1621 = vsel %vm714, %v1609, %v1610
    %v1622 = vsel %vm1613, %v1599, %v1621
    %v1623 = vsel %vm714, %v1610, %v1611
    %v1624 = vsel %vm1613, %v1601, %v1623
    %1633 = vst [vmem:[#allocation3 + $0x310] sm:$0xff] %v1614
    %1634 = vst [vmem:[#allocation3 + $0x318] sm:$0xff] %v1616
    %1635 = vst [vmem:[#allocation3 + $0x320] sm:$0xff] %v1618
    %1636 = vst.msk [vmem:[#allocation3 + $0x328] sm:$0xf] %vm668, %v1595
    %1637 = vst [vmem:[#allocation3 + $0x32c] sm:$0xff] %v1620
    %1638 = vst [vmem:[#allocation3 + $0x334] sm:$0xff] %v1622
    %1639 = vst [vmem:[#allocation3 + $0x33c] sm:$0xff] %v1624
    %1640 = vst.msk [vmem:[#allocation3 + $0x344] sm:$0xf] %vm668, %v1603
    %v1641 = vld [vmem:[#allocation2] sm:$0xff]
    %v1642 = vld [vmem:[#allocation2 + $0x8] sm:$0xff]
    %v1643 = vld [vmem:[#allocation2 + $0x10] sm:$0xff]
    %v1644 = vld [vmem:[#allocation2 + $0x18] sm:$0xf]
    %v1645 = vld [vmem:[#allocation2 + $0x1c] sm:$0xff]
    %v1646 = vld [vmem:[#allocation2 + $0x24] sm:$0xff]
    %v1647 = vld [vmem:[#allocation2 + $0x2c] sm:$0xff]
    %v1648 = vld [vmem:[#allocation2 + $0x34] sm:$0xf]
    %1657 = vrot.lane.b32.xlu0 %v1641, 68
    %v1658 = vpop.permute.xlu0 %1657
    %1659 = vrot.lane.b32.xlu0 %v1642, 68
    %v1660 = vpop.permute.xlu0 %1659
    %1661 = vrot.lane.b32.xlu0 %v1643, 68
    %v1662 = vpop.permute.xlu0 %1661
    %1663 = vrot.lane.b32.xlu0 %v1644, 68
    %v1664 = vpop.permute.xlu0 %1663
    %1665 = vrot.lane.b32.xlu0 %v1645, 68
    %v1666 = vpop.permute.xlu0 %1665
    %1667 = vrot.lane.b32.xlu0 %v1646, 68
    %v1668 = vpop.permute.xlu0 %1667
    %1669 = vrot.lane.b32.xlu0 %v1647, 68
    %v1670 = vpop.permute.xlu0 %1669
    %1671 = vrot.lane.b32.xlu0 %v1648, 68
    %v1672 = vpop.permute.xlu0 %1671
    %v1673 = vrot.slane %v1658, 4
    %v1674 = vrot.slane %v1660, 4
    %v1675 = vrot.slane %v1662, 4
    %v1676 = vrot.slane %v1664, 4
    %v1677 = vrot.slane %v1666, 4
    %v1678 = vrot.slane %v1668, 4
    %v1679 = vrot.slane %v1670, 4
    %v1680 = vrot.slane %v1672, 4
    %v1681 = vsel %vm714, %v1673, %v1674
    %vm1682 = vcmask 556032
    %v1683 = vsel %vm1682, %v1658, %v1681
    %v1684 = vsel %vm714, %v1674, %v1675
    %v1685 = vsel %vm1682, %v1660, %v1684
    %v1686 = vsel %vm714, %v1675, %v1676
    %v1687 = vsel %vm1682, %v1662, %v1686
    %v1688 = vsel %vm714, %v1677, %v1678
    %v1689 = vsel %vm1682, %v1666, %v1688
    %v1690 = vsel %vm714, %v1678, %v1679
    %v1691 = vsel %vm1682, %v1668, %v1690
    %v1692 = vsel %vm714, %v1679, %v1680
    %v1693 = vsel %vm1682, %v1670, %v1692
    %1702 = vst [vmem:[#allocation3 + $0x348] sm:$0xff] %v1683
    %1703 = vst [vmem:[#allocation3 + $0x350] sm:$0xff] %v1685
    %1704 = vst [vmem:[#allocation3 + $0x358] sm:$0xff] %v1687
    %1705 = vst.msk [vmem:[#allocation3 + $0x360] sm:$0xf] %vm668, %v1664
    %1706 = vst [vmem:[#allocation3 + $0x364] sm:$0xff] %v1689
    %1707 = vst [vmem:[#allocation3 + $0x36c] sm:$0xff] %v1691
    %1708 = vst [vmem:[#allocation3 + $0x374] sm:$0xff] %v1693
    %1709 = vst.msk [vmem:[#allocation3 + $0x37c] sm:$0xf] %vm668, %v1672
    %v1710 = vld [vmem:[#allocation2] sm:$0xff]
    %v1711 = vld [vmem:[#allocation2 + $0x8] sm:$0xff]
    %v1712 = vld [vmem:[#allocation2 + $0x10] sm:$0xff]
    %v1713 = vld [vmem:[#allocation2 + $0x18] sm:$0xf]
    %v1714 = vld [vmem:[#allocation2 + $0x1c] sm:$0xff]
    %v1715 = vld [vmem:[#allocation2 + $0x24] sm:$0xff]
    %v1716 = vld [vmem:[#allocation2 + $0x2c] sm:$0xff]
    %v1717 = vld [vmem:[#allocation2 + $0x34] sm:$0xf]
    %1726 = vrot.lane.b32.xlu0 %v1710, 67
    %v1727 = vpop.permute.xlu0 %1726
    %1728 = vrot.lane.b32.xlu0 %v1711, 67
    %v1729 = vpop.permute.xlu0 %1728
    %1730 = vrot.lane.b32.xlu0 %v1712, 67
    %v1731 = vpop.permute.xlu0 %1730
    %1732 = vrot.lane.b32.xlu0 %v1713, 67
    %v1733 = vpop.permute.xlu0 %1732
    %1734 = vrot.lane.b32.xlu0 %v1714, 67
    %v1735 = vpop.permute.xlu0 %1734
    %1736 = vrot.lane.b32.xlu0 %v1715, 67
    %v1737 = vpop.permute.xlu0 %1736
    %1738 = vrot.lane.b32.xlu0 %v1716, 67
    %v1739 = vpop.permute.xlu0 %1738
    %1740 = vrot.lane.b32.xlu0 %v1717, 67
    %v1741 = vpop.permute.xlu0 %1740
    %v1742 = vrot.slane %v1727, 4
    %v1743 = vrot.slane %v1729, 4
    %v1744 = vrot.slane %v1731, 4
    %v1745 = vrot.slane %v1733, 4
    %v1746 = vrot.slane %v1735, 4
    %v1747 = vrot.slane %v1737, 4
    %v1748 = vrot.slane %v1739, 4
    %v1749 = vrot.slane %v1741, 4
    %v1750 = vsel %vm714, %v1742, %v1743
    %vm1751 = vcmask 547840
    %v1752 = vsel %vm1751, %v1727, %v1750
    %v1753 = vsel %vm714, %v1743, %v1744
    %v1754 = vsel %vm1751, %v1729, %v1753
    %v1755 = vsel %vm714, %v1744, %v1745
    %v1756 = vsel %vm1751, %v1731, %v1755
    %v1757 = vsel %vm714, %v1746, %v1747
    %v1758 = vsel %vm1751, %v1735, %v1757
    %v1759 = vsel %vm714, %v1747, %v1748
    %v1760 = vsel %vm1751, %v1737, %v1759
    %v1761 = vsel %vm714, %v1748, %v1749
    %v1762 = vsel %vm1751, %v1739, %v1761
    %1771 = vst [vmem:[#allocation3 + $0x380] sm:$0xff] %v1752
    %1772 = vst [vmem:[#allocation3 + $0x388] sm:$0xff] %v1754
    %1773 = vst [vmem:[#allocation3 + $0x390] sm:$0xff] %v1756
    %1774 = vst.msk [vmem:[#allocation3 + $0x398] sm:$0xf] %vm668, %v1733
    %1775 = vst [vmem:[#allocation3 + $0x39c] sm:$0xff] %v1758
    %1776 = vst [vmem:[#allocation3 + $0x3a4] sm:$0xff] %v1760
    %1777 = vst [vmem:[#allocation3 + $0x3ac] sm:$0xff] %v1762
    %1778 = vst.msk [vmem:[#allocation3 + $0x3b4] sm:$0xf] %vm668, %v1741
    %v1779 = vld [vmem:[#allocation2] sm:$0xff]
    %v1780 = vld [vmem:[#allocation2 + $0x8] sm:$0xff]
    %v1781 = vld [vmem:[#allocation2 + $0x10] sm:$0xff]
    %v1782 = vld [vmem:[#allocation2 + $0x18] sm:$0xf]
    %v1783 = vld [vmem:[#allocation2 + $0x1c] sm:$0xff]
    %v1784 = vld [vmem:[#allocation2 + $0x24] sm:$0xff]
    %v1785 = vld [vmem:[#allocation2 + $0x2c] sm:$0xff]
    %v1786 = vld [vmem:[#allocation2 + $0x34] sm:$0xf]
    %1795 = vrot.lane.b32.xlu0 %v1779, 66
    %v1796 = vpop.permute.xlu0 %1795
    %1797 = vrot.lane.b32.xlu0 %v1780, 66
    %v1798 = vpop.permute.xlu0 %1797
    %1799 = vrot.lane.b32.xlu0 %v1781, 66
    %v1800 = vpop.permute.xlu0 %1799
    %1801 = vrot.lane.b32.xlu0 %v1782, 66
    %v1802 = vpop.permute.xlu0 %1801
    %1803 = vrot.lane.b32.xlu0 %v1783, 66
    %v1804 = vpop.permute.xlu0 %1803
    %1805 = vrot.lane.b32.xlu0 %v1784, 66
    %v1806 = vpop.permute.xlu0 %1805
    %1807 = vrot.lane.b32.xlu0 %v1785, 66
    %v1808 = vpop.permute.xlu0 %1807
    %1809 = vrot.lane.b32.xlu0 %v1786, 66
    %v1810 = vpop.permute.xlu0 %1809
    %v1811 = vrot.slane %v1796, 4
    %v1812 = vrot.slane %v1798, 4
    %v1813 = vrot.slane %v1800, 4
    %v1814 = vrot.slane %v1802, 4
    %v1815 = vrot.slane %v1804, 4
    %v1816 = vrot.slane %v1806, 4
    %v1817 = vrot.slane %v1808, 4
    %v1818 = vrot.slane %v1810, 4
    %v1819 = vsel %vm714, %v1811, %v1812
    %vm1820 = vcmask 539648
    %v1821 = vsel %vm1820, %v1796, %v1819
    %v1822 = vsel %vm714, %v1812, %v1813
    %v1823 = vsel %vm1820, %v1798, %v1822
    %v1824 = vsel %vm714, %v1813, %v1814
    %v1825 = vsel %vm1820, %v1800, %v1824
    %v1826 = vsel %vm714, %v1815, %v1816
    %v1827 = vsel %vm1820, %v1804, %v1826
    %v1828 = vsel %vm714, %v1816, %v1817
    %v1829 = vsel %vm1820, %v1806, %v1828
    %v1830 = vsel %vm714, %v1817, %v1818
    %v1831 = vsel %vm1820, %v1808, %v1830
    %1840 = vst [vmem:[#allocation3 + $0x3b8] sm:$0xff] %v1821
    %1841 = vst [vmem:[#allocation3 + $0x3c0] sm:$0xff] %v1823
    %1842 = vst [vmem:[#allocation3 + $0x3c8] sm:$0xff] %v1825
    %1843 = vst.msk [vmem:[#allocation3 + $0x3d0] sm:$0xf] %vm668, %v1802
    %1844 = vst [vmem:[#allocation3 + $0x3d4] sm:$0xff] %v1827
    %1845 = vst [vmem:[#allocation3 + $0x3dc] sm:$0xff] %v1829
    %1846 = vst [vmem:[#allocation3 + $0x3e4] sm:$0xff] %v1831
    %1847 = vst.msk [vmem:[#allocation3 + $0x3ec] sm:$0xf] %vm668, %v1810
    %v1848 = vld [vmem:[#allocation2] sm:$0xff]
    %v1849 = vld [vmem:[#allocation2 + $0x8] sm:$0xff]
    %v1850 = vld [vmem:[#allocation2 + $0x10] sm:$0xff]
    %v1851 = vld [vmem:[#allocation2 + $0x18] sm:$0xf]
    %v1852 = vld [vmem:[#allocation2 + $0x1c] sm:$0xff]
    %v1853 = vld [vmem:[#allocation2 + $0x24] sm:$0xff]
    %v1854 = vld [vmem:[#allocation2 + $0x2c] sm:$0xff]
    %v1855 = vld [vmem:[#allocation2 + $0x34] sm:$0xf]
    %1864 = vrot.lane.b32.xlu0 %v1848, 65
    %v1865 = vpop.permute.xlu0 %1864
    %1866 = vrot.lane.b32.xlu0 %v1849, 65
    %v1867 = vpop.permute.xlu0 %1866
    %1868 = vrot.lane.b32.xlu0 %v1850, 65
    %v1869 = vpop.permute.xlu0 %1868
    %1870 = vrot.lane.b32.xlu0 %v1851, 65
    %v1871 = vpop.permute.xlu0 %1870
    %1872 = vrot.lane.b32.xlu0 %v1852, 65
    %v1873 = vpop.permute.xlu0 %1872
    %1874 = vrot.lane.b32.xlu0 %v1853, 65
    %v1875 = vpop.permute.xlu0 %1874
    %1876 = vrot.lane.b32.xlu0 %v1854, 65
    %v1877 = vpop.permute.xlu0 %1876
    %1878 = vrot.lane.b32.xlu0 %v1855, 65
    %v1879 = vpop.permute.xlu0 %1878
    %v1880 = vrot.slane %v1865, 4
    %v1881 = vrot.slane %v1867, 4
    %v1882 = vrot.slane %v1869, 4
    %v1883 = vrot.slane %v1871, 4
    %v1884 = vrot.slane %v1873, 4
    %v1885 = vrot.slane %v1875, 4
    %v1886 = vrot.slane %v1877, 4
    %v1887 = vrot.slane %v1879, 4
    %v1888 = vsel %vm714, %v1880, %v1881
    %vm1889 = vcmask 531456
    %v1890 = vsel %vm1889, %v1865, %v1888
    %v1891 = vsel %vm714, %v1881, %v1882
    %v1892 = vsel %vm1889, %v1867, %v1891
    %v1893 = vsel %vm714, %v1882, %v1883
    %v1894 = vsel %vm1889, %v1869, %v1893
    %v1895 = vsel %vm714, %v1884, %v1885
    %v1896 = vsel %vm1889, %v1873, %v1895
    %v1897 = vsel %vm714, %v1885, %v1886
    %v1898 = vsel %vm1889, %v1875, %v1897
    %v1899 = vsel %vm714, %v1886, %v1887
    %v1900 = vsel %vm1889, %v1877, %v1899
    %1909 = vst [vmem:[#allocation3 + $0x3f0] sm:$0xff] %v1890
    %1910 = vst [vmem:[#allocation3 + $0x3f8] sm:$0xff] %v1892
    %1911 = vst [vmem:[#allocation3 + $0x400] sm:$0xff] %v1894
    %1912 = vst.msk [vmem:[#allocation3 + $0x408] sm:$0xf] %vm668, %v1871
    %1913 = vst [vmem:[#allocation3 + $0x40c] sm:$0xff] %v1896
    %1914 = vst [vmem:[#allocation3 + $0x414] sm:$0xff] %v1898
    %1915 = vst [vmem:[#allocation3 + $0x41c] sm:$0xff] %v1900
    %1916 = vst.msk [vmem:[#allocation3 + $0x424] sm:$0xf] %vm668, %v1879
    %v1917 = vld [vmem:[#allocation2] sm:$0xff]
    %v1918 = vld [vmem:[#allocation2 + $0x8] sm:$0xff]
    %v1919 = vld [vmem:[#allocation2 + $0x10] sm:$0xff]
    %v1920 = vld [vmem:[#allocation2 + $0x18] sm:$0xf]
    %v1921 = vld [vmem:[#allocation2 + $0x1c] sm:$0xff]
    %v1922 = vld [vmem:[#allocation2 + $0x24] sm:$0xff]
    %v1923 = vld [vmem:[#allocation2 + $0x2c] sm:$0xff]
    %v1924 = vld [vmem:[#allocation2 + $0x34] sm:$0xf]
    %1933 = vrot.lane.b32.xlu0 %v1917, 64
    %v1934 = vpop.permute.xlu0 %1933
    %1935 = vrot.lane.b32.xlu0 %v1918, 64
    %v1936 = vpop.permute.xlu0 %1935
    %1937 = vrot.lane.b32.xlu0 %v1919, 64
    %v1938 = vpop.permute.xlu0 %1937
    %1939 = vrot.lane.b32.xlu0 %v1920, 64
    %v1940 = vpop.permute.xlu0 %1939
    %1941 = vrot.lane.b32.xlu0 %v1921, 64
    %v1942 = vpop.permute.xlu0 %1941
    %1943 = vrot.lane.b32.xlu0 %v1922, 64
    %v1944 = vpop.permute.xlu0 %1943
    %1945 = vrot.lane.b32.xlu0 %v1923, 64
    %v1946 = vpop.permute.xlu0 %1945
    %1947 = vrot.lane.b32.xlu0 %v1924, 64
    %v1948 = vpop.permute.xlu0 %1947
    %v1949 = vrot.slane %v1934, 4
    %v1950 = vrot.slane %v1936, 4
    %v1951 = vrot.slane %v1938, 4
    %v1952 = vrot.slane %v1940, 4
    %v1953 = vrot.slane %v1942, 4
    %v1954 = vrot.slane %v1944, 4
    %v1955 = vrot.slane %v1946, 4
    %v1956 = vrot.slane %v1948, 4
    %v1957 = vsel %vm714, %v1949, %v1950
    %vm1958 = vcmask 523264
    %v1959 = vsel %vm1958, %v1934, %v1957
    %v1960 = vsel %vm714, %v1950, %v1951
    %v1961 = vsel %vm1958, %v1936, %v1960
    %v1962 = vsel %vm714, %v1951, %v1952
    %v1963 = vsel %vm1958, %v1938, %v1962
    %v1964 = vsel %vm714, %v1953, %v1954
    %v1965 = vsel %vm1958, %v1942, %v1964
    %v1966 = vsel %vm714, %v1954, %v1955
    %v1967 = vsel %vm1958, %v1944, %v1966
    %v1968 = vsel %vm714, %v1955, %v1956
    %v1969 = vsel %vm1958, %v1946, %v1968
    %1978 = vst [vmem:[#allocation3 + $0x428] sm:$0xff] %v1959
    %1979 = vst [vmem:[#allocation3 + $0x430] sm:$0xff] %v1961
    %1980 = vst [vmem:[#allocation3 + $0x438] sm:$0xff] %v1963
    %1981 = vst.msk [vmem:[#allocation3 + $0x440] sm:$0xf] %vm668, %v1940
    %1982 = vst [vmem:[#allocation3 + $0x444] sm:$0xff] %v1965
    %1983 = vst [vmem:[#allocation3 + $0x44c] sm:$0xff] %v1967
    %1984 = vst [vmem:[#allocation3 + $0x454] sm:$0xff] %v1969
    %1985 = vst.msk [vmem:[#allocation3 + $0x45c] sm:$0xf] %vm668, %v1948
    %v1986 = vld [vmem:[#allocation2] sm:$0xff]
    %v1987 = vld [vmem:[#allocation2 + $0x8] sm:$0xff]
    %v1988 = vld [vmem:[#allocation2 + $0x10] sm:$0xff]
    %v1989 = vld [vmem:[#allocation2 + $0x18] sm:$0xf]
    %v1990 = vld [vmem:[#allocation2 + $0x1c] sm:$0xff]
    %v1991 = vld [vmem:[#allocation2 + $0x24] sm:$0xff]
    %v1992 = vld [vmem:[#allocation2 + $0x2c] sm:$0xff]
    %v1993 = vld [vmem:[#allocation2 + $0x34] sm:$0xf]
    %2002 = vrot.lane.b32.xlu0 %v1986, 48
    %v2003 = vpop.permute.xlu0 %2002
    %2004 = vrot.lane.b32.xlu0 %v1987, 48
    %v2005 = vpop.permute.xlu0 %2004
    %2006 = vrot.lane.b32.xlu0 %v1988, 48
    %v2007 = vpop.permute.xlu0 %2006
    %2008 = vrot.lane.b32.xlu0 %v1989, 48
    %v2009 = vpop.permute.xlu0 %2008
    %2010 = vrot.lane.b32.xlu0 %v1990, 48
    %v2011 = vpop.permute.xlu0 %2010
    %2012 = vrot.lane.b32.xlu0 %v1991, 48
    %v2013 = vpop.permute.xlu0 %2012
    %2014 = vrot.lane.b32.xlu0 %v1992, 48
    %v2015 = vpop.permute.xlu0 %2014
    %2016 = vrot.lane.b32.xlu0 %v1993, 48
    %v2017 = vpop.permute.xlu0 %2016
    %v2018 = vrot.slane %v2003, 4
    %v2019 = vrot.slane %v2005, 4
    %v2020 = vrot.slane %v2007, 4
    %v2021 = vrot.slane %v2009, 4
    %v2022 = vrot.slane %v2011, 4
    %v2023 = vrot.slane %v2013, 4
    %v2024 = vrot.slane %v2015, 4
    %v2025 = vrot.slane %v2017, 4
    %v2026 = vsel %vm714, %v2018, %v2019
    %vm2027 = vcmask 392192
    %v2028 = vsel %vm2027, %v2003, %v2026
    %v2029 = vsel %vm714, %v2019, %v2020
    %v2030 = vsel %vm2027, %v2005, %v2029
    %v2031 = vsel %vm714, %v2020, %v2021
    %v2032 = vsel %vm2027, %v2007, %v2031
    %v2033 = vsel %vm714, %v2022, %v2023
    %v2034 = vsel %vm2027, %v2011, %v2033
    %v2035 = vsel %vm714, %v2023, %v2024
    %v2036 = vsel %vm2027, %v2013, %v2035
    %v2037 = vsel %vm714, %v2024, %v2025
    %v2038 = vsel %vm2027, %v2015, %v2037
    %2047 = vst [vmem:[#allocation3 + $0x460] sm:$0xff] %v2028
    %2048 = vst [vmem:[#allocation3 + $0x468] sm:$0xff] %v2030
    %2049 = vst [vmem:[#allocation3 + $0x470] sm:$0xff] %v2032
    %2050 = vst.msk [vmem:[#allocation3 + $0x478] sm:$0xf] %vm668, %v2009
    %2051 = vst [vmem:[#allocation3 + $0x47c] sm:$0xff] %v2034
    %2052 = vst [vmem:[#allocation3 + $0x484] sm:$0xff] %v2036
    %2053 = vst [vmem:[#allocation3 + $0x48c] sm:$0xff] %v2038
    %2054 = vst.msk [vmem:[#allocation3 + $0x494] sm:$0xf] %vm668, %v2017
    %v2055 = vld [vmem:[#allocation2] sm:$0xff]
    %v2056 = vld [vmem:[#allocation2 + $0x8] sm:$0xff]
    %v2057 = vld [vmem:[#allocation2 + $0x10] sm:$0xff]
    %v2058 = vld [vmem:[#allocation2 + $0x18] sm:$0xf]
    %v2059 = vld [vmem:[#allocation2 + $0x1c] sm:$0xff]
    %v2060 = vld [vmem:[#allocation2 + $0x24] sm:$0xff]
    %v2061 = vld [vmem:[#allocation2 + $0x2c] sm:$0xff]
    %v2062 = vld [vmem:[#allocation2 + $0x34] sm:$0xf]
    %2071 = vrot.lane.b32.xlu0 %v2055, 47
    %v2072 = vpop.permute.xlu0 %2071
    %2073 = vrot.lane.b32.xlu0 %v2056, 47
    %v2074 = vpop.permute.xlu0 %2073
    %2075 = vrot.lane.b32.xlu0 %v2057, 47
    %v2076 = vpop.permute.xlu0 %2075
    %2077 = vrot.lane.b32.xlu0 %v2058, 47
    %v2078 = vpop.permute.xlu0 %2077
    %2079 = vrot.lane.b32.xlu0 %v2059, 47
    %v2080 = vpop.permute.xlu0 %2079
    %2081 = vrot.lane.b32.xlu0 %v2060, 47
    %v2082 = vpop.permute.xlu0 %2081
    %2083 = vrot.lane.b32.xlu0 %v2061, 47
    %v2084 = vpop.permute.xlu0 %2083
    %2085 = vrot.lane.b32.xlu0 %v2062, 47
    %v2086 = vpop.permute.xlu0 %2085
    %v2087 = vrot.slane %v2072, 4
    %v2088 = vrot.slane %v2074, 4
    %v2089 = vrot.slane %v2076, 4
    %v2090 = vrot.slane %v2078, 4
    %v2091 = vrot.slane %v2080, 4
    %v2092 = vrot.slane %v2082, 4
    %v2093 = vrot.slane %v2084, 4
    %v2094 = vrot.slane %v2086, 4
    %v2095 = vsel %vm714, %v2087, %v2088
    %vm2096 = vcmask 384000
    %v2097 = vsel %vm2096, %v2072, %v2095
    %v2098 = vsel %vm714, %v2088, %v2089
    %v2099 = vsel %vm2096, %v2074, %v2098
    %v2100 = vsel %vm714, %v2089, %v2090
    %v2101 = vsel %vm2096, %v2076, %v2100
    %v2102 = vsel %vm714, %v2091, %v2092
    %v2103 = vsel %vm2096, %v2080, %v2102
    %v2104 = vsel %vm714, %v2092, %v2093
    %v2105 = vsel %vm2096, %v2082, %v2104
    %v2106 = vsel %vm714, %v2093, %v2094
    %v2107 = vsel %vm2096, %v2084, %v2106
    %2116 = vst [vmem:[#allocation3 + $0x498] sm:$0xff] %v2097
    %2117 = vst [vmem:[#allocation3 + $0x4a0] sm:$0xff] %v2099
    %2118 = vst [vmem:[#allocation3 + $0x4a8] sm:$0xff] %v2101
    %2119 = vst.msk [vmem:[#allocation3 + $0x4b0] sm:$0xf] %vm668, %v2078
    %2120 = vst [vmem:[#allocation3 + $0x4b4] sm:$0xff] %v2103
    %2121 = vst [vmem:[#allocation3 + $0x4bc] sm:$0xff] %v2105
    %2122 = vst [vmem:[#allocation3 + $0x4c4] sm:$0xff] %v2107
    %2123 = vst.msk [vmem:[#allocation3 + $0x4cc] sm:$0xf] %vm668, %v2086
    %v2124 = vld [vmem:[#allocation2] sm:$0xff]
    %v2125 = vld [vmem:[#allocation2 + $0x8] sm:$0xff]
    %v2126 = vld [vmem:[#allocation2 + $0x10] sm:$0xff]
    %v2127 = vld [vmem:[#allocation2 + $0x18] sm:$0xf]
    %v2128 = vld [vmem:[#allocation2 + $0x1c] sm:$0xff]
    %v2129 = vld [vmem:[#allocation2 + $0x24] sm:$0xff]
    %v2130 = vld [vmem:[#allocation2 + $0x2c] sm:$0xff]
    %v2131 = vld [vmem:[#allocation2 + $0x34] sm:$0xf]
    %2140 = vrot.lane.b32.xlu0 %v2124, 46
    %v2141 = vpop.permute.xlu0 %2140
    %2142 = vrot.lane.b32.xlu0 %v2125, 46
    %v2143 = vpop.permute.xlu0 %2142
    %2144 = vrot.lane.b32.xlu0 %v2126, 46
    %v2145 = vpop.permute.xlu0 %2144
    %2146 = vrot.lane.b32.xlu0 %v2127, 46
    %v2147 = vpop.permute.xlu0 %2146
    %2148 = vrot.lane.b32.xlu0 %v2128, 46
    %v2149 = vpop.permute.xlu0 %2148
    %2150 = vrot.lane.b32.xlu0 %v2129, 46
    %v2151 = vpop.permute.xlu0 %2150
    %2152 = vrot.lane.b32.xlu0 %v2130, 46
    %v2153 = vpop.permute.xlu0 %2152
    %2154 = vrot.lane.b32.xlu0 %v2131, 46
    %v2155 = vpop.permute.xlu0 %2154
    %v2156 = vrot.slane %v2141, 4
    %v2157 = vrot.slane %v2143, 4
    %v2158 = vrot.slane %v2145, 4
    %v2159 = vrot.slane %v2147, 4
    %v2160 = vrot.slane %v2149, 4
    %v2161 = vrot.slane %v2151, 4
    %v2162 = vrot.slane %v2153, 4
    %v2163 = vrot.slane %v2155, 4
    %v2164 = vsel %vm714, %v2156, %v2157
    %vm2165 = vcmask 375808
    %v2166 = vsel %vm2165, %v2141, %v2164
    %v2167 = vsel %vm714, %v2157, %v2158
    %v2168 = vsel %vm2165, %v2143, %v2167
    %v2169 = vsel %vm714, %v2158, %v2159
    %v2170 = vsel %vm2165, %v2145, %v2169
    %v2171 = vsel %vm714, %v2160, %v2161
    %v2172 = vsel %vm2165, %v2149, %v2171
    %v2173 = vsel %vm714, %v2161, %v2162
    %v2174 = vsel %vm2165, %v2151, %v2173
    %v2175 = vsel %vm714, %v2162, %v2163
    %v2176 = vsel %vm2165, %v2153, %v2175
    %2185 = vst [vmem:[#allocation3 + $0x4d0] sm:$0xff] %v2166
    %2186 = vst [vmem:[#allocation3 + $0x4d8] sm:$0xff] %v2168
    %2187 = vst [vmem:[#allocation3 + $0x4e0] sm:$0xff] %v2170
    %2188 = vst.msk [vmem:[#allocation3 + $0x4e8] sm:$0xf] %vm668, %v2147
    %2189 = vst [vmem:[#allocation3 + $0x4ec] sm:$0xff] %v2172
    %2190 = vst [vmem:[#allocation3 + $0x4f4] sm:$0xff] %v2174
    %2191 = vst [vmem:[#allocation3 + $0x4fc] sm:$0xff] %v2176
    %2192 = vst.msk [vmem:[#allocation3 + $0x504] sm:$0xf] %vm668, %v2155
    %v2193 = vld [vmem:[#allocation2] sm:$0xff]
    %v2194 = vld [vmem:[#allocation2 + $0x8] sm:$0xff]
    %v2195 = vld [vmem:[#allocation2 + $0x10] sm:$0xff]
    %v2196 = vld [vmem:[#allocation2 + $0x18] sm:$0xf]
    %v2197 = vld [vmem:[#allocation2 + $0x1c] sm:$0xff]
    %v2198 = vld [vmem:[#allocation2 + $0x24] sm:$0xff]
    %v2199 = vld [vmem:[#allocation2 + $0x2c] sm:$0xff]
    %v2200 = vld [vmem:[#allocation2 + $0x34] sm:$0xf]
    %2209 = vrot.lane.b32.xlu0 %v2193, 45
    %v2210 = vpop.permute.xlu0 %2209
    %2211 = vrot.lane.b32.xlu0 %v2194, 45
    %v2212 = vpop.permute.xlu0 %2211
    %2213 = vrot.lane.b32.xlu0 %v2195, 45
    %v2214 = vpop.permute.xlu0 %2213
    %2215 = vrot.lane.b32.xlu0 %v2196, 45
    %v2216 = vpop.permute.xlu0 %2215
    %2217 = vrot.lane.b32.xlu0 %v2197, 45
    %v2218 = vpop.permute.xlu0 %2217
    %2219 = vrot.lane.b32.xlu0 %v2198, 45
    %v2220 = vpop.permute.xlu0 %2219
    %2221 = vrot.lane.b32.xlu0 %v2199, 45
    %v2222 = vpop.permute.xlu0 %2221
    %2223 = vrot.lane.b32.xlu0 %v2200, 45
    %v2224 = vpop.permute.xlu0 %2223
    %v2225 = vrot.slane %v2210, 4
    %v2226 = vrot.slane %v2212, 4
    %v2227 = vrot.slane %v2214, 4
    %v2228 = vrot.slane %v2216, 4
    %v2229 = vrot.slane %v2218, 4
    %v2230 = vrot.slane %v2220, 4
    %v2231 = vrot.slane %v2222, 4
    %v2232 = vrot.slane %v2224, 4
    %v2233 = vsel %vm714, %v2225, %v2226
    %vm2234 = vcmask 367616
    %v2235 = vsel %vm2234, %v2210, %v2233
    %v2236 = vsel %vm714, %v2226, %v2227
    %v2237 = vsel %vm2234, %v2212, %v2236
    %v2238 = vsel %vm714, %v2227, %v2228
    %v2239 = vsel %vm2234, %v2214, %v2238
    %v2240 = vsel %vm714, %v2229, %v2230
    %v2241 = vsel %vm2234, %v2218, %v2240
    %v2242 = vsel %vm714, %v2230, %v2231
    %v2243 = vsel %vm2234, %v2220, %v2242
    %v2244 = vsel %vm714, %v2231, %v2232
    %v2245 = vsel %vm2234, %v2222, %v2244
    %2254 = vst [vmem:[#allocation3 + $0x508] sm:$0xff] %v2235
    %2255 = vst [vmem:[#allocation3 + $0x510] sm:$0xff] %v2237
    %2256 = vst [vmem:[#allocation3 + $0x518] sm:$0xff] %v2239
    %2257 = vst.msk [vmem:[#allocation3 + $0x520] sm:$0xf] %vm668, %v2216
    %2258 = vst [vmem:[#allocation3 + $0x524] sm:$0xff] %v2241
    %2259 = vst [vmem:[#allocation3 + $0x52c] sm:$0xff] %v2243
    %2260 = vst [vmem:[#allocation3 + $0x534] sm:$0xff] %v2245
    %2261 = vst.msk [vmem:[#allocation3 + $0x53c] sm:$0xf] %vm668, %v2224
    %v2262 = vld [vmem:[#allocation2] sm:$0xff]
    %v2263 = vld [vmem:[#allocation2 + $0x8] sm:$0xff]
    %v2264 = vld [vmem:[#allocation2 + $0x10] sm:$0xff]
    %v2265 = vld [vmem:[#allocation2 + $0x18] sm:$0xf]
    %v2266 = vld [vmem:[#allocation2 + $0x1c] sm:$0xff]
    %v2267 = vld [vmem:[#allocation2 + $0x24] sm:$0xff]
    %v2268 = vld [vmem:[#allocation2 + $0x2c] sm:$0xff]
    %v2269 = vld [vmem:[#allocation2 + $0x34] sm:$0xf]
    %2278 = vrot.lane.b32.xlu0 %v2262, 44
    %v2279 = vpop.permute.xlu0 %2278
    %2280 = vrot.lane.b32.xlu0 %v2263, 44
    %v2281 = vpop.permute.xlu0 %2280
    %2282 = vrot.lane.b32.xlu0 %v2264, 44
    %v2283 = vpop.permute.xlu0 %2282
    %2284 = vrot.lane.b32.xlu0 %v2265, 44
    %v2285 = vpop.permute.xlu0 %2284
    %2286 = vrot.lane.b32.xlu0 %v2266, 44
    %v2287 = vpop.permute.xlu0 %2286
    %2288 = vrot.lane.b32.xlu0 %v2267, 44
    %v2289 = vpop.permute.xlu0 %2288
    %2290 = vrot.lane.b32.xlu0 %v2268, 44
    %v2291 = vpop.permute.xlu0 %2290
    %2292 = vrot.lane.b32.xlu0 %v2269, 44
    %v2293 = vpop.permute.xlu0 %2292
    %v2294 = vrot.slane %v2279, 4
    %v2295 = vrot.slane %v2281, 4
    %v2296 = vrot.slane %v2283, 4
    %v2297 = vrot.slane %v2285, 4
    %v2298 = vrot.slane %v2287, 4
    %v2299 = vrot.slane %v2289, 4
    %v2300 = vrot.slane %v2291, 4
    %v2301 = vrot.slane %v2293, 4
    %v2302 = vsel %vm714, %v2294, %v2295
    %vm2303 = vcmask 359424
    %v2304 = vsel %vm2303, %v2279, %v2302
    %v2305 = vsel %vm714, %v2295, %v2296
    %v2306 = vsel %vm2303, %v2281, %v2305
    %v2307 = vsel %vm714, %v2296, %v2297
    %v2308 = vsel %vm2303, %v2283, %v2307
    %v2309 = vsel %vm714, %v2298, %v2299
    %v2310 = vsel %vm2303, %v2287, %v2309
    %v2311 = vsel %vm714, %v2299, %v2300
    %v2312 = vsel %vm2303, %v2289, %v2311
    %v2313 = vsel %vm714, %v2300, %v2301
    %v2314 = vsel %vm2303, %v2291, %v2313
    %2323 = vst [vmem:[#allocation3 + $0x540] sm:$0xff] %v2304
    %2324 = vst [vmem:[#allocation3 + $0x548] sm:$0xff] %v2306
    %2325 = vst [vmem:[#allocation3 + $0x550] sm:$0xff] %v2308
    %2326 = vst.msk [vmem:[#allocation3 + $0x558] sm:$0xf] %vm668, %v2285
    %2327 = vst [vmem:[#allocation3 + $0x55c] sm:$0xff] %v2310
    %2328 = vst [vmem:[#allocation3 + $0x564] sm:$0xff] %v2312
    %2329 = vst [vmem:[#allocation3 + $0x56c] sm:$0xff] %v2314
    %2330 = vst.msk [vmem:[#allocation3 + $0x574] sm:$0xf] %vm668, %v2293
    %v2331 = vld [vmem:[%s4] sm:$0xff]
    %v2332 = vld [vmem:[%s4 + $0x8] sm:$0xff]
    %v2333 = vld [vmem:[#allocation3] sm:$0xff]
    %v2334 = vld [vmem:[#allocation3 + $0x8] sm:$0xff]
    %v2335 = vld [vmem:[#allocation3 + $0x10] sm:$0xff]
    %v2336 = vld [vmem:[#allocation3 + $0x18] sm:$0xf]
    %v2337 = vld [vmem:[#allocation3 + $0x1c] sm:$0xff]
    %v2338 = vld [vmem:[#allocation3 + $0x24] sm:$0xff]
    %v2339 = vld [vmem:[#allocation3 + $0x2c] sm:$0xff]
    %v2340 = vld [vmem:[#allocation3 + $0x34] sm:$0xf]
    %v2341 = vld [vmem:[#allocation3 + $0x38] sm:$0xff]
    %v2342 = vld [vmem:[#allocation3 + $0x40] sm:$0xff]
    %v2343 = vld [vmem:[#allocation3 + $0x48] sm:$0xff]
    %v2344 = vld [vmem:[#allocation3 + $0x50] sm:$0xf]
    %v2345 = vld [vmem:[#allocation3 + $0x54] sm:$0xff]
    %v2346 = vld [vmem:[#allocation3 + $0x5c] sm:$0xff]
    %v2347 = vld [vmem:[#allocation3 + $0x64] sm:$0xff]
    %v2348 = vld [vmem:[#allocation3 + $0x6c] sm:$0xf]
    %v2349 = vld [vmem:[#allocation3 + $0x70] sm:$0xff]
    %v2350 = vld [vmem:[#allocation3 + $0x78] sm:$0xff]
    %v2351 = vld [vmem:[#allocation3 + $0x80] sm:$0xff]
    %v2352 = vld [vmem:[#allocation3 + $0x88] sm:$0xf]
    %v2353 = vld [vmem:[#allocation3 + $0x8c] sm:$0xff]
    %v2354 = vld [vmem:[#allocation3 + $0x94] sm:$0xff]
    %v2355 = vld [vmem:[#allocation3 + $0x9c] sm:$0xff]
    %v2356 = vld [vmem:[#allocation3 + $0xa4] sm:$0xf]
    %v2357 = vld [vmem:[#allocation3 + $0xa8] sm:$0xff]
    %v2358 = vld [vmem:[#allocation3 + $0xb0] sm:$0xff]
    %v2359 = vld [vmem:[#allocation3 + $0xb8] sm:$0xff]
    %v2360 = vld [vmem:[#allocation3 + $0xc0] sm:$0xf]
    %v2361 = vld [vmem:[#allocation3 + $0xc4] sm:$0xff]
    %v2362 = vld [vmem:[#allocation3 + $0xcc] sm:$0xff]
    %v2363 = vld [vmem:[#allocation3 + $0xd4] sm:$0xff]
    %v2364 = vld [vmem:[#allocation3 + $0xdc] sm:$0xf]
    %v2365 = vld [vmem:[#allocation3 + $0xe0] sm:$0xff]
    %v2366 = vld [vmem:[#allocation3 + $0xe8] sm:$0xff]
    %v2367 = vld [vmem:[#allocation3 + $0xf0] sm:$0xff]
    %v2368 = vld [vmem:[#allocation3 + $0xf8] sm:$0xf]
    %v2369 = vld [vmem:[#allocation3 + $0xfc] sm:$0xff]
    %v2370 = vld [vmem:[#allocation3 + $0x104] sm:$0xff]
    %v2371 = vld [vmem:[#allocation3 + $0x10c] sm:$0xff]
    %v2372 = vld [vmem:[#allocation3 + $0x114] sm:$0xf]
    %v2373 = vld [vmem:[#allocation3 + $0x118] sm:$0xff]
    %v2374 = vld [vmem:[#allocation3 + $0x120] sm:$0xff]
    %v2375 = vld [vmem:[#allocation3 + $0x128] sm:$0xff]
    %v2376 = vld [vmem:[#allocation3 + $0x130] sm:$0xf]
    %v2377 = vld [vmem:[#allocation3 + $0x134] sm:$0xff]
    %v2378 = vld [vmem:[#allocation3 + $0x13c] sm:$0xff]
    %v2379 = vld [vmem:[#allocation3 + $0x144] sm:$0xff]
    %v2380 = vld [vmem:[#allocation3 + $0x14c] sm:$0xf]
    %v2381 = vld [vmem:[#allocation3 + $0x150] sm:$0xff]
    %v2382 = vld [vmem:[#allocation3 + $0x158] sm:$0xff]
    %v2383 = vld [vmem:[#allocation3 + $0x160] sm:$0xff]
    %v2384 = vld [vmem:[#allocation3 + $0x168] sm:$0xf]
    %v2385 = vld [vmem:[#allocation3 + $0x16c] sm:$0xff]
    %v2386 = vld [vmem:[#allocation3 + $0x174] sm:$0xff]
    %v2387 = vld [vmem:[#allocation3 + $0x17c] sm:$0xff]
    %v2388 = vld [vmem:[#allocation3 + $0x184] sm:$0xf]
    %v2389 = vld [vmem:[#allocation3 + $0x188] sm:$0xff]
    %v2390 = vld [vmem:[#allocation3 + $0x190] sm:$0xff]
    %v2391 = vld [vmem:[#allocation3 + $0x198] sm:$0xff]
    %v2392 = vld [vmem:[#allocation3 + $0x1a0] sm:$0xf]
    %v2393 = vld [vmem:[#allocation3 + $0x1a4] sm:$0xff]
    %v2394 = vld [vmem:[#allocation3 + $0x1ac] sm:$0xff]
    %v2395 = vld [vmem:[#allocation3 + $0x1b4] sm:$0xff]
    %v2396 = vld [vmem:[#allocation3 + $0x1bc] sm:$0xf]
    %v2397 = vld [vmem:[#allocation3 + $0x1c0] sm:$0xff]
    %v2398 = vld [vmem:[#allocation3 + $0x1c8] sm:$0xff]
    %v2399 = vld [vmem:[#allocation3 + $0x1d0] sm:$0xff]
    %v2400 = vld [vmem:[#allocation3 + $0x1d8] sm:$0xf]
    %v2401 = vld [vmem:[#allocation3 + $0x1dc] sm:$0xff]
    %v2402 = vld [vmem:[#allocation3 + $0x1e4] sm:$0xff]
    %v2403 = vld [vmem:[#allocation3 + $0x1ec] sm:$0xff]
    %v2404 = vld [vmem:[#allocation3 + $0x1f4] sm:$0xf]
    %v2405 = vld [vmem:[#allocation3 + $0x1f8] sm:$0xff]
    %v2406 = vld [vmem:[#allocation3 + $0x200] sm:$0xff]
    %v2407 = vld [vmem:[#allocation3 + $0x208] sm:$0xff]
    %v2408 = vld [vmem:[#allocation3 + $0x210] sm:$0xf]
    %v2409 = vld [vmem:[#allocation3 + $0x214] sm:$0xff]
    %v2410 = vld [vmem:[#allocation3 + $0x21c] sm:$0xff]
    %v2411 = vld [vmem:[#allocation3 + $0x224] sm:$0xff]
    %v2412 = vld [vmem:[#allocation3 + $0x22c] sm:$0xf]
    %v2413 = vld [vmem:[#allocation3 + $0x230] sm:$0xff]
    %v2414 = vld [vmem:[#allocation3 + $0x238] sm:$0xff]
    %v2415 = vld [vmem:[#allocation3 + $0x240] sm:$0xff]
    %v2416 = vld [vmem:[#allocation3 + $0x248] sm:$0xf]
    %v2417 = vld [vmem:[#allocation3 + $0x24c] sm:$0xff]
    %v2418 = vld [vmem:[#allocation3 + $0x254] sm:$0xff]
    %v2419 = vld [vmem:[#allocation3 + $0x25c] sm:$0xff]
    %v2420 = vld [vmem:[#allocation3 + $0x264] sm:$0xf]
    %v2421 = vld [vmem:[#allocation3 + $0x268] sm:$0xff]
    %v2422 = vld [vmem:[#allocation3 + $0x270] sm:$0xff]
    %v2423 = vld [vmem:[#allocation3 + $0x278] sm:$0xff]
    %v2424 = vld [vmem:[#allocation3 + $0x280] sm:$0xf]
    %v2425 = vld [vmem:[#allocation3 + $0x284] sm:$0xff]
    %v2426 = vld [vmem:[#allocation3 + $0x28c] sm:$0xff]
    %v2427 = vld [vmem:[#allocation3 + $0x294] sm:$0xff]
    %v2428 = vld [vmem:[#allocation3 + $0x29c] sm:$0xf]
    %v2429 = vld [vmem:[#allocation3 + $0x2a0] sm:$0xff]
    %v2430 = vld [vmem:[#allocation3 + $0x2a8] sm:$0xff]
    %v2431 = vld [vmem:[#allocation3 + $0x2b0] sm:$0xff]
    %v2432 = vld [vmem:[#allocation3 + $0x2b8] sm:$0xf]
    %v2433 = vld [vmem:[#allocation3 + $0x2bc] sm:$0xff]
    %v2434 = vld [vmem:[#allocation3 + $0x2c4] sm:$0xff]
    %v2435 = vld [vmem:[#allocation3 + $0x2cc] sm:$0xff]
    %v2436 = vld [vmem:[#allocation3 + $0x2d4] sm:$0xf]
    %v2437 = vld [vmem:[#allocation3 + $0x2d8] sm:$0xff]
    %v2438 = vld [vmem:[#allocation3 + $0x2e0] sm:$0xff]
    %v2439 = vld [vmem:[#allocation3 + $0x2e8] sm:$0xff]
    %v2440 = vld [vmem:[#allocation3 + $0x2f0] sm:$0xf]
    %v2441 = vld [vmem:[#allocation3 + $0x2f4] sm:$0xff]
    %v2442 = vld [vmem:[#allocation3 + $0x2fc] sm:$0xff]
    %v2443 = vld [vmem:[#allocation3 + $0x304] sm:$0xff]
    %v2444 = vld [vmem:[#allocation3 + $0x30c] sm:$0xf]
    %v2445 = vld [vmem:[#allocation3 + $0x310] sm:$0xff]
    %v2446 = vld [vmem:[#allocation3 + $0x318] sm:$0xff]
    %v2447 = vld [vmem:[#allocation3 + $0x320] sm:$0xff]
    %v2448 = vld [vmem:[#allocation3 + $0x328] sm:$0xf]
    %v2449 = vld [vmem:[#allocation3 + $0x32c] sm:$0xff]
    %v2450 = vld [vmem:[#allocation3 + $0x334] sm:$0xff]
    %v2451 = vld [vmem:[#allocation3 + $0x33c] sm:$0xff]
    %v2452 = vld [vmem:[#allocation3 + $0x344] sm:$0xf]
    %v2453 = vld [vmem:[#allocation3 + $0x348] sm:$0xff]
    %v2454 = vld [vmem:[#allocation3 + $0x350] sm:$0xff]
    %v2455 = vld [vmem:[#allocation3 + $0x358] sm:$0xff]
    %v2456 = vld [vmem:[#allocation3 + $0x360] sm:$0xf]
    %v2457 = vld [vmem:[#allocation3 + $0x364] sm:$0xff]
    %v2458 = vld [vmem:[#allocation3 + $0x36c] sm:$0xff]
    %v2459 = vld [vmem:[#allocation3 + $0x374] sm:$0xff]
    %v2460 = vld [vmem:[#allocation3 + $0x37c] sm:$0xf]
    %v2461 = vld [vmem:[#allocation3 + $0x380] sm:$0xff]
    %v2462 = vld [vmem:[#allocation3 + $0x388] sm:$0xff]
    %v2463 = vld [vmem:[#allocation3 + $0x390] sm:$0xff]
    %v2464 = vld [vmem:[#allocation3 + $0x398] sm:$0xf]
    %v2465 = vld [vmem:[#allocation3 + $0x39c] sm:$0xff]
    %v2466 = vld [vmem:[#allocation3 + $0x3a4] sm:$0xff]
    %v2467 = vld [vmem:[#allocation3 + $0x3ac] sm:$0xff]
    %v2468 = vld [vmem:[#allocation3 + $0x3b4] sm:$0xf]
    %v2469 = vld [vmem:[#allocation3 + $0x3b8] sm:$0xff]
    %v2470 = vld [vmem:[#allocation3 + $0x3c0] sm:$0xff]
    %v2471 = vld [vmem:[#allocation3 + $0x3c8] sm:$0xff]
    %v2472 = vld [vmem:[#allocation3 + $0x3d0] sm:$0xf]
    %v2473 = vld [vmem:[#allocation3 + $0x3d4] sm:$0xff]
    %v2474 = vld [vmem:[#allocation3 + $0x3dc] sm:$0xff]
    %v2475 = vld [vmem:[#allocation3 + $0x3e4] sm:$0xff]
    %v2476 = vld [vmem:[#allocation3 + $0x3ec] sm:$0xf]
    %v2477 = vld [vmem:[#allocation3 + $0x3f0] sm:$0xff]
    %v2478 = vld [vmem:[#allocation3 + $0x3f8] sm:$0xff]
    %v2479 = vld [vmem:[#allocation3 + $0x400] sm:$0xff]
    %v2480 = vld [vmem:[#allocation3 + $0x408] sm:$0xf]
    %v2481 = vld [vmem:[#allocation3 + $0x40c] sm:$0xff]
    %v2482 = vld [vmem:[#allocation3 + $0x414] sm:$0xff]
    %v2483 = vld [vmem:[#allocation3 + $0x41c] sm:$0xff]
    %v2484 = vld [vmem:[#allocation3 + $0x424] sm:$0xf]
    %v2485 = vld [vmem:[#allocation3 + $0x428] sm:$0xff]
    %v2486 = vld [vmem:[#allocation3 + $0x430] sm:$0xff]
    %v2487 = vld [vmem:[#allocation3 + $0x438] sm:$0xff]
    %v2488 = vld [vmem:[#allocation3 + $0x440] sm:$0xf]
    %v2489 = vld [vmem:[#allocation3 + $0x444] sm:$0xff]
    %v2490 = vld [vmem:[#allocation3 + $0x44c] sm:$0xff]
    %v2491 = vld [vmem:[#allocation3 + $0x454] sm:$0xff]
    %v2492 = vld [vmem:[#allocation3 + $0x45c] sm:$0xf]
    %v2493 = vld [vmem:[#allocation3 + $0x460] sm:$0xff]
    %v2494 = vld [vmem:[#allocation3 + $0x468] sm:$0xff]
    %v2495 = vld [vmem:[#allocation3 + $0x470] sm:$0xff]
    %v2496 = vld [vmem:[#allocation3 + $0x478] sm:$0xf]
    %v2497 = vld [vmem:[#allocation3 + $0x47c] sm:$0xff]
    %v2498 = vld [vmem:[#allocation3 + $0x484] sm:$0xff]
    %v2499 = vld [vmem:[#allocation3 + $0x48c] sm:$0xff]
    %v2500 = vld [vmem:[#allocation3 + $0x494] sm:$0xf]
    %v2501 = vld [vmem:[#allocation3 + $0x498] sm:$0xff]
    %v2502 = vld [vmem:[#allocation3 + $0x4a0] sm:$0xff]
    %v2503 = vld [vmem:[#allocation3 + $0x4a8] sm:$0xff]
    %v2504 = vld [vmem:[#allocation3 + $0x4b0] sm:$0xf]
    %v2505 = vld [vmem:[#allocation3 + $0x4b4] sm:$0xff]
    %v2506 = vld [vmem:[#allocation3 + $0x4bc] sm:$0xff]
    %v2507 = vld [vmem:[#allocation3 + $0x4c4] sm:$0xff]
    %v2508 = vld [vmem:[#allocation3 + $0x4cc] sm:$0xf]
    %v2509 = vld [vmem:[#allocation3 + $0x4d0] sm:$0xff]
    %v2510 = vld [vmem:[#allocation3 + $0x4d8] sm:$0xff]
    %v2511 = vld [vmem:[#allocation3 + $0x4e0] sm:$0xff]
    %v2512 = vld [vmem:[#allocation3 + $0x4e8] sm:$0xf]
    %v2513 = vld [vmem:[#allocation3 + $0x4ec] sm:$0xff]
    %v2514 = vld [vmem:[#allocation3 + $0x4f4] sm:$0xff]
    %v2515 = vld [vmem:[#allocation3 + $0x4fc] sm:$0xff]
    %v2516 = vld [vmem:[#allocation3 + $0x504] sm:$0xf]
    %v2517 = vld [vmem:[#allocation3 + $0x508] sm:$0xff]
    %v2518 = vld [vmem:[#allocation3 + $0x510] sm:$0xff]
    %v2519 = vld [vmem:[#allocation3 + $0x518] sm:$0xff]
    %v2520 = vld [vmem:[#allocation3 + $0x520] sm:$0xf]
    %v2521 = vld [vmem:[#allocation3 + $0x524] sm:$0xff]
    %v2522 = vld [vmem:[#allocation3 + $0x52c] sm:$0xff]
    %v2523 = vld [vmem:[#allocation3 + $0x534] sm:$0xff]
    %v2524 = vld [vmem:[#allocation3 + $0x53c] sm:$0xf]
    %v2525 = vld [vmem:[#allocation3 + $0x540] sm:$0xff]
    %v2526 = vld [vmem:[#allocation3 + $0x548] sm:$0xff]
    %v2527 = vld [vmem:[#allocation3 + $0x550] sm:$0xff]
    %v2528 = vld [vmem:[#allocation3 + $0x558] sm:$0xf]
    %v2529 = vld [vmem:[#allocation3 + $0x55c] sm:$0xff]
    %v2530 = vld [vmem:[#allocation3 + $0x564] sm:$0xff]
    %v2531 = vld [vmem:[#allocation3 + $0x56c] sm:$0xff]
    %v2532 = vld [vmem:[#allocation3 + $0x574] sm:$0xf]
    %v2533 = vld [vmem:[%s5] sm:$0xff]
    %2535 = vset.pattern.permute.xlu0 0
    %2536 = vperm.xlu0 %2535, %v2533
    %v2537 = vpop.permute.xlu0 %2536
    %v2541 = vunpack.c.l.b16 %v2331
    %v2542 = vunpack.c.h.b16 %v2331
    %v2543 = vunpack.c.l.b16 %v2332
    %v2544 = vunpack.c.h.b16 %v2332
    %v2545 = vpack.c.b16 %v2541, %v2541
    %v2546 = vpack.c.b16 %v2542, %v2542
    %v2547 = vpack.c.b16 %v2543, %v2543
    %v2548 = vpack.c.b16 %v2544, %v2544
    %v2752 = vunpack.c.l.b16 %v2333
    %v2753 = vunpack.c.h.b16 %v2333
    %v2754 = vunpack.c.l.b16 %v2334
    %v2755 = vunpack.c.h.b16 %v2334
    %v2756 = vunpack.c.l.b16 %v2335
    %v2757 = vunpack.c.h.b16 %v2335
    %v2758 = vunpack.c.l.b16 %v2336
    %v2759 = vunpack.c.l.b16 %v2337
    %v2760 = vunpack.c.h.b16 %v2337
    %v2761 = vunpack.c.l.b16 %v2338
    %v2762 = vunpack.c.h.b16 %v2338
    %v2763 = vunpack.c.l.b16 %v2339
    %v2764 = vunpack.c.h.b16 %v2339
    %v2765 = vunpack.c.l.b16 %v2340
    %v2766 = vunpack.c.l.b16 %v2341
    %v2767 = vunpack.c.h.b16 %v2341
    %v2768 = vunpack.c.l.b16 %v2342
    %v2769 = vunpack.c.h.b16 %v2342
    %v2770 = vunpack.c.l.b16 %v2343
    %v2771 = vunpack.c.h.b16 %v2343
    %v2772 = vunpack.c.l.b16 %v2344
    %v2773 = vunpack.c.l.b16 %v2345
    %v2774 = vunpack.c.h.b16 %v2345
    %v2775 = vunpack.c.l.b16 %v2346
    %v2776 = vunpack.c.h.b16 %v2346
    %v2777 = vunpack.c.l.b16 %v2347
    %v2778 = vunpack.c.h.b16 %v2347
    %v2779 = vunpack.c.l.b16 %v2348
    %v2780 = vunpack.c.l.b16 %v2349
    %v2781 = vunpack.c.h.b16 %v2349
    %v2782 = vunpack.c.l.b16 %v2350
    %v2783 = vunpack.c.h.b16 %v2350
    %v2784 = vunpack.c.l.b16 %v2351
    %v2785 = vunpack.c.h.b16 %v2351
    %v2786 = vunpack.c.l.b16 %v2352
    %v2787 = vunpack.c.l.b16 %v2353
    %v2788 = vunpack.c.h.b16 %v2353
    %v2789 = vunpack.c.l.b16 %v2354
    %v2790 = vunpack.c.h.b16 %v2354
    %v2791 = vunpack.c.l.b16 %v2355
    %v2792 = vunpack.c.h.b16 %v2355
    %v2793 = vunpack.c.l.b16 %v2356
    %v2794 = vunpack.c.l.b16 %v2357
    %v2795 = vunpack.c.h.b16 %v2357
    %v2796 = vunpack.c.l.b16 %v2358
    %v2797 = vunpack.c.h.b16 %v2358
    %v2798 = vunpack.c.l.b16 %v2359
    %v2799 = vunpack.c.h.b16 %v2359
    %v2800 = vunpack.c.l.b16 %v2360
    %v2801 = vunpack.c.l.b16 %v2361
    %v2802 = vunpack.c.h.b16 %v2361
    %v2803 = vunpack.c.l.b16 %v2362
    %v2804 = vunpack.c.h.b16 %v2362
    %v2805 = vunpack.c.l.b16 %v2363
    %v2806 = vunpack.c.h.b16 %v2363
    %v2807 = vunpack.c.l.b16 %v2364
    %v2808 = vunpack.c.l.b16 %v2365
    %v2809 = vunpack.c.h.b16 %v2365
    %v2810 = vunpack.c.l.b16 %v2366
    %v2811 = vunpack.c.h.b16 %v2366
    %v2812 = vunpack.c.l.b16 %v2367
    %v2813 = vunpack.c.h.b16 %v2367
    %v2814 = vunpack.c.l.b16 %v2368
    %v2815 = vunpack.c.l.b16 %v2369
    %v2816 = vunpack.c.h.b16 %v2369
    %v2817 = vunpack.c.l.b16 %v2370
    %v2818 = vunpack.c.h.b16 %v2370
    %v2819 = vunpack.c.l.b16 %v2371
    %v2820 = vunpack.c.h.b16 %v2371
    %v2821 = vunpack.c.l.b16 %v2372
    %v2822 = vunpack.c.l.b16 %v2373
    %v2823 = vunpack.c.h.b16 %v2373
    %v2824 = vunpack.c.l.b16 %v2374
    %v2825 = vunpack.c.h.b16 %v2374
    %v2826 = vunpack.c.l.b16 %v2375
    %v2827 = vunpack.c.h.b16 %v2375
    %v2828 = vunpack.c.l.b16 %v2376
    %v2829 = vunpack.c.l.b16 %v2377
    %v2830 = vunpack.c.h.b16 %v2377
    %v2831 = vunpack.c.l.b16 %v2378
    %v2832 = vunpack.c.h.b16 %v2378
    %v2833 = vunpack.c.l.b16 %v2379
    %v2834 = vunpack.c.h.b16 %v2379
    %v2835 = vunpack.c.l.b16 %v2380
    %v2836 = vunpack.c.l.b16 %v2381
    %v2837 = vunpack.c.h.b16 %v2381
    %v2838 = vunpack.c.l.b16 %v2382
    %v2839 = vunpack.c.h.b16 %v2382
    %v2840 = vunpack.c.l.b16 %v2383
    %v2841 = vunpack.c.h.b16 %v2383
    %v2842 = vunpack.c.l.b16 %v2384
    %v2843 = vunpack.c.l.b16 %v2385
    %v2844 = vunpack.c.h.b16 %v2385
    %v2845 = vunpack.c.l.b16 %v2386
    %v2846 = vunpack.c.h.b16 %v2386
    %v2847 = vunpack.c.l.b16 %v2387
    %v2848 = vunpack.c.h.b16 %v2387
    %v2849 = vunpack.c.l.b16 %v2388
    %v2850 = vunpack.c.l.b16 %v2389
    %v2851 = vunpack.c.h.b16 %v2389
    %v2852 = vunpack.c.l.b16 %v2390
    %v2853 = vunpack.c.h.b16 %v2390
    %v2854 = vunpack.c.l.b16 %v2391
    %v2855 = vunpack.c.h.b16 %v2391
    %v2856 = vunpack.c.l.b16 %v2392
    %v2857 = vunpack.c.l.b16 %v2393
    %v2858 = vunpack.c.h.b16 %v2393
    %v2859 = vunpack.c.l.b16 %v2394
    %v2860 = vunpack.c.h.b16 %v2394
    %v2861 = vunpack.c.l.b16 %v2395
    %v2862 = vunpack.c.h.b16 %v2395
    %v2863 = vunpack.c.l.b16 %v2396
    %v2864 = vunpack.c.l.b16 %v2397
    %v2865 = vunpack.c.h.b16 %v2397
    %v2866 = vunpack.c.l.b16 %v2398
    %v2867 = vunpack.c.h.b16 %v2398
    %v2868 = vunpack.c.l.b16 %v2399
    %v2869 = vunpack.c.h.b16 %v2399
    %v2870 = vunpack.c.l.b16 %v2400
    %v2871 = vunpack.c.l.b16 %v2401
    %v2872 = vunpack.c.h.b16 %v2401
    %v2873 = vunpack.c.l.b16 %v2402
    %v2874 = vunpack.c.h.b16 %v2402
    %v2875 = vunpack.c.l.b16 %v2403
    %v2876 = vunpack.c.h.b16 %v2403
    %v2877 = vunpack.c.l.b16 %v2404
    %v2878 = vunpack.c.l.b16 %v2405
    %v2879 = vunpack.c.h.b16 %v2405
    %v2880 = vunpack.c.l.b16 %v2406
    %v2881 = vunpack.c.h.b16 %v2406
    %v2882 = vunpack.c.l.b16 %v2407
    %v2883 = vunpack.c.h.b16 %v2407
    %v2884 = vunpack.c.l.b16 %v2408
    %v2885 = vunpack.c.l.b16 %v2409
    %v2886 = vunpack.c.h.b16 %v2409
    %v2887 = vunpack.c.l.b16 %v2410
    %v2888 = vunpack.c.h.b16 %v2410
    %v2889 = vunpack.c.l.b16 %v2411
    %v2890 = vunpack.c.h.b16 %v2411
    %v2891 = vunpack.c.l.b16 %v2412
    %v2892 = vunpack.c.l.b16 %v2413
    %v2893 = vunpack.c.h.b16 %v2413
    %v2894 = vunpack.c.l.b16 %v2414
    %v2895 = vunpack.c.h.b16 %v2414
    %v2896 = vunpack.c.l.b16 %v2415
    %v2897 = vunpack.c.h.b16 %v2415
    %v2898 = vunpack.c.l.b16 %v2416
    %v2899 = vunpack.c.l.b16 %v2417
    %v2900 = vunpack.c.h.b16 %v2417
    %v2901 = vunpack.c.l.b16 %v2418
    %v2902 = vunpack.c.h.b16 %v2418
    %v2903 = vunpack.c.l.b16 %v2419
    %v2904 = vunpack.c.h.b16 %v2419
    %v2905 = vunpack.c.l.b16 %v2420
    %v2906 = vunpack.c.l.b16 %v2421
    %v2907 = vunpack.c.h.b16 %v2421
    %v2908 = vunpack.c.l.b16 %v2422
    %v2909 = vunpack.c.h.b16 %v2422
    %v2910 = vunpack.c.l.b16 %v2423
    %v2911 = vunpack.c.h.b16 %v2423
    %v2912 = vunpack.c.l.b16 %v2424
    %v2913 = vunpack.c.l.b16 %v2425
    %v2914 = vunpack.c.h.b16 %v2425
    %v2915 = vunpack.c.l.b16 %v2426
    %v2916 = vunpack.c.h.b16 %v2426
    %v2917 = vunpack.c.l.b16 %v2427
    %v2918 = vunpack.c.h.b16 %v2427
    %v2919 = vunpack.c.l.b16 %v2428
    %v2920 = vunpack.c.l.b16 %v2429
    %v2921 = vunpack.c.h.b16 %v2429
    %v2922 = vunpack.c.l.b16 %v2430
    %v2923 = vunpack.c.h.b16 %v2430
    %v2924 = vunpack.c.l.b16 %v2431
    %v2925 = vunpack.c.h.b16 %v2431
    %v2926 = vunpack.c.l.b16 %v2432
    %v2927 = vunpack.c.l.b16 %v2433
    %v2928 = vunpack.c.h.b16 %v2433
    %v2929 = vunpack.c.l.b16 %v2434
    %v2930 = vunpack.c.h.b16 %v2434
    %v2931 = vunpack.c.l.b16 %v2435
    %v2932 = vunpack.c.h.b16 %v2435
    %v2933 = vunpack.c.l.b16 %v2436
    %v2934 = vunpack.c.l.b16 %v2437
    %v2935 = vunpack.c.h.b16 %v2437
    %v2936 = vunpack.c.l.b16 %v2438
    %v2937 = vunpack.c.h.b16 %v2438
    %v2938 = vunpack.c.l.b16 %v2439
    %v2939 = vunpack.c.h.b16 %v2439
    %v2940 = vunpack.c.l.b16 %v2440
    %v2941 = vunpack.c.l.b16 %v2441
    %v2942 = vunpack.c.h.b16 %v2441
    %v2943 = vunpack.c.l.b16 %v2442
    %v2944 = vunpack.c.h.b16 %v2442
    %v2945 = vunpack.c.l.b16 %v2443
    %v2946 = vunpack.c.h.b16 %v2443
    %v2947 = vunpack.c.l.b16 %v2444
    %v2948 = vunpack.c.l.b16 %v2445
    %v2949 = vunpack.c.h.b16 %v2445
    %v2950 = vunpack.c.l.b16 %v2446
    %v2951 = vunpack.c.h.b16 %v2446
    %v2952 = vunpack.c.l.b16 %v2447
    %v2953 = vunpack.c.h.b16 %v2447
    %v2954 = vunpack.c.l.b16 %v2448
    %v2955 = vunpack.c.l.b16 %v2449
    %v2956 = vunpack.c.h.b16 %v2449
    %v2957 = vunpack.c.l.b16 %v2450
    %v2958 = vunpack.c.h.b16 %v2450
    %v2959 = vunpack.c.l.b16 %v2451
    %v2960 = vunpack.c.h.b16 %v2451
    %v2961 = vunpack.c.l.b16 %v2452
    %v2962 = vunpack.c.l.b16 %v2453
    %v2963 = vunpack.c.h.b16 %v2453
    %v2964 = vunpack.c.l.b16 %v2454
    %v2965 = vunpack.c.h.b16 %v2454
    %v2966 = vunpack.c.l.b16 %v2455
    %v2967 = vunpack.c.h.b16 %v2455
    %v2968 = vunpack.c.l.b16 %v2456
    %v2969 = vunpack.c.l.b16 %v2457
    %v2970 = vunpack.c.h.b16 %v2457
    %v2971 = vunpack.c.l.b16 %v2458
    %v2972 = vunpack.c.h.b16 %v2458
    %v2973 = vunpack.c.l.b16 %v2459
    %v2974 = vunpack.c.h.b16 %v2459
    %v2975 = vunpack.c.l.b16 %v2460
    %v2976 = vunpack.c.l.b16 %v2461
    %v2977 = vunpack.c.h.b16 %v2461
    %v2978 = vunpack.c.l.b16 %v2462
    %v2979 = vunpack.c.h.b16 %v2462
    %v2980 = vunpack.c.l.b16 %v2463
    %v2981 = vunpack.c.h.b16 %v2463
    %v2982 = vunpack.c.l.b16 %v2464
    %v2983 = vunpack.c.l.b16 %v2465
    %v2984 = vunpack.c.h.b16 %v2465
    %v2985 = vunpack.c.l.b16 %v2466
    %v2986 = vunpack.c.h.b16 %v2466
    %v2987 = vunpack.c.l.b16 %v2467
    %v2988 = vunpack.c.h.b16 %v2467
    %v2989 = vunpack.c.l.b16 %v2468
    %v2990 = vunpack.c.l.b16 %v2469
    %v2991 = vunpack.c.h.b16 %v2469
    %v2992 = vunpack.c.l.b16 %v2470
    %v2993 = vunpack.c.h.b16 %v2470
    %v2994 = vunpack.c.l.b16 %v2471
    %v2995 = vunpack.c.h.b16 %v2471
    %v2996 = vunpack.c.l.b16 %v2472
    %v2997 = vunpack.c.l.b16 %v2473
    %v2998 = vunpack.c.h.b16 %v2473
    %v2999 = vunpack.c.l.b16 %v2474
    %v3000 = vunpack.c.h.b16 %v2474
    %v3001 = vunpack.c.l.b16 %v2475
    %v3002 = vunpack.c.h.b16 %v2475
    %v3003 = vunpack.c.l.b16 %v2476
    %v3004 = vunpack.c.l.b16 %v2477
    %v3005 = vunpack.c.h.b16 %v2477
    %v3006 = vunpack.c.l.b16 %v2478
    %v3007 = vunpack.c.h.b16 %v2478
    %v3008 = vunpack.c.l.b16 %v2479
    %v3009 = vunpack.c.h.b16 %v2479
    %v3010 = vunpack.c.l.b16 %v2480
    %v3011 = vunpack.c.l.b16 %v2481
    %v3012 = vunpack.c.h.b16 %v2481
    %v3013 = vunpack.c.l.b16 %v2482
    %v3014 = vunpack.c.h.b16 %v2482
    %v3015 = vunpack.c.l.b16 %v2483
    %v3016 = vunpack.c.h.b16 %v2483
    %v3017 = vunpack.c.l.b16 %v2484
    %v3018 = vunpack.c.l.b16 %v2485
    %v3019 = vunpack.c.h.b16 %v2485
    %v3020 = vunpack.c.l.b16 %v2486
    %v3021 = vunpack.c.h.b16 %v2486
    %v3022 = vunpack.c.l.b16 %v2487
    %v3023 = vunpack.c.h.b16 %v2487
    %v3024 = vunpack.c.l.b16 %v2488
    %v3025 = vunpack.c.l.b16 %v2489
    %v3026 = vunpack.c.h.b16 %v2489
    %v3027 = vunpack.c.l.b16 %v2490
    %v3028 = vunpack.c.h.b16 %v2490
    %v3029 = vunpack.c.l.b16 %v2491
    %v3030 = vunpack.c.h.b16 %v2491
    %v3031 = vunpack.c.l.b16 %v2492
    %v3032 = vunpack.c.l.b16 %v2493
    %v3033 = vunpack.c.h.b16 %v2493
    %v3034 = vunpack.c.l.b16 %v2494
    %v3035 = vunpack.c.h.b16 %v2494
    %v3036 = vunpack.c.l.b16 %v2495
    %v3037 = vunpack.c.h.b16 %v2495
    %v3038 = vunpack.c.l.b16 %v2496
    %v3039 = vunpack.c.l.b16 %v2497
    %v3040 = vunpack.c.h.b16 %v2497
    %v3041 = vunpack.c.l.b16 %v2498
    %v3042 = vunpack.c.h.b16 %v2498
    %v3043 = vunpack.c.l.b16 %v2499
    %v3044 = vunpack.c.h.b16 %v2499
    %v3045 = vunpack.c.l.b16 %v2500
    %v3046 = vunpack.c.l.b16 %v2501
    %v3047 = vunpack.c.h.b16 %v2501
    %v3048 = vunpack.c.l.b16 %v2502
    %v3049 = vunpack.c.h.b16 %v2502
    %v3050 = vunpack.c.l.b16 %v2503
    %v3051 = vunpack.c.h.b16 %v2503
    %v3052 = vunpack.c.l.b16 %v2504
    %v3053 = vunpack.c.l.b16 %v2505
    %v3054 = vunpack.c.h.b16 %v2505
    %v3055 = vunpack.c.l.b16 %v2506
    %v3056 = vunpack.c.h.b16 %v2506
    %v3057 = vunpack.c.l.b16 %v2507
    %v3058 = vunpack.c.h.b16 %v2507
    %v3059 = vunpack.c.l.b16 %v2508
    %v3060 = vunpack.c.l.b16 %v2509
    %v3061 = vunpack.c.h.b16 %v2509
    %v3062 = vunpack.c.l.b16 %v2510
    %v3063 = vunpack.c.h.b16 %v2510
    %v3064 = vunpack.c.l.b16 %v2511
    %v3065 = vunpack.c.h.b16 %v2511
    %v3066 = vunpack.c.l.b16 %v2512
    %v3067 = vunpack.c.l.b16 %v2513
    %v3068 = vunpack.c.h.b16 %v2513
    %v3069 = vunpack.c.l.b16 %v2514
    %v3070 = vunpack.c.h.b16 %v2514
    %v3071 = vunpack.c.l.b16 %v2515
    %v3072 = vunpack.c.h.b16 %v2515
    %v3073 = vunpack.c.l.b16 %v2516
    %v3074 = vunpack.c.l.b16 %v2517
    %v3075 = vunpack.c.h.b16 %v2517
    %v3076 = vunpack.c.l.b16 %v2518
    %v3077 = vunpack.c.h.b16 %v2518
    %v3078 = vunpack.c.l.b16 %v2519
    %v3079 = vunpack.c.h.b16 %v2519
    %v3080 = vunpack.c.l.b16 %v2520
    %v3081 = vunpack.c.l.b16 %v2521
    %v3082 = vunpack.c.h.b16 %v2521
    %v3083 = vunpack.c.l.b16 %v2522
    %v3084 = vunpack.c.h.b16 %v2522
    %v3085 = vunpack.c.l.b16 %v2523
    %v3086 = vunpack.c.h.b16 %v2523
    %v3087 = vunpack.c.l.b16 %v2524
    %v3088 = vunpack.c.l.b16 %v2525
    %v3089 = vunpack.c.h.b16 %v2525
    %v3090 = vunpack.c.l.b16 %v2526
    %v3091 = vunpack.c.h.b16 %v2526
    %v3092 = vunpack.c.l.b16 %v2527
    %v3093 = vunpack.c.h.b16 %v2527
    %v3094 = vunpack.c.l.b16 %v2528
    %v3095 = vunpack.c.l.b16 %v2529
    %v3096 = vunpack.c.h.b16 %v2529
    %v3097 = vunpack.c.l.b16 %v2530
    %v3098 = vunpack.c.h.b16 %v2530
    %v3099 = vunpack.c.l.b16 %v2531
    %v3100 = vunpack.c.h.b16 %v2531
    %v3101 = vunpack.c.l.b16 %v2532
    %v3102 = vpack.c.b16 %v2759, %v2752
    %v3103 = vpack.c.b16 %v2760, %v2753
    %v3104 = vpack.c.b16 %v2761, %v2754
    %v3105 = vpack.c.b16 %v2762, %v2755
    %v3106 = vpack.c.b16 %v2763, %v2756
    %v3107 = vpack.c.b16 %v2764, %v2757
    %v3108 = vpack.c.b16 %v2765, %v2758
    %v3109 = vpack.c.b16 %v2773, %v2766
    %v3110 = vpack.c.b16 %v2774, %v2767
    %v3111 = vpack.c.b16 %v2775, %v2768
    %v3112 = vpack.c.b16 %v2776, %v2769
    %v3113 = vpack.c.b16 %v2777, %v2770
    %v3114 = vpack.c.b16 %v2778, %v2771
    %v3115 = vpack.c.b16 %v2779, %v2772
    %v3116 = vpack.c.b16 %v2787, %v2780
    %v3117 = vpack.c.b16 %v2788, %v2781
    %v3118 = vpack.c.b16 %v2789, %v2782
    %v3119 = vpack.c.b16 %v2790, %v2783
    %v3120 = vpack.c.b16 %v2791, %v2784
    %v3121 = vpack.c.b16 %v2792, %v2785
    %v3122 = vpack.c.b16 %v2793, %v2786
    %v3123 = vpack.c.b16 %v2801, %v2794
    %v3124 = vpack.c.b16 %v2802, %v2795
    %v3125 = vpack.c.b16 %v2803, %v2796
    %v3126 = vpack.c.b16 %v2804, %v2797
    %v3127 = vpack.c.b16 %v2805, %v2798
    %v3128 = vpack.c.b16 %v2806, %v2799
    %v3129 = vpack.c.b16 %v2807, %v2800
    %v3130 = vpack.c.b16 %v2815, %v2808
    %v3131 = vpack.c.b16 %v2816, %v2809
    %v3132 = vpack.c.b16 %v2817, %v2810
    %v3133 = vpack.c.b16 %v2818, %v2811
    %v3134 = vpack.c.b16 %v2819, %v2812
    %v3135 = vpack.c.b16 %v2820, %v2813
    %v3136 = vpack.c.b16 %v2821, %v2814
    %v3137 = vpack.c.b16 %v2829, %v2822
    %v3138 = vpack.c.b16 %v2830, %v2823
    %v3139 = vpack.c.b16 %v2831, %v2824
    %v3140 = vpack.c.b16 %v2832, %v2825
    %v3141 = vpack.c.b16 %v2833, %v2826
    %v3142 = vpack.c.b16 %v2834, %v2827
    %v3143 = vpack.c.b16 %v2835, %v2828
    %v3144 = vpack.c.b16 %v2843, %v2836
    %v3145 = vpack.c.b16 %v2844, %v2837
    %v3146 = vpack.c.b16 %v2845, %v2838
    %v3147 = vpack.c.b16 %v2846, %v2839
    %v3148 = vpack.c.b16 %v2847, %v2840
    %v3149 = vpack.c.b16 %v2848, %v2841
    %v3150 = vpack.c.b16 %v2849, %v2842
    %v3151 = vpack.c.b16 %v2857, %v2850
    %v3152 = vpack.c.b16 %v2858, %v2851
    %v3153 = vpack.c.b16 %v2859, %v2852
    %v3154 = vpack.c.b16 %v2860, %v2853
    %v3155 = vpack.c.b16 %v2861, %v2854
    %v3156 = vpack.c.b16 %v2862, %v2855
    %v3157 = vpack.c.b16 %v2863, %v2856
    %v3158 = vpack.c.b16 %v2871, %v2864
    %v3159 = vpack.c.b16 %v2872, %v2865
    %v3160 = vpack.c.b16 %v2873, %v2866
    %v3161 = vpack.c.b16 %v2874, %v2867
    %v3162 = vpack.c.b16 %v2875, %v2868
    %v3163 = vpack.c.b16 %v2876, %v2869
    %v3164 = vpack.c.b16 %v2877, %v2870
    %v3165 = vpack.c.b16 %v2885, %v2878
    %v3166 = vpack.c.b16 %v2886, %v2879
    %v3167 = vpack.c.b16 %v2887, %v2880
    %v3168 = vpack.c.b16 %v2888, %v2881
    %v3169 = vpack.c.b16 %v2889, %v2882
    %v3170 = vpack.c.b16 %v2890, %v2883
    %v3171 = vpack.c.b16 %v2891, %v2884
    %v3172 = vpack.c.b16 %v2899, %v2892
    %v3173 = vpack.c.b16 %v2900, %v2893
    %v3174 = vpack.c.b16 %v2901, %v2894
    %v3175 = vpack.c.b16 %v2902, %v2895
    %v3176 = vpack.c.b16 %v2903, %v2896
    %v3177 = vpack.c.b16 %v2904, %v2897
    %v3178 = vpack.c.b16 %v2905, %v2898
    %v3179 = vpack.c.b16 %v2913, %v2906
    %v3180 = vpack.c.b16 %v2914, %v2907
    %v3181 = vpack.c.b16 %v2915, %v2908
    %v3182 = vpack.c.b16 %v2916, %v2909
    %v3183 = vpack.c.b16 %v2917, %v2910
    %v3184 = vpack.c.b16 %v2918, %v2911
    %v3185 = vpack.c.b16 %v2919, %v2912
    %v3186 = vpack.c.b16 %v2927, %v2920
    %v3187 = vpack.c.b16 %v2928, %v2921
    %v3188 = vpack.c.b16 %v2929, %v2922
    %v3189 = vpack.c.b16 %v2930, %v2923
    %v3190 = vpack.c.b16 %v2931, %v2924
    %v3191 = vpack.c.b16 %v2932, %v2925
    %v3192 = vpack.c.b16 %v2933, %v2926
    %v3193 = vpack.c.b16 %v2941, %v2934
    %v3194 = vpack.c.b16 %v2942, %v2935
    %v3195 = vpack.c.b16 %v2943, %v2936
    %v3196 = vpack.c.b16 %v2944, %v2937
    %v3197 = vpack.c.b16 %v2945, %v2938
    %v3198 = vpack.c.b16 %v2946, %v2939
    %v3199 = vpack.c.b16 %v2947, %v2940
    %v3200 = vpack.c.b16 %v2955, %v2948
    %v3201 = vpack.c.b16 %v2956, %v2949
    %v3202 = vpack.c.b16 %v2957, %v2950
    %v3203 = vpack.c.b16 %v2958, %v2951
    %v3204 = vpack.c.b16 %v2959, %v2952
    %v3205 = vpack.c.b16 %v2960, %v2953
    %v3206 = vpack.c.b16 %v2961, %v2954
    %v3207 = vpack.c.b16 %v2969, %v2962
    %v3208 = vpack.c.b16 %v2970, %v2963
    %v3209 = vpack.c.b16 %v2971, %v2964
    %v3210 = vpack.c.b16 %v2972, %v2965
    %v3211 = vpack.c.b16 %v2973, %v2966
    %v3212 = vpack.c.b16 %v2974, %v2967
    %v3213 = vpack.c.b16 %v2975, %v2968
    %v3214 = vpack.c.b16 %v2983, %v2976
    %v3215 = vpack.c.b16 %v2984, %v2977
    %v3216 = vpack.c.b16 %v2985, %v2978
    %v3217 = vpack.c.b16 %v2986, %v2979
    %v3218 = vpack.c.b16 %v2987, %v2980
    %v3219 = vpack.c.b16 %v2988, %v2981
    %v3220 = vpack.c.b16 %v2989, %v2982
    %v3221 = vpack.c.b16 %v2997, %v2990
    %v3222 = vpack.c.b16 %v2998, %v2991
    %v3223 = vpack.c.b16 %v2999, %v2992
    %v3224 = vpack.c.b16 %v3000, %v2993
    %v3225 = vpack.c.b16 %v3001, %v2994
    %v3226 = vpack.c.b16 %v3002, %v2995
    %v3227 = vpack.c.b16 %v3003, %v2996
    %v3228 = vpack.c.b16 %v3011, %v3004
    %v3229 = vpack.c.b16 %v3012, %v3005
    %v3230 = vpack.c.b16 %v3013, %v3006
    %v3231 = vpack.c.b16 %v3014, %v3007
    %v3232 = vpack.c.b16 %v3015, %v3008
    %v3233 = vpack.c.b16 %v3016, %v3009
    %v3234 = vpack.c.b16 %v3017, %v3010
    %v3235 = vpack.c.b16 %v3025, %v3018
    %v3236 = vpack.c.b16 %v3026, %v3019
    %v3237 = vpack.c.b16 %v3027, %v3020
    %v3238 = vpack.c.b16 %v3028, %v3021
    %v3239 = vpack.c.b16 %v3029, %v3022
    %v3240 = vpack.c.b16 %v3030, %v3023
    %v3241 = vpack.c.b16 %v3031, %v3024
    %v3242 = vpack.c.b16 %v3039, %v3032
    %v3243 = vpack.c.b16 %v3040, %v3033
    %v3244 = vpack.c.b16 %v3041, %v3034
    %v3245 = vpack.c.b16 %v3042, %v3035
    %v3246 = vpack.c.b16 %v3043, %v3036
    %v3247 = vpack.c.b16 %v3044, %v3037
    %v3248 = vpack.c.b16 %v3045, %v3038
    %v3249 = vpack.c.b16 %v3053, %v3046
    %v3250 = vpack.c.b16 %v3054, %v3047
    %v3251 = vpack.c.b16 %v3055, %v3048
    %v3252 = vpack.c.b16 %v3056, %v3049
    %v3253 = vpack.c.b16 %v3057, %v3050
    %v3254 = vpack.c.b16 %v3058, %v3051
    %v3255 = vpack.c.b16 %v3059, %v3052
    %v3256 = vpack.c.b16 %v3067, %v3060
    %v3257 = vpack.c.b16 %v3068, %v3061
    %v3258 = vpack.c.b16 %v3069, %v3062
    %v3259 = vpack.c.b16 %v3070, %v3063
    %v3260 = vpack.c.b16 %v3071, %v3064
    %v3261 = vpack.c.b16 %v3072, %v3065
    %v3262 = vpack.c.b16 %v3073, %v3066
    %v3263 = vpack.c.b16 %v3081, %v3074
    %v3264 = vpack.c.b16 %v3082, %v3075
    %v3265 = vpack.c.b16 %v3083, %v3076
    %v3266 = vpack.c.b16 %v3084, %v3077
    %v3267 = vpack.c.b16 %v3085, %v3078
    %v3268 = vpack.c.b16 %v3086, %v3079
    %v3269 = vpack.c.b16 %v3087, %v3080
    %v3270 = vpack.c.b16 %v3095, %v3088
    %v3271 = vpack.c.b16 %v3096, %v3089
    %v3272 = vpack.c.b16 %v3097, %v3090
    %v3273 = vpack.c.b16 %v3098, %v3091
    %v3274 = vpack.c.b16 %v3099, %v3092
    %v3275 = vpack.c.b16 %v3100, %v3093
    %v3276 = vpack.c.b16 %v3101, %v3094
    %vm3452 = vcmask 130048
    %v3454 = vsel %vm3452, %v2548, 0
    %3456 = vmatprep.subr.bf16.mxu0 %v3152
    %3457 = vmatpush1.bf16.msra.mxu0 %v3151
    %3458 = vmatprep.subr.bf16.mxu0 %v3145
    %3459 = vmatpush1.bf16.msra.mxu0 %v3144
    %3460 = vmatprep.subr.bf16.mxu0 %v3138
    %3461 = vmatpush1.bf16.msra.mxu0 %v3137
    %3462 = vmatprep.subr.bf16.mxu0 %v3131
    %3463 = vmatpush1.bf16.msra.mxu0 %v3130
    %3464 = vmatprep.subr.bf16.mxu0 %v3124
    %3465 = vmatpush1.bf16.msra.mxu0 %v3123
    %3466 = vmatprep.subr.bf16.mxu0 %v3117
    %3467 = vmatpush1.bf16.msra.mxu0 %v3116
    %3468 = vmatprep.subr.bf16.mxu0 %v3110
    %3469 = vmatpush1.bf16.msra.mxu0 %v3109
    %3470 = vmatprep.subr.bf16.mxu0 %v3103
    %3471 = vmatpush1.bf16.msra.mxu0 %v3102
    %3472 = vmatprep.subr.bf16.mxu0 %v3208
    %3473 = vmatpush2.bf16.msra.mxu0 %v3207
    %3474 = vmatprep.subr.bf16.mxu0 %v3201
    %3475 = vmatpush2.bf16.msra.mxu0 %v3200
    %3476 = vmatprep.subr.bf16.mxu0 %v3194
    %3477 = vmatpush2.bf16.msra.mxu0 %v3193
    %3478 = vmatprep.subr.bf16.mxu0 %v3187
    %3479 = vmatpush2.bf16.msra.mxu0 %v3186
    %3480 = vmatprep.subr.bf16.mxu0 %v3180
    %3481 = vmatpush2.bf16.msra.mxu0 %v3179
    %3482 = vmatprep.subr.bf16.mxu0 %v3173
    %3483 = vmatpush2.bf16.msra.mxu0 %v3172
    %3484 = vmatprep.subr.bf16.mxu0 %v3166
    %3485 = vmatpush2.bf16.msra.mxu0 %v3165
    %3486 = vmatprep.subr.bf16.mxu0 %v3159
    %3487 = vmatpush2.bf16.msra.mxu0 %v3158
    %3488 = vmatprep.mubr.bf16.mxu0 %v2546
    %3489 = vmatmul.mubr.bf16.gmra.mxu0 %v2545
    %v3490 = vpop.f32.mrf.mxu0
    %v3491 = vadd.f32 %v2537, %v3490
    %v3492 = vpop.f32.mrf.mxu0
    %v3493 = vadd.f32 %v2537, %v3492
    %v3494 = vpop.f32.mrf.mxu0
    %v3495 = vpop.f32.mrf.mxu0
    %3496 = vdwg.mxu0
    %3497 = vmatprep.subr.bf16.mxu0 %v3264
    %3498 = vmatpush1.bf16.msra.mxu0 %v3263
    %3499 = vmatprep.subr.bf16.mxu0 %v3257
    %3500 = vmatpush1.bf16.msra.mxu0 %v3256
    %3501 = vmatprep.subr.bf16.mxu0 %v3250
    %3502 = vmatpush1.bf16.msra.mxu0 %v3249
    %3503 = vmatprep.subr.bf16.mxu0 %v3243
    %3504 = vmatpush1.bf16.msra.mxu0 %v3242
    %3505 = vmatprep.subr.bf16.mxu0 %v3236
    %3506 = vmatpush1.bf16.msra.mxu0 %v3235
    %3507 = vmatprep.subr.bf16.mxu0 %v3229
    %3508 = vmatpush1.bf16.msra.mxu0 %v3228
    %3509 = vmatprep.subr.bf16.mxu0 %v3222
    %3510 = vmatpush1.bf16.msra.mxu0 %v3221
    %3511 = vmatprep.subr.bf16.mxu0 %v3215
    %3512 = vmatpush1.bf16.msra.mxu0 %v3214
    %3513 = vmatprep.subr.bf16.mxu0 0
    %3514 = vmatpush2.bf16.msra.mxu0 0
    %3515 = vmatprep.subr.bf16.mxu0 0
    %3516 = vmatpush2.bf16.msra.mxu0 0
    %3517 = vmatprep.subr.bf16.mxu0 0
    %3518 = vmatpush2.bf16.msra.mxu0 0
    %3519 = vmatprep.subr.bf16.mxu0 0
    %3520 = vmatpush2.bf16.msra.mxu0 0
    %3521 = vmatprep.subr.bf16.mxu0 0
    %3522 = vmatpush2.bf16.msra.mxu0 0
    %3523 = vmatprep.subr.bf16.mxu0 0
    %3524 = vmatpush2.bf16.msra.mxu0 0
    %3525 = vmatprep.subr.bf16.mxu0 0
    %3526 = vmatpush2.bf16.msra.mxu0 0
    %3527 = vmatprep.subr.bf16.mxu0 %v3271
    %3528 = vmatpush2.bf16.msra.mxu0 %v3270
    %3529 = vmatprep.mubr.bf16.mxu0 %v3454
    %3530 = vmatmul.mubr.bf16.gmra.mxu0 %v2547
    %v3531 = vpop.f32.mrf.mxu0
    %v3532 = vadd.f32 %v3491, %v3531
    %v3533 = vpop.f32.mrf.mxu0
    %v3534 = vadd.f32 %v3493, %v3533
    %v3535 = vpop.f32.mrf.mxu0
    %v3536 = vpop.f32.mrf.mxu0
    %3537 = vdwg.mxu0
    %3538 = vmatprep.subr.bf16.mxu0 %v3154
    %3539 = vmatpush1.bf16.msra.mxu0 %v3153
    %3540 = vmatprep.subr.bf16.mxu0 %v3147
    %3541 = vmatpush1.bf16.msra.mxu0 %v3146
    %3542 = vmatprep.subr.bf16.mxu0 %v3140
    %3543 = vmatpush1.bf16.msra.mxu0 %v3139
    %3544 = vmatprep.subr.bf16.mxu0 %v3133
    %3545 = vmatpush1.bf16.msra.mxu0 %v3132
    %3546 = vmatprep.subr.bf16.mxu0 %v3126
    %3547 = vmatpush1.bf16.msra.mxu0 %v3125
    %3548 = vmatprep.subr.bf16.mxu0 %v3119
    %3549 = vmatpush1.bf16.msra.mxu0 %v3118
    %3550 = vmatprep.subr.bf16.mxu0 %v3112
    %3551 = vmatpush1.bf16.msra.mxu0 %v3111
    %3552 = vmatprep.subr.bf16.mxu0 %v3105
    %3553 = vmatpush1.bf16.msra.mxu0 %v3104
    %3554 = vmatprep.subr.bf16.mxu0 %v3210
    %3555 = vmatpush2.bf16.msra.mxu0 %v3209
    %3556 = vmatprep.subr.bf16.mxu0 %v3203
    %3557 = vmatpush2.bf16.msra.mxu0 %v3202
    %3558 = vmatprep.subr.bf16.mxu0 %v3196
    %3559 = vmatpush2.bf16.msra.mxu0 %v3195
    %3560 = vmatprep.subr.bf16.mxu0 %v3189
    %3561 = vmatpush2.bf16.msra.mxu0 %v3188
    %3562 = vmatprep.subr.bf16.mxu0 %v3182
    %3563 = vmatpush2.bf16.msra.mxu0 %v3181
    %3564 = vmatprep.subr.bf16.mxu0 %v3175
    %3565 = vmatpush2.bf16.msra.mxu0 %v3174
    %3566 = vmatprep.subr.bf16.mxu0 %v3168
    %3567 = vmatpush2.bf16.msra.mxu0 %v3167
    %3568 = vmatprep.subr.bf16.mxu0 %v3161
    %3569 = vmatpush2.bf16.msra.mxu0 %v3160
    %3570 = vmatprep.mubr.bf16.mxu0 %v2546
    %3571 = vmatmul.mubr.bf16.gmra.mxu0 %v2545
    %v3572 = vpop.f32.mrf.mxu0
    %v3573 = vadd.f32 %v2537, %v3572
    %v3574 = vpop.f32.mrf.mxu0
    %v3575 = vadd.f32 %v2537, %v3574
    %v3576 = vpop.f32.mrf.mxu0
    %v3577 = vpop.f32.mrf.mxu0
    %3578 = vdwg.mxu0
    %3579 = vmatprep.subr.bf16.mxu0 %v3266
    %3580 = vmatpush1.bf16.msra.mxu0 %v3265
    %3581 = vmatprep.subr.bf16.mxu0 %v3259
    %3582 = vmatpush1.bf16.msra.mxu0 %v3258
    %3583 = vmatprep.subr.bf16.mxu0 %v3252
    %3584 = vmatpush1.bf16.msra.mxu0 %v3251
    %3585 = vmatprep.subr.bf16.mxu0 %v3245
    %3586 = vmatpush1.bf16.msra.mxu0 %v3244
    %3587 = vmatprep.subr.bf16.mxu0 %v3238
    %3588 = vmatpush1.bf16.msra.mxu0 %v3237
    %3589 = vmatprep.subr.bf16.mxu0 %v3231
    %3590 = vmatpush1.bf16.msra.mxu0 %v3230
    %3591 = vmatprep.subr.bf16.mxu0 %v3224
    %3592 = vmatpush1.bf16.msra.mxu0 %v3223
    %3593 = vmatprep.subr.bf16.mxu0 %v3217
    %3594 = vmatpush1.bf16.msra.mxu0 %v3216
    %3595 = vmatprep.subr.bf16.mxu0 0
    %3596 = vmatpush2.bf16.msra.mxu0 0
    %3597 = vmatprep.subr.bf16.mxu0 0
    %3598 = vmatpush2.bf16.msra.mxu0 0
    %3599 = vmatprep.subr.bf16.mxu0 0
    %3600 = vmatpush2.bf16.msra.mxu0 0
    %3601 = vmatprep.subr.bf16.mxu0 0
    %3602 = vmatpush2.bf16.msra.mxu0 0
    %3603 = vmatprep.subr.bf16.mxu0 0
    %3604 = vmatpush2.bf16.msra.mxu0 0
    %3605 = vmatprep.subr.bf16.mxu0 0
    %3606 = vmatpush2.bf16.msra.mxu0 0
    %3607 = vmatprep.subr.bf16.mxu0 0
    %3608 = vmatpush2.bf16.msra.mxu0 0
    %3609 = vmatprep.subr.bf16.mxu0 %v3273
    %3610 = vmatpush2.bf16.msra.mxu0 %v3272
    %3611 = vmatprep.mubr.bf16.mxu0 %v3454
    %3612 = vmatmul.mubr.bf16.gmra.mxu0 %v2547
    %v3613 = vpop.f32.mrf.mxu0
    %v3614 = vadd.f32 %v3573, %v3613
    %v3615 = vpop.f32.mrf.mxu0
    %v3616 = vadd.f32 %v3575, %v3615
    %v3617 = vpop.f32.mrf.mxu0
    %v3618 = vpop.f32.mrf.mxu0
    %3619 = vdwg.mxu0
    %3620 = vmatprep.subr.bf16.mxu0 %v3156
    %3621 = vmatpush1.bf16.msra.mxu0 %v3155
    %3622 = vmatprep.subr.bf16.mxu0 %v3149
    %3623 = vmatpush1.bf16.msra.mxu0 %v3148
    %3624 = vmatprep.subr.bf16.mxu0 %v3142
    %3625 = vmatpush1.bf16.msra.mxu0 %v3141
    %3626 = vmatprep.subr.bf16.mxu0 %v3135
    %3627 = vmatpush1.bf16.msra.mxu0 %v3134
    %3628 = vmatprep.subr.bf16.mxu0 %v3128
    %3629 = vmatpush1.bf16.msra.mxu0 %v3127
    %3630 = vmatprep.subr.bf16.mxu0 %v3121
    %3631 = vmatpush1.bf16.msra.mxu0 %v3120
    %3632 = vmatprep.subr.bf16.mxu0 %v3114
    %3633 = vmatpush1.bf16.msra.mxu0 %v3113
    %3634 = vmatprep.subr.bf16.mxu0 %v3107
    %3635 = vmatpush1.bf16.msra.mxu0 %v3106
    %3636 = vmatprep.subr.bf16.mxu0 %v3212
    %3637 = vmatpush2.bf16.msra.mxu0 %v3211
    %3638 = vmatprep.subr.bf16.mxu0 %v3205
    %3639 = vmatpush2.bf16.msra.mxu0 %v3204
    %3640 = vmatprep.subr.bf16.mxu0 %v3198
    %3641 = vmatpush2.bf16.msra.mxu0 %v3197
    %3642 = vmatprep.subr.bf16.mxu0 %v3191
    %3643 = vmatpush2.bf16.msra.mxu0 %v3190
    %3644 = vmatprep.subr.bf16.mxu0 %v3184
    %3645 = vmatpush2.bf16.msra.mxu0 %v3183
    %3646 = vmatprep.subr.bf16.mxu0 %v3177
    %3647 = vmatpush2.bf16.msra.mxu0 %v3176
    %3648 = vmatprep.subr.bf16.mxu0 %v3170
    %3649 = vmatpush2.bf16.msra.mxu0 %v3169
    %3650 = vmatprep.subr.bf16.mxu0 %v3163
    %3651 = vmatpush2.bf16.msra.mxu0 %v3162
    %3652 = vmatprep.mubr.bf16.mxu0 %v2546
    %3653 = vmatmul.mubr.bf16.gmra.mxu0 %v2545
    %v3654 = vpop.f32.mrf.mxu0
    %v3655 = vadd.f32 %v2537, %v3654
    %v3656 = vpop.f32.mrf.mxu0
    %v3657 = vadd.f32 %v2537, %v3656
    %v3658 = vpop.f32.mrf.mxu0
    %v3659 = vpop.f32.mrf.mxu0
    %3660 = vdwg.mxu0
    %3661 = vmatprep.subr.bf16.mxu0 %v3268
    %3662 = vmatpush1.bf16.msra.mxu0 %v3267
    %3663 = vmatprep.subr.bf16.mxu0 %v3261
    %3664 = vmatpush1.bf16.msra.mxu0 %v3260
    %3665 = vmatprep.subr.bf16.mxu0 %v3254
    %3666 = vmatpush1.bf16.msra.mxu0 %v3253
    %3667 = vmatprep.subr.bf16.mxu0 %v3247
    %3668 = vmatpush1.bf16.msra.mxu0 %v3246
    %3669 = vmatprep.subr.bf16.mxu0 %v3240
    %3670 = vmatpush1.bf16.msra.mxu0 %v3239
    %3671 = vmatprep.subr.bf16.mxu0 %v3233
    %3672 = vmatpush1.bf16.msra.mxu0 %v3232
    %3673 = vmatprep.subr.bf16.mxu0 %v3226
    %3674 = vmatpush1.bf16.msra.mxu0 %v3225
    %3675 = vmatprep.subr.bf16.mxu0 %v3219
    %3676 = vmatpush1.bf16.msra.mxu0 %v3218
    %3677 = vmatprep.subr.bf16.mxu0 0
    %3678 = vmatpush2.bf16.msra.mxu0 0
    %3679 = vmatprep.subr.bf16.mxu0 0
    %3680 = vmatpush2.bf16.msra.mxu0 0
    %3681 = vmatprep.subr.bf16.mxu0 0
    %3682 = vmatpush2.bf16.msra.mxu0 0
    %3683 = vmatprep.subr.bf16.mxu0 0
    %3684 = vmatpush2.bf16.msra.mxu0 0
    %3685 = vmatprep.subr.bf16.mxu0 0
    %3686 = vmatpush2.bf16.msra.mxu0 0
    %3687 = vmatprep.subr.bf16.mxu0 0
    %3688 = vmatpush2.bf16.msra.mxu0 0
    %3689 = vmatprep.subr.bf16.mxu0 0
    %3690 = vmatpush2.bf16.msra.mxu0 0
    %3691 = vmatprep.subr.bf16.mxu0 %v3275
    %3692 = vmatpush2.bf16.msra.mxu0 %v3274
    %3693 = vmatprep.mubr.bf16.mxu0 %v3454
    %3694 = vmatmul.mubr.bf16.gmra.mxu0 %v2547
    %v3695 = vpop.f32.mrf.mxu0
    %v3696 = vadd.f32 %v3655, %v3695
    %v3697 = vpop.f32.mrf.mxu0
    %v3698 = vadd.f32 %v3657, %v3697
    %v3699 = vpop.f32.mrf.mxu0
    %v3700 = vpop.f32.mrf.mxu0
    %3701 = vdwg.mxu0
    %3702 = vmatprep.subr.bf16.mxu0 0
    %3703 = vmatpush1.bf16.msra.mxu0 %v3157
    %3704 = vmatprep.subr.bf16.mxu0 0
    %3705 = vmatpush1.bf16.msra.mxu0 %v3150
    %3706 = vmatprep.subr.bf16.mxu0 0
    %3707 = vmatpush1.bf16.msra.mxu0 %v3143
    %3708 = vmatprep.subr.bf16.mxu0 0
    %3709 = vmatpush1.bf16.msra.mxu0 %v3136
    %3710 = vmatprep.subr.bf16.mxu0 0
    %3711 = vmatpush1.bf16.msra.mxu0 %v3129
    %3712 = vmatprep.subr.bf16.mxu0 0
    %3713 = vmatpush1.bf16.msra.mxu0 %v3122
    %3714 = vmatprep.subr.bf16.mxu0 0
    %3715 = vmatpush1.bf16.msra.mxu0 %v3115
    %3716 = vmatprep.subr.bf16.mxu0 0
    %3717 = vmatpush1.bf16.msra.mxu0 %v3108
    %3718 = vmatprep.subr.bf16.mxu0 0
    %3719 = vmatpush2.bf16.msra.mxu0 %v3213
    %3720 = vmatprep.subr.bf16.mxu0 0
    %3721 = vmatpush2.bf16.msra.mxu0 %v3206
    %3722 = vmatprep.subr.bf16.mxu0 0
    %3723 = vmatpush2.bf16.msra.mxu0 %v3199
    %3724 = vmatprep.subr.bf16.mxu0 0
    %3725 = vmatpush2.bf16.msra.mxu0 %v3192
    %3726 = vmatprep.subr.bf16.mxu0 0
    %3727 = vmatpush2.bf16.msra.mxu0 %v3185
    %3728 = vmatprep.subr.bf16.mxu0 0
    %3729 = vmatpush2.bf16.msra.mxu0 %v3178
    %3730 = vmatprep.subr.bf16.mxu0 0
    %3731 = vmatpush2.bf16.msra.mxu0 %v3171
    %3732 = vmatprep.subr.bf16.mxu0 0
    %3733 = vmatpush2.bf16.msra.mxu0 %v3164
    %3734 = vmatprep.mubr.bf16.mxu0 %v2546
    %3735 = vmatmul.mubr.bf16.gmra.mxu0 %v2545
    %v3736 = vpop.f32.mrf.mxu0
    %v3737 = vadd.f32 %v2537, %v3736
    %v3738 = vpop.f32.mrf.mxu0
    %v3739 = vpop.f32.mrf.mxu0
    %v3740 = vpop.f32.mrf.mxu0
    %3741 = vdwg.mxu0
    %3742 = vmatprep.subr.bf16.mxu0 0
    %3743 = vmatpush1.bf16.msra.mxu0 %v3269
    %3744 = vmatprep.subr.bf16.mxu0 0
    %3745 = vmatpush1.bf16.msra.mxu0 %v3262
    %3746 = vmatprep.subr.bf16.mxu0 0
    %3747 = vmatpush1.bf16.msra.mxu0 %v3255
    %3748 = vmatprep.subr.bf16.mxu0 0
    %3749 = vmatpush1.bf16.msra.mxu0 %v3248
    %3750 = vmatprep.subr.bf16.mxu0 0
    %3751 = vmatpush1.bf16.msra.mxu0 %v3241
    %3752 = vmatprep.subr.bf16.mxu0 0
    %3753 = vmatpush1.bf16.msra.mxu0 %v3234
    %3754 = vmatprep.subr.bf16.mxu0 0
    %3755 = vmatpush1.bf16.msra.mxu0 %v3227
    %3756 = vmatprep.subr.bf16.mxu0 0
    %3757 = vmatpush1.bf16.msra.mxu0 %v3220
    %3758 = vmatprep.subr.bf16.mxu0 0
    %3759 = vmatpush2.bf16.msra.mxu0 0
    %3760 = vmatprep.subr.bf16.mxu0 0
    %3761 = vmatpush2.bf16.msra.mxu0 0
    %3762 = vmatprep.subr.bf16.mxu0 0
    %3763 = vmatpush2.bf16.msra.mxu0 0
    %3764 = vmatprep.subr.bf16.mxu0 0
    %3765 = vmatpush2.bf16.msra.mxu0 0
    %3766 = vmatprep.subr.bf16.mxu0 0
    %3767 = vmatpush2.bf16.msra.mxu0 0
    %3768 = vmatprep.subr.bf16.mxu0 0
    %3769 = vmatpush2.bf16.msra.mxu0 0
    %3770 = vmatprep.subr.bf16.mxu0 0
    %3771 = vmatpush2.bf16.msra.mxu0 0
    %3772 = vmatprep.subr.bf16.mxu0 0
    %3773 = vmatpush2.bf16.msra.mxu0 %v3276
    %3774 = vmatprep.mubr.bf16.mxu0 %v3454
    %3775 = vmatmul.mubr.bf16.gmra.mxu0 %v2547
    %v3776 = vpop.f32.mrf.mxu0
    %v3777 = vadd.f32 %v3737, %v3776
    %v3778 = vpop.f32.mrf.mxu0
    %v3779 = vpop.f32.mrf.mxu0
    %v3780 = vpop.f32.mrf.mxu0
    %3781 = vdwg.mxu0
    %3782 = vst [vmem:[#allocation7] sm:$0xff] %v3532
    %3783 = vst [vmem:[#allocation7 + $0x8] sm:$0xff] %v3534
    %3784 = vst [vmem:[#allocation7 + $0x10] sm:$0xff] %v3614
    %3785 = vst [vmem:[#allocation7 + $0x18] sm:$0xff] %v3616
    %3786 = vst [vmem:[#allocation7 + $0x20] sm:$0xff] %v3696
    %3787 = vst [vmem:[#allocation7 + $0x28] sm:$0xff] %v3698
    %vm3788 = vcmask 261120
    %3789 = vst.msk [vmem:[#allocation7 + $0x30] sm:$0xff] %vm3788, %v3777
    // Predicated region
    $region30: #{tpu_custom_call.1} parent=1 // pred_check
      _
    $region31: #{tpu_custom_call.1} parent=1 // pred_check_branch
      %3791 = sbr.rel (0) target = $region33
    $region32: #{tpu_custom_call.1} parent=1 // pred_region
      %s3793 = ssub.s32 896, 896
      %3794 = vsyncadd [#allocation6], %s3793
      %s3796 = sshll.u32 [#allocation7], 4
      %s3797 = int_to_ptr.vmem [resolvable:$true] %s3796
      %3799 = dma.vmem_to_hbm [thread:$0]  %s3797, 896, %s6, [#allocation6]
    $region33: #{tpu_custom_call.1} parent=1 // pred_fallthru
      _
    // Predicated region
    $region34: #{tpu_custom_call.1} parent=1 // pred_check
      _
    $region35: #{tpu_custom_call.1} parent=1 // pred_check_branch
      %3801 = sbr.rel (0) target = $region37
    $region36: #{tpu_custom_call.1} parent=1 // pred_region
      %3802 = dma.done [#allocation6], 896
    $region37: #{tpu_custom_call.1} parent=1 // pred_fallthru
      _
    %3803 = vsyncpa [#allocation5], 1
    %3804 = vsyncpa [#allocation6], 1

</llo_original>
